<compile_context>
chip_gen: v7x
topology: tpu7x:2x2x1
jax: 0.10.0
libtpu: 0.0.40
codegen_flags: <defaults>
</compile_context>

<pallas_src>
import functools
import math

import jax
import jax.numpy as jnp
from jax.experimental import pallas as pl
from jax.experimental.pallas import tpu as pltpu

# ----- small synthetic BERT config (stand-in for bert-base-cased) -----
VOCAB = 100
MAX_POS = 16
HIDDEN = 32
NUM_HEADS = 2
HEAD_DIM = HIDDEN // NUM_HEADS
FFN = 64
NUM_LAYERS = 2
N_CLASSES = 3
NPAD = 128          # lane-dense padded classifier width (sliced back to N_CLASSES in JAX)
LN_EPS = 1e-12


# ---------------------------------------------------------------------------
# One fused Pallas kernel: emb-LN -> encoder layers -> pooler -> classifier
# Grid: (B,)  — each grid step processes one batch element (8 tokens) entirely
# in VMEM.  All weights (~50 KB f32) are full-block resident in VMEM.
# ---------------------------------------------------------------------------
def _bert_fused_kernel(x_ref, mask_ref,
                       emb_g_ref, emb_b_ref,
                       wqkv_ref, bqkv_ref, wo_ref, bo_ref,
                       ln1g_ref, ln1b_ref,
                       w1_ref, b1_ref, w2_ref, b2_ref,
                       ln2g_ref, ln2b_ref,
                       poolw_ref, poolb_ref, outw_ref, outb_ref,
                       logits_ref,
                       *, num_layers, num_heads, head_dim, hidden):
    def layernorm(v, g, b):
        mu = jnp.mean(v, axis=-1, keepdims=True)
        var = jnp.mean((v - mu) ** 2, axis=-1, keepdims=True)
        return (v - mu) * jax.lax.rsqrt(var + LN_EPS) * g + b

    inv_sqrt2 = 0.7071067811865476
    scale = 1.0 / math.sqrt(head_dim)

    # --- embeddings layernorm ---
    x = layernorm(x_ref[0], emb_g_ref[...], emb_b_ref[...])      # (S, H)
    bias = mask_ref[0]                                           # (1, S) additive mask bias

    # --- encoder layers (statically unrolled: all weights already in VMEM) ---
    for l in range(num_layers):
        # fused QKV projection: (S, H) @ (H, 3H)
        qkv = jnp.dot(x, wqkv_ref[l], preferred_element_type=jnp.float32) + bqkv_ref[l]

        # attention over all heads; output projection folded in as
        # sum_h (ctx_h @ wo[h*Dh:(h+1)*Dh, :])  (== concat(heads) @ wo)
        attn = jnp.zeros_like(x)
        for h in range(num_heads):
            lo = h * head_dim
            hi = lo + head_dim
            qh = qkv[:, lo:hi]                                   # (S, Dh)
            kh = qkv[:, hidden + lo:hidden + hi]                 # (S, Dh)
            vh = qkv[:, 2 * hidden + lo:2 * hidden + hi]         # (S, Dh)
            s = jax.lax.dot_general(qh, kh, (((1,), (1,)), ((), ())),
                                    preferred_element_type=jnp.float32) * scale
            s = s + bias                                         # (S, S) + (1, S)
            s = s - jnp.max(s, axis=-1, keepdims=True)
            p = jnp.exp(s)
            p = p * pl.reciprocal(jnp.sum(p, axis=-1, keepdims=True), approx=True)
            ctx_h = jnp.dot(p, vh, preferred_element_type=jnp.float32)        # (S, Dh)
            attn = attn + jnp.dot(ctx_h, wo_ref[l][lo:hi, :],
                                  preferred_element_type=jnp.float32)
        attn = attn + bo_ref[l]

        # residual + LN (epilogue, no HBM round trip)
        x = layernorm(x + attn, ln1g_ref[l], ln1b_ref[l])

        # FFN: gelu(x @ w1 + b1) @ w2 + b2, then residual + LN
        hmid = jnp.dot(x, w1_ref[l], preferred_element_type=jnp.float32) + b1_ref[l]
        hmid = 0.5 * hmid * (1.0 + jax.lax.erf(hmid * inv_sqrt2))   # exact (erf) gelu
        ffn = jnp.dot(hmid, w2_ref[l], preferred_element_type=jnp.float32) + b2_ref[l]
        x = layernorm(x + ffn, ln2g_ref[l], ln2b_ref[l])

    # --- BERT pooler on [CLS] token: tanh(W * hidden[:, 0]) ---
    cls = x[0:1, :]                                              # (1, H)
    pooled = jnp.tanh(jnp.dot(cls, poolw_ref[...],
                              preferred_element_type=jnp.float32) + poolb_ref[...])

    # --- nn.Dropout(p=0.3): identity in eval/inference mode ---
    # TODO(synk): training-mode dropout (pltpu.prng_seed/prng_random_bits) not implemented.

    # --- classifier head (lane-dense padded to NPAD, sliced in JAX) ---
    logits_ref[0] = (jnp.dot(pooled, outw_ref[...],
                             preferred_element_type=jnp.float32) + outb_ref[...])


# ---------------------------------------------------------------------------
# Parameter construction (deterministic, synthetic weights, pre-stacked/fused)
# ---------------------------------------------------------------------------
def init_params(key):
    def nrm(k, shape, scale=0.02):
        return (scale * jax.random.normal(k, shape)).astype(jnp.float32)

    keys = iter(jax.random.split(key, 32))
    out_w = nrm(next(keys), (HIDDEN, N_CLASSES))
    return {
        "word_emb": nrm(next(keys), (VOCAB, HIDDEN)),
        "pos_emb": nrm(next(keys), (MAX_POS, HIDDEN)),
        "type_emb": nrm(next(keys), (2, HIDDEN)),
        "emb_ln_g": jnp.ones((1, HIDDEN), jnp.float32),
        "emb_ln_b": jnp.zeros((1, HIDDEN), jnp.float32),
        # per-layer weights stacked over L; QKV fused along output dim
        "wqkv": nrm(next(keys), (NUM_LAYERS, HIDDEN, 3 * HIDDEN)),
        "bqkv": jnp.zeros((NUM_LAYERS, 1, 3 * HIDDEN), jnp.float32),
        "wo": nrm(next(keys), (NUM_LAYERS, HIDDEN, HIDDEN)),
        "bo": jnp.zeros((NUM_LAYERS, 1, HIDDEN), jnp.float32),
        "ln1_g": jnp.ones((NUM_LAYERS, 1, HIDDEN), jnp.float32),
        "ln1_b": jnp.zeros((NUM_LAYERS, 1, HIDDEN), jnp.float32),
        "w1": nrm(next(keys), (NUM_LAYERS, HIDDEN, FFN)),
        "b1": jnp.zeros((NUM_LAYERS, 1, FFN), jnp.float32),
        "w2": nrm(next(keys), (NUM_LAYERS, FFN, HIDDEN)),
        "b2": jnp.zeros((NUM_LAYERS, 1, HIDDEN), jnp.float32),
        "ln2_g": jnp.ones((NUM_LAYERS, 1, HIDDEN), jnp.float32),
        "ln2_b": jnp.zeros((NUM_LAYERS, 1, HIDDEN), jnp.float32),
        "pool_w": nrm(next(keys), (HIDDEN, HIDDEN)),
        "pool_b": jnp.zeros((1, HIDDEN), jnp.float32),
        # classifier padded to 128 lanes (real weights in first N_CLASSES columns)
        "out_w_pad": jnp.pad(out_w, ((0, 0), (0, NPAD - N_CLASSES))),
        "out_b_pad": jnp.zeros((1, NPAD), jnp.float32),
    }


# ---------------------------------------------------------------------------
# QuestionClassifier.forward(input_ids, attention_mask) -> logits (B, n_classes)
# ---------------------------------------------------------------------------
def question_classifier_forward(params, input_ids, attention_mask):
    B, S = input_ids.shape

    # --- BERT embeddings (gather = plain-JAX glue) ---
    x = (params["word_emb"][input_ids]
         + params["pos_emb"][:S][None, :, :]
         + params["type_emb"][0][None, None, :]).astype(jnp.float32)   # (B, S, H)

    # additive attention-mask bias, per batch: (B, 1, S)
    mask_bias = ((1.0 - attention_mask.astype(jnp.float32)) * -10000.0)[:, None, :]

    kernel = functools.partial(
        _bert_fused_kernel,
        num_layers=NUM_LAYERS, num_heads=NUM_HEADS,
        head_dim=HEAD_DIM, hidden=HIDDEN)

    L, H, F = NUM_LAYERS, HIDDEN, FFN
    full2 = lambda i: (0, 0)
    full3 = lambda i: (0, 0, 0)
    per_b = lambda i: (i, 0, 0)

    out = pl.pallas_call(
        kernel,
        out_shape=jax.ShapeDtypeStruct((B, 1, NPAD), jnp.float32),
        grid=(B,),
        in_specs=[
            pl.BlockSpec((1, S, H), per_b),            # x embeddings
            pl.BlockSpec((1, 1, S), per_b),            # mask bias
            pl.BlockSpec((1, H), full2),               # emb_ln_g
            pl.BlockSpec((1, H), full2),               # emb_ln_b
            pl.BlockSpec((L, H, 3 * H), full3),        # wqkv
            pl.BlockSpec((L, 1, 3 * H), full3),        # bqkv
            pl.BlockSpec((L, H, H), full3),            # wo
            pl.BlockSpec((L, 1, H), full3),            # bo
            pl.BlockSpec((L, 1, H), full3),            # ln1_g
            pl.BlockSpec((L, 1, H), full3),            # ln1_b
            pl.BlockSpec((L, H, F), full3),            # w1
            pl.BlockSpec((L, 1, F), full3),            # b1
            pl.BlockSpec((L, F, H), full3),            # w2
            pl.BlockSpec((L, 1, H), full3),            # b2
            pl.BlockSpec((L, 1, H), full3),            # ln2_g
            pl.BlockSpec((L, 1, H), full3),            # ln2_b
            pl.BlockSpec((H, H), full2),               # pool_w
            pl.BlockSpec((1, H), full2),               # pool_b
            pl.BlockSpec((H, NPAD), full2),            # out_w (padded)
            pl.BlockSpec((1, NPAD), full2),            # out_b (padded)
        ],
        out_specs=pl.BlockSpec((1, 1, NPAD), per_b),
        compiler_params=pltpu.CompilerParams(
            dimension_semantics=("parallel",)),        # batches shard across TCs on v7x
    )(x, mask_bias,
      params["emb_ln_g"], params["emb_ln_b"],
      params["wqkv"], params["bqkv"], params["wo"], params["bo"],
      params["ln1_g"], params["ln1_b"],
      params["w1"], params["b1"], params["w2"], params["b2"],
      params["ln2_g"], params["ln2_b"],
      params["pool_w"], params["pool_b"],
      params["out_w_pad"], params["out_b_pad"])

    return out.reshape(B, NPAD)[:, :N_CLASSES]


if __name__ == "__main__":
    key = jax.random.PRNGKey(0)
    k_ids, _ = jax.random.split(key)

    B, S = 2, 8
    input_ids = jax.random.randint(k_ids, (B, S), 0, VOCAB, dtype=jnp.int32)
    attention_mask = jnp.array(
        [[1, 1, 1, 1, 1, 1, 1, 1],
         [1, 1, 1, 1, 1, 0, 0, 0]], dtype=jnp.int32)

    params = init_params(jax.random.PRNGKey(42))

    fwd = jax.jit(question_classifier_forward)
    logits = fwd(params, input_ids, attention_mask)
    logits = jax.block_until_ready(logits)
    assert logits.shape == (B, N_CLASSES)
    assert bool(jnp.all(jnp.isfinite(logits)))
    print("KERNEL_OK")
</pallas_src>

<mosaic_0001>
module attributes {stable_mosaic.version = 11 : i64} {
  func.func @_bert_fused_kernel(%arg0: i32, %arg1: memref<1x8x32xf32, #tpu.memory_space<vmem>>, %arg2: memref<1x1x8xf32, #tpu.memory_space<vmem>>, %arg3: memref<1x32xf32, #tpu.memory_space<vmem>>, %arg4: memref<1x32xf32, #tpu.memory_space<vmem>>, %arg5: memref<2x32x96xf32, #tpu.memory_space<vmem>>, %arg6: memref<2x1x96xf32, #tpu.memory_space<vmem>>, %arg7: memref<2x32x32xf32, #tpu.memory_space<vmem>>, %arg8: memref<2x1x32xf32, #tpu.memory_space<vmem>>, %arg9: memref<2x1x32xf32, #tpu.memory_space<vmem>>, %arg10: memref<2x1x32xf32, #tpu.memory_space<vmem>>, %arg11: memref<2x32x64xf32, #tpu.memory_space<vmem>>, %arg12: memref<2x1x64xf32, #tpu.memory_space<vmem>>, %arg13: memref<2x64x32xf32, #tpu.memory_space<vmem>>, %arg14: memref<2x1x32xf32, #tpu.memory_space<vmem>>, %arg15: memref<2x1x32xf32, #tpu.memory_space<vmem>>, %arg16: memref<2x1x32xf32, #tpu.memory_space<vmem>>, %arg17: memref<32x32xf32, #tpu.memory_space<vmem>>, %arg18: memref<1x32xf32, #tpu.memory_space<vmem>>, %arg19: memref<32x128xf32, #tpu.memory_space<vmem>>, %arg20: memref<1x128xf32, #tpu.memory_space<vmem>>, %arg21: memref<1x1x128xf32, #tpu.memory_space<vmem>>) attributes {dimension_semantics = [#tpu.dimension_semantics<parallel>], iteration_bounds = array<i64: 2>, scalar_prefetch = 0 : i64, scratch_operands = 0 : i64, tpu.core_type = #tpu.core_type<tc>, window_params = [{transform_indices = @transform_0, window_bounds = array<i64: 1, 8, 32>}, {transform_indices = @transform_1, window_bounds = array<i64: 1, 1, 8>}, {pipeline_mode = #tpu.pipeline_mode<synchronous>, transform_indices = @transform_2, window_bounds = array<i64: 1, 32>}, {pipeline_mode = #tpu.pipeline_mode<synchronous>, transform_indices = @transform_3, window_bounds = array<i64: 1, 32>}, {pipeline_mode = #tpu.pipeline_mode<synchronous>, transform_indices = @transform_4, window_bounds = array<i64: 2, 32, 96>}, {pipeline_mode = #tpu.pipeline_mode<synchronous>, transform_indices = @transform_5, window_bounds = array<i64: 2, 1, 96>}, {pipeline_mode = #tpu.pipeline_mode<synchronous>, transform_indices = @transform_6, window_bounds = array<i64: 2, 32, 32>}, {pipeline_mode = #tpu.pipeline_mode<synchronous>, transform_indices = @transform_7, window_bounds = array<i64: 2, 1, 32>}, {pipeline_mode = #tpu.pipeline_mode<synchronous>, transform_indices = @transform_8, window_bounds = array<i64: 2, 1, 32>}, {pipeline_mode = #tpu.pipeline_mode<synchronous>, transform_indices = @transform_9, window_bounds = array<i64: 2, 1, 32>}, {pipeline_mode = #tpu.pipeline_mode<synchronous>, transform_indices = @transform_10, window_bounds = array<i64: 2, 32, 64>}, {pipeline_mode = #tpu.pipeline_mode<synchronous>, transform_indices = @transform_11, window_bounds = array<i64: 2, 1, 64>}, {pipeline_mode = #tpu.pipeline_mode<synchronous>, transform_indices = @transform_12, window_bounds = array<i64: 2, 64, 32>}, {pipeline_mode = #tpu.pipeline_mode<synchronous>, transform_indices = @transform_13, window_bounds = array<i64: 2, 1, 32>}, {pipeline_mode = #tpu.pipeline_mode<synchronous>, transform_indices = @transform_14, window_bounds = array<i64: 2, 1, 32>}, {pipeline_mode = #tpu.pipeline_mode<synchronous>, transform_indices = @transform_15, window_bounds = array<i64: 2, 1, 32>}, {pipeline_mode = #tpu.pipeline_mode<synchronous>, transform_indices = @transform_16, window_bounds = array<i64: 32, 32>}, {pipeline_mode = #tpu.pipeline_mode<synchronous>, transform_indices = @transform_17, window_bounds = array<i64: 1, 32>}, {pipeline_mode = #tpu.pipeline_mode<synchronous>, transform_indices = @transform_18, window_bounds = array<i64: 32, 128>}, {pipeline_mode = #tpu.pipeline_mode<synchronous>, transform_indices = @transform_19, window_bounds = array<i64: 1, 128>}, {transform_indices = @transform_20, window_bounds = array<i64: 1, 1, 128>}]} {
    %c0 = arith.constant 0 : index
    %c0_0 = arith.constant 0 : index
    %c0_1 = arith.constant 0 : index
    %0 = vector.load %arg1[%c0, %c0_0, %c0_1] : memref<1x8x32xf32, #tpu.memory_space<vmem>>, vector<1x8x32xf32>
    %1 = vector.shape_cast %0 : vector<1x8x32xf32> to vector<8x32xf32>
    %c0_2 = arith.constant 0 : index
    %c0_3 = arith.constant 0 : index
    %2 = vector.load %arg3[%c0_2, %c0_3] : memref<1x32xf32, #tpu.memory_space<vmem>>, vector<1x32xf32>
    %c0_4 = arith.constant 0 : index
    %c0_5 = arith.constant 0 : index
    %3 = vector.load %arg4[%c0_4, %c0_5] : memref<1x32xf32, #tpu.memory_space<vmem>>, vector<1x32xf32>
    %cst = arith.constant dense<0.000000e+00> : vector<8xf32>
    %4 = vector.multi_reduction <add>, %1, %cst [1] : vector<8x32xf32> to vector<8xf32>
    %5 = vector.shape_cast %4 : vector<8xf32> to vector<8x1xf32>
    %cst_6 = arith.constant 3.200000e+01 : f32
    %6 = vector.broadcast %cst_6 : f32 to vector<8x1xf32>
    %7 = arith.divf %5, %6 : vector<8x1xf32>
    %8 = vector.broadcast %7 : vector<8x1xf32> to vector<8x32xf32>
    %9 = arith.subf %1, %8 : vector<8x32xf32>
    %10 = arith.mulf %9, %9 : vector<8x32xf32>
    %cst_7 = arith.constant dense<0.000000e+00> : vector<8xf32>
    %11 = vector.multi_reduction <add>, %10, %cst_7 [1] : vector<8x32xf32> to vector<8xf32>
    %12 = vector.shape_cast %11 : vector<8xf32> to vector<8x1xf32>
    %cst_8 = arith.constant 3.200000e+01 : f32
    %13 = vector.broadcast %cst_8 : f32 to vector<8x1xf32>
    %14 = arith.divf %12, %13 : vector<8x1xf32>
    %15 = vector.broadcast %7 : vector<8x1xf32> to vector<8x32xf32>
    %16 = arith.subf %1, %15 : vector<8x32xf32>
    %cst_9 = arith.constant 9.99999996E-13 : f32
    %17 = vector.broadcast %cst_9 : f32 to vector<8x1xf32>
    %18 = arith.addf %14, %17 : vector<8x1xf32>
    %19 = math.rsqrt %18 : vector<8x1xf32>
    %20 = vector.broadcast %19 : vector<8x1xf32> to vector<8x32xf32>
    %21 = arith.mulf %16, %20 : vector<8x32xf32>
    %22 = vector.broadcast %2 : vector<1x32xf32> to vector<8x32xf32>
    %23 = arith.mulf %21, %22 : vector<8x32xf32>
    %24 = vector.broadcast %3 : vector<1x32xf32> to vector<8x32xf32>
    %25 = arith.addf %23, %24 : vector<8x32xf32>
    %c0_10 = arith.constant 0 : index
    %c0_11 = arith.constant 0 : index
    %c0_12 = arith.constant 0 : index
    %26 = vector.load %arg2[%c0_10, %c0_11, %c0_12] : memref<1x1x8xf32, #tpu.memory_space<vmem>>, vector<1x1x8xf32>
    %27 = vector.shape_cast %26 : vector<1x1x8xf32> to vector<1x8xf32>
    %c0_13 = arith.constant 0 : index
    %c0_14 = arith.constant 0 : index
    %c0_15 = arith.constant 0 : index
    %28 = vector.load %arg5[%c0_13, %c0_14, %c0_15] : memref<2x32x96xf32, #tpu.memory_space<vmem>>, vector<1x32x96xf32>
    %29 = vector.shape_cast %28 : vector<1x32x96xf32> to vector<32x96xf32>
    %cst_16 = arith.constant dense<0.000000e+00> : vector<8x96xf32>
    %30 = tpu.matmul %25, %29, %cst_16 {dimension_numbers = #tpu.dot_dimension_numbers<[1], [0], [0], [1], [0, 0, 1, 1], [], []>} : vector<8x32xf32>, vector<32x96xf32>, vector<8x96xf32> -> vector<8x96xf32>
    %c0_17 = arith.constant 0 : index
    %c0_18 = arith.constant 0 : index
    %c0_19 = arith.constant 0 : index
    %31 = vector.load %arg6[%c0_17, %c0_18, %c0_19] : memref<2x1x96xf32, #tpu.memory_space<vmem>>, vector<1x1x96xf32>
    %32 = vector.shape_cast %31 : vector<1x1x96xf32> to vector<1x96xf32>
    %33 = vector.broadcast %32 : vector<1x96xf32> to vector<8x96xf32>
    %34 = arith.addf %30, %33 : vector<8x96xf32>
    %cst_20 = arith.constant 0.000000e+00 : f32
    %35 = vector.broadcast %cst_20 : f32 to vector<8x32xf32>
    %36 = vector.extract_strided_slice %34 {offsets = [0, 0], sizes = [8, 16], strides = [1, 1]} : vector<8x96xf32> to vector<8x16xf32>
    %37 = vector.extract_strided_slice %34 {offsets = [0, 32], sizes = [8, 16], strides = [1, 1]} : vector<8x96xf32> to vector<8x16xf32>
    %38 = vector.extract_strided_slice %34 {offsets = [0, 64], sizes = [8, 16], strides = [1, 1]} : vector<8x96xf32> to vector<8x16xf32>
    %cst_21 = arith.constant dense<0.000000e+00> : vector<8x8xf32>
    %39 = tpu.matmul %36, %37, %cst_21 {dimension_numbers = #tpu.dot_dimension_numbers<[1], [1], [0], [0], [0, 0, 1, 0], [], []>} : vector<8x16xf32>, vector<8x16xf32>, vector<8x8xf32> -> vector<8x8xf32>
    %cst_22 = arith.constant 2.500000e-01 : f32
    %40 = vector.broadcast %cst_22 : f32 to vector<8x8xf32>
    %41 = arith.mulf %39, %40 : vector<8x8xf32>
    %42 = vector.broadcast %27 : vector<1x8xf32> to vector<8x8xf32>
    %43 = arith.addf %41, %42 : vector<8x8xf32>
    %cst_23 = arith.constant dense<0xFF800000> : vector<8xf32>
    %44 = vector.multi_reduction <maximumf>, %43, %cst_23 [1] : vector<8x8xf32> to vector<8xf32>
    %45 = vector.shape_cast %44 : vector<8xf32> to vector<8x1xf32>
    %46 = vector.broadcast %45 : vector<8x1xf32> to vector<8x8xf32>
    %47 = arith.subf %43, %46 : vector<8x8xf32>
    %48 = math.exp %47 : vector<8x8xf32>
    %cst_24 = arith.constant dense<0.000000e+00> : vector<8xf32>
    %49 = vector.multi_reduction <add>, %48, %cst_24 [1] : vector<8x8xf32> to vector<8xf32>
    %50 = vector.shape_cast %49 : vector<8xf32> to vector<8x1xf32>
    %51 = tpu.reciprocal %50 {approx = true} : vector<8x1xf32> -> vector<8x1xf32>
    %52 = vector.broadcast %51 : vector<8x1xf32> to vector<8x8xf32>
    %53 = arith.mulf %48, %52 : vector<8x8xf32>
    %cst_25 = arith.constant dense<0.000000e+00> : vector<8x16xf32>
    %54 = tpu.matmul %53, %38, %cst_25 {dimension_numbers = #tpu.dot_dimension_numbers<[1], [0], [0], [1], [0, 0, 1, 1], [], []>} : vector<8x8xf32>, vector<8x16xf32>, vector<8x16xf32> -> vector<8x16xf32>
    %c0_26 = arith.constant 0 : index
    %c0_27 = arith.constant 0 : index
    %c0_28 = arith.constant 0 : index
    %55 = vector.load %arg7[%c0_26, %c0_27, %c0_28] : memref<2x32x32xf32, #tpu.memory_space<vmem>>, vector<1x32x32xf32>
    %56 = vector.shape_cast %55 : vector<1x32x32xf32> to vector<32x32xf32>
    %57 = vector.extract_strided_slice %56 {offsets = [0, 0], sizes = [16, 32], strides = [1, 1]} : vector<32x32xf32> to vector<16x32xf32>
    %cst_29 = arith.constant dense<0.000000e+00> : vector<8x32xf32>
    %58 = tpu.matmul %54, %57, %cst_29 {dimension_numbers = #tpu.dot_dimension_numbers<[1], [0], [0], [1], [0, 0, 1, 1], [], []>} : vector<8x16xf32>, vector<16x32xf32>, vector<8x32xf32> -> vector<8x32xf32>
    %59 = arith.addf %35, %58 : vector<8x32xf32>
    %60 = vector.extract_strided_slice %34 {offsets = [0, 16], sizes = [8, 16], strides = [1, 1]} : vector<8x96xf32> to vector<8x16xf32>
    %61 = vector.extract_strided_slice %34 {offsets = [0, 48], sizes = [8, 16], strides = [1, 1]} : vector<8x96xf32> to vector<8x16xf32>
    %62 = vector.extract_strided_slice %34 {offsets = [0, 80], sizes = [8, 16], strides = [1, 1]} : vector<8x96xf32> to vector<8x16xf32>
    %cst_30 = arith.constant dense<0.000000e+00> : vector<8x8xf32>
    %63 = tpu.matmul %60, %61, %cst_30 {dimension_numbers = #tpu.dot_dimension_numbers<[1], [1], [0], [0], [0, 0, 1, 0], [], []>} : vector<8x16xf32>, vector<8x16xf32>, vector<8x8xf32> -> vector<8x8xf32>
    %cst_31 = arith.constant 2.500000e-01 : f32
    %64 = vector.broadcast %cst_31 : f32 to vector<8x8xf32>
    %65 = arith.mulf %63, %64 : vector<8x8xf32>
    %66 = vector.broadcast %27 : vector<1x8xf32> to vector<8x8xf32>
    %67 = arith.addf %65, %66 : vector<8x8xf32>
    %cst_32 = arith.constant dense<0xFF800000> : vector<8xf32>
    %68 = vector.multi_reduction <maximumf>, %67, %cst_32 [1] : vector<8x8xf32> to vector<8xf32>
    %69 = vector.shape_cast %68 : vector<8xf32> to vector<8x1xf32>
    %70 = vector.broadcast %69 : vector<8x1xf32> to vector<8x8xf32>
    %71 = arith.subf %67, %70 : vector<8x8xf32>
    %72 = math.exp %71 : vector<8x8xf32>
    %cst_33 = arith.constant dense<0.000000e+00> : vector<8xf32>
    %73 = vector.multi_reduction <add>, %72, %cst_33 [1] : vector<8x8xf32> to vector<8xf32>
    %74 = vector.shape_cast %73 : vector<8xf32> to vector<8x1xf32>
    %75 = tpu.reciprocal %74 {approx = true} : vector<8x1xf32> -> vector<8x1xf32>
    %76 = vector.broadcast %75 : vector<8x1xf32> to vector<8x8xf32>
    %77 = arith.mulf %72, %76 : vector<8x8xf32>
    %cst_34 = arith.constant dense<0.000000e+00> : vector<8x16xf32>
    %78 = tpu.matmul %77, %62, %cst_34 {dimension_numbers = #tpu.dot_dimension_numbers<[1], [0], [0], [1], [0, 0, 1, 1], [], []>} : vector<8x8xf32>, vector<8x16xf32>, vector<8x16xf32> -> vector<8x16xf32>
    %c0_35 = arith.constant 0 : index
    %c0_36 = arith.constant 0 : index
    %c0_37 = arith.constant 0 : index
    %79 = vector.load %arg7[%c0_35, %c0_36, %c0_37] : memref<2x32x32xf32, #tpu.memory_space<vmem>>, vector<1x32x32xf32>
    %80 = vector.shape_cast %79 : vector<1x32x32xf32> to vector<32x32xf32>
    %81 = vector.extract_strided_slice %80 {offsets = [16, 0], sizes = [16, 32], strides = [1, 1]} : vector<32x32xf32> to vector<16x32xf32>
    %cst_38 = arith.constant dense<0.000000e+00> : vector<8x32xf32>
    %82 = tpu.matmul %78, %81, %cst_38 {dimension_numbers = #tpu.dot_dimension_numbers<[1], [0], [0], [1], [0, 0, 1, 1], [], []>} : vector<8x16xf32>, vector<16x32xf32>, vector<8x32xf32> -> vector<8x32xf32>
    %83 = arith.addf %59, %82 : vector<8x32xf32>
    %c0_39 = arith.constant 0 : index
    %c0_40 = arith.constant 0 : index
    %c0_41 = arith.constant 0 : index
    %84 = vector.load %arg8[%c0_39, %c0_40, %c0_41] : memref<2x1x32xf32, #tpu.memory_space<vmem>>, vector<1x1x32xf32>
    %85 = vector.shape_cast %84 : vector<1x1x32xf32> to vector<1x32xf32>
    %86 = vector.broadcast %85 : vector<1x32xf32> to vector<8x32xf32>
    %87 = arith.addf %83, %86 : vector<8x32xf32>
    %88 = arith.addf %25, %87 : vector<8x32xf32>
    %c0_42 = arith.constant 0 : index
    %c0_43 = arith.constant 0 : index
    %c0_44 = arith.constant 0 : index
    %89 = vector.load %arg9[%c0_42, %c0_43, %c0_44] : memref<2x1x32xf32, #tpu.memory_space<vmem>>, vector<1x1x32xf32>
    %90 = vector.shape_cast %89 : vector<1x1x32xf32> to vector<1x32xf32>
    %c0_45 = arith.constant 0 : index
    %c0_46 = arith.constant 0 : index
    %c0_47 = arith.constant 0 : index
    %91 = vector.load %arg10[%c0_45, %c0_46, %c0_47] : memref<2x1x32xf32, #tpu.memory_space<vmem>>, vector<1x1x32xf32>
    %92 = vector.shape_cast %91 : vector<1x1x32xf32> to vector<1x32xf32>
    %cst_48 = arith.constant dense<0.000000e+00> : vector<8xf32>
    %93 = vector.multi_reduction <add>, %88, %cst_48 [1] : vector<8x32xf32> to vector<8xf32>
    %94 = vector.shape_cast %93 : vector<8xf32> to vector<8x1xf32>
    %cst_49 = arith.constant 3.200000e+01 : f32
    %95 = vector.broadcast %cst_49 : f32 to vector<8x1xf32>
    %96 = arith.divf %94, %95 : vector<8x1xf32>
    %97 = vector.broadcast %96 : vector<8x1xf32> to vector<8x32xf32>
    %98 = arith.subf %88, %97 : vector<8x32xf32>
    %99 = arith.mulf %98, %98 : vector<8x32xf32>
    %cst_50 = arith.constant dense<0.000000e+00> : vector<8xf32>
    %100 = vector.multi_reduction <add>, %99, %cst_50 [1] : vector<8x32xf32> to vector<8xf32>
    %101 = vector.shape_cast %100 : vector<8xf32> to vector<8x1xf32>
    %cst_51 = arith.constant 3.200000e+01 : f32
    %102 = vector.broadcast %cst_51 : f32 to vector<8x1xf32>
    %103 = arith.divf %101, %102 : vector<8x1xf32>
    %104 = vector.broadcast %96 : vector<8x1xf32> to vector<8x32xf32>
    %105 = arith.subf %88, %104 : vector<8x32xf32>
    %cst_52 = arith.constant 9.99999996E-13 : f32
    %106 = vector.broadcast %cst_52 : f32 to vector<8x1xf32>
    %107 = arith.addf %103, %106 : vector<8x1xf32>
    %108 = math.rsqrt %107 : vector<8x1xf32>
    %109 = vector.broadcast %108 : vector<8x1xf32> to vector<8x32xf32>
    %110 = arith.mulf %105, %109 : vector<8x32xf32>
    %111 = vector.broadcast %90 : vector<1x32xf32> to vector<8x32xf32>
    %112 = arith.mulf %110, %111 : vector<8x32xf32>
    %113 = vector.broadcast %92 : vector<1x32xf32> to vector<8x32xf32>
    %114 = arith.addf %112, %113 : vector<8x32xf32>
    %c0_53 = arith.constant 0 : index
    %c0_54 = arith.constant 0 : index
    %c0_55 = arith.constant 0 : index
    %115 = vector.load %arg11[%c0_53, %c0_54, %c0_55] : memref<2x32x64xf32, #tpu.memory_space<vmem>>, vector<1x32x64xf32>
    %116 = vector.shape_cast %115 : vector<1x32x64xf32> to vector<32x64xf32>
    %cst_56 = arith.constant dense<0.000000e+00> : vector<8x64xf32>
    %117 = tpu.matmul %114, %116, %cst_56 {dimension_numbers = #tpu.dot_dimension_numbers<[1], [0], [0], [1], [0, 0, 1, 1], [], []>} : vector<8x32xf32>, vector<32x64xf32>, vector<8x64xf32> -> vector<8x64xf32>
    %c0_57 = arith.constant 0 : index
    %c0_58 = arith.constant 0 : index
    %c0_59 = arith.constant 0 : index
    %118 = vector.load %arg12[%c0_57, %c0_58, %c0_59] : memref<2x1x64xf32, #tpu.memory_space<vmem>>, vector<1x1x64xf32>
    %119 = vector.shape_cast %118 : vector<1x1x64xf32> to vector<1x64xf32>
    %120 = vector.broadcast %119 : vector<1x64xf32> to vector<8x64xf32>
    %121 = arith.addf %117, %120 : vector<8x64xf32>
    %cst_60 = arith.constant 5.000000e-01 : f32
    %122 = vector.broadcast %cst_60 : f32 to vector<8x64xf32>
    %123 = arith.mulf %122, %121 : vector<8x64xf32>
    %cst_61 = arith.constant 0.707106769 : f32
    %124 = vector.broadcast %cst_61 : f32 to vector<8x64xf32>
    %125 = arith.mulf %121, %124 : vector<8x64xf32>
    %126 = math.erf %125 : vector<8x64xf32>
    %cst_62 = arith.constant 1.000000e+00 : f32
    %127 = vector.broadcast %cst_62 : f32 to vector<8x64xf32>
    %128 = arith.addf %127, %126 : vector<8x64xf32>
    %129 = arith.mulf %123, %128 : vector<8x64xf32>
    %c0_63 = arith.constant 0 : index
    %c0_64 = arith.constant 0 : index
    %c0_65 = arith.constant 0 : index
    %130 = vector.load %arg13[%c0_63, %c0_64, %c0_65] : memref<2x64x32xf32, #tpu.memory_space<vmem>>, vector<1x64x32xf32>
    %131 = vector.shape_cast %130 : vector<1x64x32xf32> to vector<64x32xf32>
    %cst_66 = arith.constant dense<0.000000e+00> : vector<8x32xf32>
    %132 = tpu.matmul %129, %131, %cst_66 {dimension_numbers = #tpu.dot_dimension_numbers<[1], [0], [0], [1], [0, 0, 1, 1], [], []>} : vector<8x64xf32>, vector<64x32xf32>, vector<8x32xf32> -> vector<8x32xf32>
    %c0_67 = arith.constant 0 : index
    %c0_68 = arith.constant 0 : index
    %c0_69 = arith.constant 0 : index
    %133 = vector.load %arg14[%c0_67, %c0_68, %c0_69] : memref<2x1x32xf32, #tpu.memory_space<vmem>>, vector<1x1x32xf32>
    %134 = vector.shape_cast %133 : vector<1x1x32xf32> to vector<1x32xf32>
    %135 = vector.broadcast %134 : vector<1x32xf32> to vector<8x32xf32>
    %136 = arith.addf %132, %135 : vector<8x32xf32>
    %137 = arith.addf %114, %136 : vector<8x32xf32>
    %c0_70 = arith.constant 0 : index
    %c0_71 = arith.constant 0 : index
    %c0_72 = arith.constant 0 : index
    %138 = vector.load %arg15[%c0_70, %c0_71, %c0_72] : memref<2x1x32xf32, #tpu.memory_space<vmem>>, vector<1x1x32xf32>
    %139 = vector.shape_cast %138 : vector<1x1x32xf32> to vector<1x32xf32>
    %c0_73 = arith.constant 0 : index
    %c0_74 = arith.constant 0 : index
    %c0_75 = arith.constant 0 : index
    %140 = vector.load %arg16[%c0_73, %c0_74, %c0_75] : memref<2x1x32xf32, #tpu.memory_space<vmem>>, vector<1x1x32xf32>
    %141 = vector.shape_cast %140 : vector<1x1x32xf32> to vector<1x32xf32>
    %cst_76 = arith.constant dense<0.000000e+00> : vector<8xf32>
    %142 = vector.multi_reduction <add>, %137, %cst_76 [1] : vector<8x32xf32> to vector<8xf32>
    %143 = vector.shape_cast %142 : vector<8xf32> to vector<8x1xf32>
    %cst_77 = arith.constant 3.200000e+01 : f32
    %144 = vector.broadcast %cst_77 : f32 to vector<8x1xf32>
    %145 = arith.divf %143, %144 : vector<8x1xf32>
    %146 = vector.broadcast %145 : vector<8x1xf32> to vector<8x32xf32>
    %147 = arith.subf %137, %146 : vector<8x32xf32>
    %148 = arith.mulf %147, %147 : vector<8x32xf32>
    %cst_78 = arith.constant dense<0.000000e+00> : vector<8xf32>
    %149 = vector.multi_reduction <add>, %148, %cst_78 [1] : vector<8x32xf32> to vector<8xf32>
    %150 = vector.shape_cast %149 : vector<8xf32> to vector<8x1xf32>
    %cst_79 = arith.constant 3.200000e+01 : f32
    %151 = vector.broadcast %cst_79 : f32 to vector<8x1xf32>
    %152 = arith.divf %150, %151 : vector<8x1xf32>
    %153 = vector.broadcast %145 : vector<8x1xf32> to vector<8x32xf32>
    %154 = arith.subf %137, %153 : vector<8x32xf32>
    %cst_80 = arith.constant 9.99999996E-13 : f32
    %155 = vector.broadcast %cst_80 : f32 to vector<8x1xf32>
    %156 = arith.addf %152, %155 : vector<8x1xf32>
    %157 = math.rsqrt %156 : vector<8x1xf32>
    %158 = vector.broadcast %157 : vector<8x1xf32> to vector<8x32xf32>
    %159 = arith.mulf %154, %158 : vector<8x32xf32>
    %160 = vector.broadcast %139 : vector<1x32xf32> to vector<8x32xf32>
    %161 = arith.mulf %159, %160 : vector<8x32xf32>
    %162 = vector.broadcast %141 : vector<1x32xf32> to vector<8x32xf32>
    %163 = arith.addf %161, %162 : vector<8x32xf32>
    %c1 = arith.constant 1 : index
    %c0_81 = arith.constant 0 : index
    %c0_82 = arith.constant 0 : index
    %164 = vector.load %arg5[%c1, %c0_81, %c0_82] : memref<2x32x96xf32, #tpu.memory_space<vmem>>, vector<1x32x96xf32>
    %165 = vector.shape_cast %164 : vector<1x32x96xf32> to vector<32x96xf32>
    %cst_83 = arith.constant dense<0.000000e+00> : vector<8x96xf32>
    %166 = tpu.matmul %163, %165, %cst_83 {dimension_numbers = #tpu.dot_dimension_numbers<[1], [0], [0], [1], [0, 0, 1, 1], [], []>} : vector<8x32xf32>, vector<32x96xf32>, vector<8x96xf32> -> vector<8x96xf32>
    %c1_84 = arith.constant 1 : index
    %c0_85 = arith.constant 0 : index
    %c0_86 = arith.constant 0 : index
    %167 = vector.load %arg6[%c1_84, %c0_85, %c0_86] : memref<2x1x96xf32, #tpu.memory_space<vmem>>, vector<1x1x96xf32>
    %168 = vector.shape_cast %167 : vector<1x1x96xf32> to vector<1x96xf32>
    %169 = vector.broadcast %168 : vector<1x96xf32> to vector<8x96xf32>
    %170 = arith.addf %166, %169 : vector<8x96xf32>
    %cst_87 = arith.constant 0.000000e+00 : f32
    %171 = vector.broadcast %cst_87 : f32 to vector<8x32xf32>
    %172 = vector.extract_strided_slice %170 {offsets = [0, 0], sizes = [8, 16], strides = [1, 1]} : vector<8x96xf32> to vector<8x16xf32>
    %173 = vector.extract_strided_slice %170 {offsets = [0, 32], sizes = [8, 16], strides = [1, 1]} : vector<8x96xf32> to vector<8x16xf32>
    %174 = vector.extract_strided_slice %170 {offsets = [0, 64], sizes = [8, 16], strides = [1, 1]} : vector<8x96xf32> to vector<8x16xf32>
    %cst_88 = arith.constant dense<0.000000e+00> : vector<8x8xf32>
    %175 = tpu.matmul %172, %173, %cst_88 {dimension_numbers = #tpu.dot_dimension_numbers<[1], [1], [0], [0], [0, 0, 1, 0], [], []>} : vector<8x16xf32>, vector<8x16xf32>, vector<8x8xf32> -> vector<8x8xf32>
    %cst_89 = arith.constant 2.500000e-01 : f32
    %176 = vector.broadcast %cst_89 : f32 to vector<8x8xf32>
    %177 = arith.mulf %175, %176 : vector<8x8xf32>
    %178 = vector.broadcast %27 : vector<1x8xf32> to vector<8x8xf32>
    %179 = arith.addf %177, %178 : vector<8x8xf32>
    %cst_90 = arith.constant dense<0xFF800000> : vector<8xf32>
    %180 = vector.multi_reduction <maximumf>, %179, %cst_90 [1] : vector<8x8xf32> to vector<8xf32>
    %181 = vector.shape_cast %180 : vector<8xf32> to vector<8x1xf32>
    %182 = vector.broadcast %181 : vector<8x1xf32> to vector<8x8xf32>
    %183 = arith.subf %179, %182 : vector<8x8xf32>
    %184 = math.exp %183 : vector<8x8xf32>
    %cst_91 = arith.constant dense<0.000000e+00> : vector<8xf32>
    %185 = vector.multi_reduction <add>, %184, %cst_91 [1] : vector<8x8xf32> to vector<8xf32>
    %186 = vector.shape_cast %185 : vector<8xf32> to vector<8x1xf32>
    %187 = tpu.reciprocal %186 {approx = true} : vector<8x1xf32> -> vector<8x1xf32>
    %188 = vector.broadcast %187 : vector<8x1xf32> to vector<8x8xf32>
    %189 = arith.mulf %184, %188 : vector<8x8xf32>
    %cst_92 = arith.constant dense<0.000000e+00> : vector<8x16xf32>
    %190 = tpu.matmul %189, %174, %cst_92 {dimension_numbers = #tpu.dot_dimension_numbers<[1], [0], [0], [1], [0, 0, 1, 1], [], []>} : vector<8x8xf32>, vector<8x16xf32>, vector<8x16xf32> -> vector<8x16xf32>
    %c1_93 = arith.constant 1 : index
    %c0_94 = arith.constant 0 : index
    %c0_95 = arith.constant 0 : index
    %191 = vector.load %arg7[%c1_93, %c0_94, %c0_95] : memref<2x32x32xf32, #tpu.memory_space<vmem>>, vector<1x32x32xf32>
    %192 = vector.shape_cast %191 : vector<1x32x32xf32> to vector<32x32xf32>
    %193 = vector.extract_strided_slice %192 {offsets = [0, 0], sizes = [16, 32], strides = [1, 1]} : vector<32x32xf32> to vector<16x32xf32>
    %cst_96 = arith.constant dense<0.000000e+00> : vector<8x32xf32>
    %194 = tpu.matmul %190, %193, %cst_96 {dimension_numbers = #tpu.dot_dimension_numbers<[1], [0], [0], [1], [0, 0, 1, 1], [], []>} : vector<8x16xf32>, vector<16x32xf32>, vector<8x32xf32> -> vector<8x32xf32>
    %195 = arith.addf %171, %194 : vector<8x32xf32>
    %196 = vector.extract_strided_slice %170 {offsets = [0, 16], sizes = [8, 16], strides = [1, 1]} : vector<8x96xf32> to vector<8x16xf32>
    %197 = vector.extract_strided_slice %170 {offsets = [0, 48], sizes = [8, 16], strides = [1, 1]} : vector<8x96xf32> to vector<8x16xf32>
    %198 = vector.extract_strided_slice %170 {offsets = [0, 80], sizes = [8, 16], strides = [1, 1]} : vector<8x96xf32> to vector<8x16xf32>
    %cst_97 = arith.constant dense<0.000000e+00> : vector<8x8xf32>
    %199 = tpu.matmul %196, %197, %cst_97 {dimension_numbers = #tpu.dot_dimension_numbers<[1], [1], [0], [0], [0, 0, 1, 0], [], []>} : vector<8x16xf32>, vector<8x16xf32>, vector<8x8xf32> -> vector<8x8xf32>
    %cst_98 = arith.constant 2.500000e-01 : f32
    %200 = vector.broadcast %cst_98 : f32 to vector<8x8xf32>
    %201 = arith.mulf %199, %200 : vector<8x8xf32>
    %202 = vector.broadcast %27 : vector<1x8xf32> to vector<8x8xf32>
    %203 = arith.addf %201, %202 : vector<8x8xf32>
    %cst_99 = arith.constant dense<0xFF800000> : vector<8xf32>
    %204 = vector.multi_reduction <maximumf>, %203, %cst_99 [1] : vector<8x8xf32> to vector<8xf32>
    %205 = vector.shape_cast %204 : vector<8xf32> to vector<8x1xf32>
    %206 = vector.broadcast %205 : vector<8x1xf32> to vector<8x8xf32>
    %207 = arith.subf %203, %206 : vector<8x8xf32>
    %208 = math.exp %207 : vector<8x8xf32>
    %cst_100 = arith.constant dense<0.000000e+00> : vector<8xf32>
    %209 = vector.multi_reduction <add>, %208, %cst_100 [1] : vector<8x8xf32> to vector<8xf32>
    %210 = vector.shape_cast %209 : vector<8xf32> to vector<8x1xf32>
    %211 = tpu.reciprocal %210 {approx = true} : vector<8x1xf32> -> vector<8x1xf32>
    %212 = vector.broadcast %211 : vector<8x1xf32> to vector<8x8xf32>
    %213 = arith.mulf %208, %212 : vector<8x8xf32>
    %cst_101 = arith.constant dense<0.000000e+00> : vector<8x16xf32>
    %214 = tpu.matmul %213, %198, %cst_101 {dimension_numbers = #tpu.dot_dimension_numbers<[1], [0], [0], [1], [0, 0, 1, 1], [], []>} : vector<8x8xf32>, vector<8x16xf32>, vector<8x16xf32> -> vector<8x16xf32>
    %c1_102 = arith.constant 1 : index
    %c0_103 = arith.constant 0 : index
    %c0_104 = arith.constant 0 : index
    %215 = vector.load %arg7[%c1_102, %c0_103, %c0_104] : memref<2x32x32xf32, #tpu.memory_space<vmem>>, vector<1x32x32xf32>
    %216 = vector.shape_cast %215 : vector<1x32x32xf32> to vector<32x32xf32>
    %217 = vector.extract_strided_slice %216 {offsets = [16, 0], sizes = [16, 32], strides = [1, 1]} : vector<32x32xf32> to vector<16x32xf32>
    %cst_105 = arith.constant dense<0.000000e+00> : vector<8x32xf32>
    %218 = tpu.matmul %214, %217, %cst_105 {dimension_numbers = #tpu.dot_dimension_numbers<[1], [0], [0], [1], [0, 0, 1, 1], [], []>} : vector<8x16xf32>, vector<16x32xf32>, vector<8x32xf32> -> vector<8x32xf32>
    %219 = arith.addf %195, %218 : vector<8x32xf32>
    %c1_106 = arith.constant 1 : index
    %c0_107 = arith.constant 0 : index
    %c0_108 = arith.constant 0 : index
    %220 = vector.load %arg8[%c1_106, %c0_107, %c0_108] : memref<2x1x32xf32, #tpu.memory_space<vmem>>, vector<1x1x32xf32>
    %221 = vector.shape_cast %220 : vector<1x1x32xf32> to vector<1x32xf32>
    %222 = vector.broadcast %221 : vector<1x32xf32> to vector<8x32xf32>
    %223 = arith.addf %219, %222 : vector<8x32xf32>
    %224 = arith.addf %163, %223 : vector<8x32xf32>
    %c1_109 = arith.constant 1 : index
    %c0_110 = arith.constant 0 : index
    %c0_111 = arith.constant 0 : index
    %225 = vector.load %arg9[%c1_109, %c0_110, %c0_111] : memref<2x1x32xf32, #tpu.memory_space<vmem>>, vector<1x1x32xf32>
    %226 = vector.shape_cast %225 : vector<1x1x32xf32> to vector<1x32xf32>
    %c1_112 = arith.constant 1 : index
    %c0_113 = arith.constant 0 : index
    %c0_114 = arith.constant 0 : index
    %227 = vector.load %arg10[%c1_112, %c0_113, %c0_114] : memref<2x1x32xf32, #tpu.memory_space<vmem>>, vector<1x1x32xf32>
    %228 = vector.shape_cast %227 : vector<1x1x32xf32> to vector<1x32xf32>
    %cst_115 = arith.constant dense<0.000000e+00> : vector<8xf32>
    %229 = vector.multi_reduction <add>, %224, %cst_115 [1] : vector<8x32xf32> to vector<8xf32>
    %230 = vector.shape_cast %229 : vector<8xf32> to vector<8x1xf32>
    %cst_116 = arith.constant 3.200000e+01 : f32
    %231 = vector.broadcast %cst_116 : f32 to vector<8x1xf32>
    %232 = arith.divf %230, %231 : vector<8x1xf32>
    %233 = vector.broadcast %232 : vector<8x1xf32> to vector<8x32xf32>
    %234 = arith.subf %224, %233 : vector<8x32xf32>
    %235 = arith.mulf %234, %234 : vector<8x32xf32>
    %cst_117 = arith.constant dense<0.000000e+00> : vector<8xf32>
    %236 = vector.multi_reduction <add>, %235, %cst_117 [1] : vector<8x32xf32> to vector<8xf32>
    %237 = vector.shape_cast %236 : vector<8xf32> to vector<8x1xf32>
    %cst_118 = arith.constant 3.200000e+01 : f32
    %238 = vector.broadcast %cst_118 : f32 to vector<8x1xf32>
    %239 = arith.divf %237, %238 : vector<8x1xf32>
    %240 = vector.broadcast %232 : vector<8x1xf32> to vector<8x32xf32>
    %241 = arith.subf %224, %240 : vector<8x32xf32>
    %cst_119 = arith.constant 9.99999996E-13 : f32
    %242 = vector.broadcast %cst_119 : f32 to vector<8x1xf32>
    %243 = arith.addf %239, %242 : vector<8x1xf32>
    %244 = math.rsqrt %243 : vector<8x1xf32>
    %245 = vector.broadcast %244 : vector<8x1xf32> to vector<8x32xf32>
    %246 = arith.mulf %241, %245 : vector<8x32xf32>
    %247 = vector.broadcast %226 : vector<1x32xf32> to vector<8x32xf32>
    %248 = arith.mulf %246, %247 : vector<8x32xf32>
    %249 = vector.broadcast %228 : vector<1x32xf32> to vector<8x32xf32>
    %250 = arith.addf %248, %249 : vector<8x32xf32>
    %c1_120 = arith.constant 1 : index
    %c0_121 = arith.constant 0 : index
    %c0_122 = arith.constant 0 : index
    %251 = vector.load %arg11[%c1_120, %c0_121, %c0_122] : memref<2x32x64xf32, #tpu.memory_space<vmem>>, vector<1x32x64xf32>
    %252 = vector.shape_cast %251 : vector<1x32x64xf32> to vector<32x64xf32>
    %cst_123 = arith.constant dense<0.000000e+00> : vector<8x64xf32>
    %253 = tpu.matmul %250, %252, %cst_123 {dimension_numbers = #tpu.dot_dimension_numbers<[1], [0], [0], [1], [0, 0, 1, 1], [], []>} : vector<8x32xf32>, vector<32x64xf32>, vector<8x64xf32> -> vector<8x64xf32>
    %c1_124 = arith.constant 1 : index
    %c0_125 = arith.constant 0 : index
    %c0_126 = arith.constant 0 : index
    %254 = vector.load %arg12[%c1_124, %c0_125, %c0_126] : memref<2x1x64xf32, #tpu.memory_space<vmem>>, vector<1x1x64xf32>
    %255 = vector.shape_cast %254 : vector<1x1x64xf32> to vector<1x64xf32>
    %256 = vector.broadcast %255 : vector<1x64xf32> to vector<8x64xf32>
    %257 = arith.addf %253, %256 : vector<8x64xf32>
    %cst_127 = arith.constant 5.000000e-01 : f32
    %258 = vector.broadcast %cst_127 : f32 to vector<8x64xf32>
    %259 = arith.mulf %258, %257 : vector<8x64xf32>
    %cst_128 = arith.constant 0.707106769 : f32
    %260 = vector.broadcast %cst_128 : f32 to vector<8x64xf32>
    %261 = arith.mulf %257, %260 : vector<8x64xf32>
    %262 = math.erf %261 : vector<8x64xf32>
    %cst_129 = arith.constant 1.000000e+00 : f32
    %263 = vector.broadcast %cst_129 : f32 to vector<8x64xf32>
    %264 = arith.addf %263, %262 : vector<8x64xf32>
    %265 = arith.mulf %259, %264 : vector<8x64xf32>
    %c1_130 = arith.constant 1 : index
    %c0_131 = arith.constant 0 : index
    %c0_132 = arith.constant 0 : index
    %266 = vector.load %arg13[%c1_130, %c0_131, %c0_132] : memref<2x64x32xf32, #tpu.memory_space<vmem>>, vector<1x64x32xf32>
    %267 = vector.shape_cast %266 : vector<1x64x32xf32> to vector<64x32xf32>
    %cst_133 = arith.constant dense<0.000000e+00> : vector<8x32xf32>
    %268 = tpu.matmul %265, %267, %cst_133 {dimension_numbers = #tpu.dot_dimension_numbers<[1], [0], [0], [1], [0, 0, 1, 1], [], []>} : vector<8x64xf32>, vector<64x32xf32>, vector<8x32xf32> -> vector<8x32xf32>
    %c1_134 = arith.constant 1 : index
    %c0_135 = arith.constant 0 : index
    %c0_136 = arith.constant 0 : index
    %269 = vector.load %arg14[%c1_134, %c0_135, %c0_136] : memref<2x1x32xf32, #tpu.memory_space<vmem>>, vector<1x1x32xf32>
    %270 = vector.shape_cast %269 : vector<1x1x32xf32> to vector<1x32xf32>
    %271 = vector.broadcast %270 : vector<1x32xf32> to vector<8x32xf32>
    %272 = arith.addf %268, %271 : vector<8x32xf32>
    %273 = arith.addf %250, %272 : vector<8x32xf32>
    %c1_137 = arith.constant 1 : index
    %c0_138 = arith.constant 0 : index
    %c0_139 = arith.constant 0 : index
    %274 = vector.load %arg15[%c1_137, %c0_138, %c0_139] : memref<2x1x32xf32, #tpu.memory_space<vmem>>, vector<1x1x32xf32>
    %275 = vector.shape_cast %274 : vector<1x1x32xf32> to vector<1x32xf32>
    %c1_140 = arith.constant 1 : index
    %c0_141 = arith.constant 0 : index
    %c0_142 = arith.constant 0 : index
    %276 = vector.load %arg16[%c1_140, %c0_141, %c0_142] : memref<2x1x32xf32, #tpu.memory_space<vmem>>, vector<1x1x32xf32>
    %277 = vector.shape_cast %276 : vector<1x1x32xf32> to vector<1x32xf32>
    %cst_143 = arith.constant dense<0.000000e+00> : vector<8xf32>
    %278 = vector.multi_reduction <add>, %273, %cst_143 [1] : vector<8x32xf32> to vector<8xf32>
    %279 = vector.shape_cast %278 : vector<8xf32> to vector<8x1xf32>
    %cst_144 = arith.constant 3.200000e+01 : f32
    %280 = vector.broadcast %cst_144 : f32 to vector<8x1xf32>
    %281 = arith.divf %279, %280 : vector<8x1xf32>
    %282 = vector.broadcast %281 : vector<8x1xf32> to vector<8x32xf32>
    %283 = arith.subf %273, %282 : vector<8x32xf32>
    %284 = arith.mulf %283, %283 : vector<8x32xf32>
    %cst_145 = arith.constant dense<0.000000e+00> : vector<8xf32>
    %285 = vector.multi_reduction <add>, %284, %cst_145 [1] : vector<8x32xf32> to vector<8xf32>
    %286 = vector.shape_cast %285 : vector<8xf32> to vector<8x1xf32>
    %cst_146 = arith.constant 3.200000e+01 : f32
    %287 = vector.broadcast %cst_146 : f32 to vector<8x1xf32>
    %288 = arith.divf %286, %287 : vector<8x1xf32>
    %289 = vector.broadcast %281 : vector<8x1xf32> to vector<8x32xf32>
    %290 = arith.subf %273, %289 : vector<8x32xf32>
    %cst_147 = arith.constant 9.99999996E-13 : f32
    %291 = vector.broadcast %cst_147 : f32 to vector<8x1xf32>
    %292 = arith.addf %288, %291 : vector<8x1xf32>
    %293 = math.rsqrt %292 : vector<8x1xf32>
    %294 = vector.broadcast %293 : vector<8x1xf32> to vector<8x32xf32>
    %295 = arith.mulf %290, %294 : vector<8x32xf32>
    %296 = vector.broadcast %275 : vector<1x32xf32> to vector<8x32xf32>
    %297 = arith.mulf %295, %296 : vector<8x32xf32>
    %298 = vector.broadcast %277 : vector<1x32xf32> to vector<8x32xf32>
    %299 = arith.addf %297, %298 : vector<8x32xf32>
    %300 = vector.extract_strided_slice %299 {offsets = [0, 0], sizes = [1, 32], strides = [1, 1]} : vector<8x32xf32> to vector<1x32xf32>
    %c0_148 = arith.constant 0 : index
    %c0_149 = arith.constant 0 : index
    %301 = vector.load %arg17[%c0_148, %c0_149] : memref<32x32xf32, #tpu.memory_space<vmem>>, vector<32x32xf32>
    %cst_150 = arith.constant dense<0.000000e+00> : vector<1x32xf32>
    %302 = tpu.matmul %300, %301, %cst_150 {dimension_numbers = #tpu.dot_dimension_numbers<[1], [0], [0], [1], [0, 0, 1, 1], [], []>} : vector<1x32xf32>, vector<32x32xf32>, vector<1x32xf32> -> vector<1x32xf32>
    %c0_151 = arith.constant 0 : index
    %c0_152 = arith.constant 0 : index
    %303 = vector.load %arg18[%c0_151, %c0_152] : memref<1x32xf32, #tpu.memory_space<vmem>>, vector<1x32xf32>
    %304 = arith.addf %302, %303 : vector<1x32xf32>
    %305 = math.tanh %304 : vector<1x32xf32>
    %c0_153 = arith.constant 0 : index
    %c0_154 = arith.constant 0 : index
    %306 = vector.load %arg19[%c0_153, %c0_154] : memref<32x128xf32, #tpu.memory_space<vmem>>, vector<32x128xf32>
    %cst_155 = arith.constant dense<0.000000e+00> : vector<1x128xf32>
    %307 = tpu.matmul %305, %306, %cst_155 {dimension_numbers = #tpu.dot_dimension_numbers<[1], [0], [0], [1], [0, 0, 1, 1], [], []>} : vector<1x32xf32>, vector<32x128xf32>, vector<1x128xf32> -> vector<1x128xf32>
    %c0_156 = arith.constant 0 : index
    %c0_157 = arith.constant 0 : index
    %308 = vector.load %arg20[%c0_156, %c0_157] : memref<1x128xf32, #tpu.memory_space<vmem>>, vector<1x128xf32>
    %309 = arith.addf %307, %308 : vector<1x128xf32>
    %c0_158 = arith.constant 0 : index
    %c0_159 = arith.constant 0 : index
    %c0_160 = arith.constant 0 : index
    %310 = vector.load %arg21[%c0_158, %c0_159, %c0_160] : memref<1x1x128xf32, #tpu.memory_space<vmem>>, vector<1x1x128xf32>
    %311 = vector.shape_cast %310 : vector<1x1x128xf32> to vector<1x128xf32>
    %312 = vector.shape_cast %309 : vector<1x128xf32> to vector<1x1x128xf32>
    tpu.vector_store %arg21[%c0_158, %c0_159, %c0_160], %312 {strides = array<i32>} : memref<1x1x128xf32, #tpu.memory_space<vmem>>, vector<1x1x128xf32>,
    return
  }
  func.func @transform_0(%arg0: i32) -> (i32, i32, i32) {
    %c0_i32 = arith.constant 0 : i32
    %c0_i32_0 = arith.constant 0 : i32
    %c0_i32_1 = arith.constant 0 : i32
    return %arg0, %c0_i32, %c0_i32_0 : i32, i32, i32
  }
  func.func @transform_1(%arg0: i32) -> (i32, i32, i32) {
    %c0_i32 = arith.constant 0 : i32
    %c0_i32_0 = arith.constant 0 : i32
    %c0_i32_1 = arith.constant 0 : i32
    return %arg0, %c0_i32, %c0_i32_0 : i32, i32, i32
  }
  func.func @transform_2(%arg0: i32) -> (i32, i32) {
    %c0_i32 = arith.constant 0 : i32
    %c0_i32_0 = arith.constant 0 : i32
    %c0_i32_1 = arith.constant 0 : i32
    return %c0_i32, %c0_i32_0 : i32, i32
  }
  func.func @transform_3(%arg0: i32) -> (i32, i32) {
    %c0_i32 = arith.constant 0 : i32
    %c0_i32_0 = arith.constant 0 : i32
    %c0_i32_1 = arith.constant 0 : i32
    return %c0_i32, %c0_i32_0 : i32, i32
  }
  func.func @transform_4(%arg0: i32) -> (i32, i32, i32) {
    %c0_i32 = arith.constant 0 : i32
    %c0_i32_0 = arith.constant 0 : i32
    %c0_i32_1 = arith.constant 0 : i32
    %c0_i32_2 = arith.constant 0 : i32
    return %c0_i32, %c0_i32_0, %c0_i32_1 : i32, i32, i32
  }
  func.func @transform_5(%arg0: i32) -> (i32, i32, i32) {
    %c0_i32 = arith.constant 0 : i32
    %c0_i32_0 = arith.constant 0 : i32
    %c0_i32_1 = arith.constant 0 : i32
    %c0_i32_2 = arith.constant 0 : i32
    return %c0_i32, %c0_i32_0, %c0_i32_1 : i32, i32, i32
  }
  func.func @transform_6(%arg0: i32) -> (i32, i32, i32) {
    %c0_i32 = arith.constant 0 : i32
    %c0_i32_0 = arith.constant 0 : i32
    %c0_i32_1 = arith.constant 0 : i32
    %c0_i32_2 = arith.constant 0 : i32
    return %c0_i32, %c0_i32_0, %c0_i32_1 : i32, i32, i32
  }
  func.func @transform_7(%arg0: i32) -> (i32, i32, i32) {
    %c0_i32 = arith.constant 0 : i32
    %c0_i32_0 = arith.constant 0 : i32
    %c0_i32_1 = arith.constant 0 : i32
    %c0_i32_2 = arith.constant 0 : i32
    return %c0_i32, %c0_i32_0, %c0_i32_1 : i32, i32, i32
  }
  func.func @transform_8(%arg0: i32) -> (i32, i32, i32) {
    %c0_i32 = arith.constant 0 : i32
    %c0_i32_0 = arith.constant 0 : i32
    %c0_i32_1 = arith.constant 0 : i32
    %c0_i32_2 = arith.constant 0 : i32
    return %c0_i32, %c0_i32_0, %c0_i32_1 : i32, i32, i32
  }
  func.func @transform_9(%arg0: i32) -> (i32, i32, i32) {
    %c0_i32 = arith.constant 0 : i32
    %c0_i32_0 = arith.constant 0 : i32
    %c0_i32_1 = arith.constant 0 : i32
    %c0_i32_2 = arith.constant 0 : i32
    return %c0_i32, %c0_i32_0, %c0_i32_1 : i32, i32, i32
  }
  func.func @transform_10(%arg0: i32) -> (i32, i32, i32) {
    %c0_i32 = arith.constant 0 : i32
    %c0_i32_0 = arith.constant 0 : i32
    %c0_i32_1 = arith.constant 0 : i32
    %c0_i32_2 = arith.constant 0 : i32
    return %c0_i32, %c0_i32_0, %c0_i32_1 : i32, i32, i32
  }
  func.func @transform_11(%arg0: i32) -> (i32, i32, i32) {
    %c0_i32 = arith.constant 0 : i32
    %c0_i32_0 = arith.constant 0 : i32
    %c0_i32_1 = arith.constant 0 : i32
    %c0_i32_2 = arith.constant 0 : i32
    return %c0_i32, %c0_i32_0, %c0_i32_1 : i32, i32, i32
  }
  func.func @transform_12(%arg0: i32) -> (i32, i32, i32) {
    %c0_i32 = arith.constant 0 : i32
    %c0_i32_0 = arith.constant 0 : i32
    %c0_i32_1 = arith.constant 0 : i32
    %c0_i32_2 = arith.constant 0 : i32
    return %c0_i32, %c0_i32_0, %c0_i32_1 : i32, i32, i32
  }
  func.func @transform_13(%arg0: i32) -> (i32, i32, i32) {
    %c0_i32 = arith.constant 0 : i32
    %c0_i32_0 = arith.constant 0 : i32
    %c0_i32_1 = arith.constant 0 : i32
    %c0_i32_2 = arith.constant 0 : i32
    return %c0_i32, %c0_i32_0, %c0_i32_1 : i32, i32, i32
  }
  func.func @transform_14(%arg0: i32) -> (i32, i32, i32) {
    %c0_i32 = arith.constant 0 : i32
    %c0_i32_0 = arith.constant 0 : i32
    %c0_i32_1 = arith.constant 0 : i32
    %c0_i32_2 = arith.constant 0 : i32
    return %c0_i32, %c0_i32_0, %c0_i32_1 : i32, i32, i32
  }
  func.func @transform_15(%arg0: i32) -> (i32, i32, i32) {
    %c0_i32 = arith.constant 0 : i32
    %c0_i32_0 = arith.constant 0 : i32
    %c0_i32_1 = arith.constant 0 : i32
    %c0_i32_2 = arith.constant 0 : i32
    return %c0_i32, %c0_i32_0, %c0_i32_1 : i32, i32, i32
  }
  func.func @transform_16(%arg0: i32) -> (i32, i32) {
    %c0_i32 = arith.constant 0 : i32
    %c0_i32_0 = arith.constant 0 : i32
    %c0_i32_1 = arith.constant 0 : i32
    return %c0_i32, %c0_i32_0 : i32, i32
  }
  func.func @transform_17(%arg0: i32) -> (i32, i32) {
    %c0_i32 = arith.constant 0 : i32
    %c0_i32_0 = arith.constant 0 : i32
    %c0_i32_1 = arith.constant 0 : i32
    return %c0_i32, %c0_i32_0 : i32, i32
  }
  func.func @transform_18(%arg0: i32) -> (i32, i32) {
    %c0_i32 = arith.constant 0 : i32
    %c0_i32_0 = arith.constant 0 : i32
    %c0_i32_1 = arith.constant 0 : i32
    return %c0_i32, %c0_i32_0 : i32, i32
  }
  func.func @transform_19(%arg0: i32) -> (i32, i32) {
    %c0_i32 = arith.constant 0 : i32
    %c0_i32_0 = arith.constant 0 : i32
    %c0_i32_1 = arith.constant 0 : i32
    return %c0_i32, %c0_i32_0 : i32, i32
  }
  func.func @transform_20(%arg0: i32) -> (i32, i32, i32) {
    %c0_i32 = arith.constant 0 : i32
    %c0_i32_0 = arith.constant 0 : i32
    %c0_i32_1 = arith.constant 0 : i32
    return %arg0, %c0_i32, %c0_i32_0 : i32, i32, i32
  }
}

</mosaic_0001>

<llo_original>
// kernel: question_classifier_forward.1
$region0: #{question_classifier_forward.1}
  #allocation0 [shape = 'u32[]', space=smem, size = 0x4, offset = 0x4, fixed_abs, tag = 'smem constant byte address 0x4 - core index']
  #allocation1 [shape = 'u32[144,128]{1,0:T(1,128)}', space=vmem, size = 0x12000, scoped, tag = 'internal scratch']
  %s0 = inlined_call_operand.vmem [shape: f32[2,8,32], index: 0, kind: input, shape index: {}]
  %s1 = inlined_call_operand.vmem [shape: f32[2,1,8], index: 1, kind: input, shape index: {}]
  %s2 = inlined_call_operand.vmem [shape: f32[1,32], index: 2, kind: input, shape index: {}]
  %s3 = inlined_call_operand.vmem [shape: f32[1,32], index: 3, kind: input, shape index: {}]
  %s4 = inlined_call_operand.vmem [shape: f32[2,32,96], index: 4, kind: input, shape index: {}]
  %s5 = inlined_call_operand.vmem [shape: f32[2,1,96], index: 5, kind: input, shape index: {}]
  %s6 = inlined_call_operand.vmem [shape: f32[2,32,32], index: 6, kind: input, shape index: {}]
  %s7 = inlined_call_operand.vmem [shape: f32[2,1,32], index: 7, kind: input, shape index: {}]
  %s8 = inlined_call_operand.vmem [shape: f32[2,1,32], index: 8, kind: input, shape index: {}]
  %s9 = inlined_call_operand.vmem [shape: f32[2,1,32], index: 9, kind: input, shape index: {}]
  %s10 = inlined_call_operand.vmem [shape: f32[2,32,64], index: 10, kind: input, shape index: {}]
  %s11 = inlined_call_operand.vmem [shape: f32[2,1,64], index: 11, kind: input, shape index: {}]
  %s12 = inlined_call_operand.vmem [shape: f32[2,64,32], index: 12, kind: input, shape index: {}]
  %s13 = inlined_call_operand.vmem [shape: f32[2,1,32], index: 13, kind: input, shape index: {}]
  %s14 = inlined_call_operand.vmem [shape: f32[2,1,32], index: 14, kind: input, shape index: {}]
  %s15 = inlined_call_operand.vmem [shape: f32[2,1,32], index: 15, kind: input, shape index: {}]
  %s16 = inlined_call_operand.vmem [shape: f32[32,32], index: 16, kind: input, shape index: {}]
  %s17 = inlined_call_operand.vmem [shape: f32[1,32], index: 17, kind: input, shape index: {}]
  %s18 = inlined_call_operand.vmem [shape: f32[32,128], index: 18, kind: input, shape index: {}]
  %s19 = inlined_call_operand.vmem [shape: f32[1,128], index: 19, kind: input, shape index: {}]
  %s20 = inlined_call_operand.hbm [shape: f32[2,1,128], index: 20, kind: output, shape index: {}]
  %s21 = sld [smem:[#allocation0]]
  $region113: #{question_classifier_forward.1} parent=0
    _
  %s23 = ssub.s32 1, %s21
  %s24 = scalar_select 0, %s23, %s21
  $region1: #{question_classifier_forward.1} parent=0
    #allocation2 [shape = 'u8[1024]{0}', space=vmem, size = 0x400, scoped, tag = 'output window, operand 0']
    #allocation3 [shape = 's32[2]{0}', space=sflag, size = 0x8, scoped, tag = 'scoped memory for question_classifier_forward.1']
    %25 = vsyncpa [#allocation3], 0
    %s26 = scalar_lea.sflag [#allocation3], 1
    %27 = vsyncpa %s26, 0
    loop: start=0, step=1, limit=4
    $region2: #{question_classifier_forward.1} parent=1 // loop_pre_header
      _
    $region3: #{question_classifier_forward.1} parent=1 // loop_header
      %s29 = sphi 0, %s33
      %p30 = scmp.ge.s32.totalorder %s29, 4
      %s39 = sphi 0, %s41
      %s42 = sphi 0, %s39
      %s43 = sphi 0, %s42
      %s59 = sphi 0, %s43
      %s65 = sphi 0, %s67
      %s68 = sphi 0, %s65
      %s69 = sphi 0, %s68
      %s85 = sphi 0, %s69
      %s89 = sphi 0, %s89
      %s91 = sphi 0, %s89
      %s92 = sphi 0, %s91
      %s106 = sphi 0, %s92
      %s110 = sphi 0, %s110
      %s112 = sphi 0, %s110
      %s113 = sphi 0, %s112
      %s127 = sphi 0, %s113
      %s131 = sphi 0, %s131
      %s133 = sphi 0, %s131
      %s134 = sphi 0, %s133
      %s148 = sphi 0, %s134
      %s152 = sphi 0, %s152
      %s154 = sphi 0, %s152
      %s155 = sphi 0, %s154
      %s169 = sphi 0, %s155
      %s173 = sphi 0, %s173
      %s175 = sphi 0, %s173
      %s176 = sphi 0, %s175
      %s190 = sphi 0, %s176
      %s194 = sphi 0, %s194
      %s196 = sphi 0, %s194
      %s197 = sphi 0, %s196
      %s211 = sphi 0, %s197
      %s215 = sphi 0, %s215
      %s217 = sphi 0, %s215
      %s218 = sphi 0, %s217
      %s232 = sphi 0, %s218
      %s236 = sphi 0, %s236
      %s238 = sphi 0, %s236
      %s239 = sphi 0, %s238
      %s253 = sphi 0, %s239
      %s257 = sphi 0, %s257
      %s259 = sphi 0, %s257
      %s260 = sphi 0, %s259
      %s274 = sphi 0, %s260
      %s278 = sphi 0, %s278
      %s280 = sphi 0, %s278
      %s281 = sphi 0, %s280
      %s295 = sphi 0, %s281
      %s299 = sphi 0, %s299
      %s301 = sphi 0, %s299
      %s302 = sphi 0, %s301
      %s316 = sphi 0, %s302
      %s320 = sphi 0, %s320
      %s322 = sphi 0, %s320
      %s323 = sphi 0, %s322
      %s337 = sphi 0, %s323
      %s341 = sphi 0, %s341
      %s343 = sphi 0, %s341
      %s344 = sphi 0, %s343
      %s358 = sphi 0, %s344
      %s362 = sphi 0, %s362
      %s364 = sphi 0, %s362
      %s365 = sphi 0, %s364
      %s379 = sphi 0, %s365
      %s383 = sphi 0, %s383
      %s385 = sphi 0, %s383
      %s386 = sphi 0, %s385
      %s400 = sphi 0, %s386
      %s404 = sphi 0, %s404
      %s406 = sphi 0, %s404
      %s407 = sphi 0, %s406
      %s421 = sphi 0, %s407
      %s425 = sphi 0, %s425
      %s427 = sphi 0, %s425
      %s428 = sphi 0, %s427
      %s442 = sphi 0, %s428
      %s446 = sphi 0, %s446
      %s448 = sphi 0, %s446
      %s449 = sphi 0, %s448
      %s463 = sphi 0, %s449
      %s469 = sphi 0, %s471
      %s472 = sphi 0, %s469
      %s473 = sphi 0, %s472
      %s489 = sphi 0, %s473
    $region4: #{question_classifier_forward.1} parent=1 // loop_header_branch
      %32 = sbr.rel (%p30) target = $region8
    $region5: #{question_classifier_forward.1} parent=1 // loop_body
      %s34 = ssub.s32 %s29, 1
      %s35 = ssub.s32 %s29, 2
      %s36 = sadd.s32 %s29, 1
      %s37 = ssub.s32 %s29, %s36
      %p38 = scmp.eq.s32.totalorder %s37, 0
      %s40 = sadd.s32 %s39, 1
      %s41 = scalar_select %p38, %s39, %s40
      %p44 = pneg %p38
      %p45 = scmp.eq.s32.totalorder %s29, 1
      %p46 = por %p44, %p45
      %p47 = scmp.ne.s32.totalorder %s39, %s42
      %p48 = scmp.eq.s32.totalorder %s29, 0
      %p49 = por %p47, %p48
      %p50 = scmp.ne.s32.totalorder %s39, %s42
      %p51 = scmp.eq.s32.totalorder %s34, 1
      %p52 = por %p50, %p51
      %p53 = scmp.ne.s32.totalorder %s42, %s43
      %p54 = scmp.eq.s32.totalorder %s34, 0
      %p55 = por %p53, %p54
      %p56 = scmp.ne.s32.totalorder %s42, %s43
      %p57 = scmp.eq.s32.totalorder %s35, 1
      %p58 = por %p56, %p57
      %p60 = scmp.ne.s32.totalorder %s43, %s59
      %p61 = scmp.eq.s32.totalorder %s35, 0
      %p62 = por %p60, %p61
      %s63 = ssub.s32 %s29, %s36
      %p64 = scmp.eq.s32.totalorder %s63, 0
      %s66 = sadd.s32 %s65, 1
      %s67 = scalar_select %p64, %s65, %s66
      %p70 = pneg %p64
      %p71 = scmp.eq.s32.totalorder %s29, 1
      %p72 = por %p70, %p71
      %p73 = scmp.ne.s32.totalorder %s65, %s68
      %p74 = scmp.eq.s32.totalorder %s29, 0
      %p75 = por %p73, %p74
      %p76 = scmp.ne.s32.totalorder %s65, %s68
      %p77 = scmp.eq.s32.totalorder %s34, 1
      %p78 = por %p76, %p77
      %p79 = scmp.ne.s32.totalorder %s68, %s69
      %p80 = scmp.eq.s32.totalorder %s34, 0
      %p81 = por %p79, %p80
      %p82 = scmp.ne.s32.totalorder %s68, %s69
      %p83 = scmp.eq.s32.totalorder %s35, 1
      %p84 = por %p82, %p83
      %p86 = scmp.ne.s32.totalorder %s69, %s85
      %p87 = scmp.eq.s32.totalorder %s35, 0
      %p88 = por %p86, %p87
      %s90 = sadd.s32 %s89, 1
      %p93 = scmp.eq.s32.totalorder %s29, 1
      %p94 = scmp.ne.s32.totalorder %s89, %s91
      %p95 = scmp.eq.s32.totalorder %s29, 0
      %p96 = por %p94, %p95
      %p97 = scmp.ne.s32.totalorder %s89, %s91
      %p98 = scmp.eq.s32.totalorder %s34, 1
      %p99 = por %p97, %p98
      %p100 = scmp.ne.s32.totalorder %s91, %s92
      %p101 = scmp.eq.s32.totalorder %s34, 0
      %p102 = por %p100, %p101
      %p103 = scmp.ne.s32.totalorder %s91, %s92
      %p104 = scmp.eq.s32.totalorder %s35, 1
      %p105 = por %p103, %p104
      %p107 = scmp.ne.s32.totalorder %s92, %s106
      %p108 = scmp.eq.s32.totalorder %s35, 0
      %p109 = por %p107, %p108
      %s111 = sadd.s32 %s110, 1
      %p114 = scmp.eq.s32.totalorder %s29, 1
      %p115 = scmp.ne.s32.totalorder %s110, %s112
      %p116 = scmp.eq.s32.totalorder %s29, 0
      %p117 = por %p115, %p116
      %p118 = scmp.ne.s32.totalorder %s110, %s112
      %p119 = scmp.eq.s32.totalorder %s34, 1
      %p120 = por %p118, %p119
      %p121 = scmp.ne.s32.totalorder %s112, %s113
      %p122 = scmp.eq.s32.totalorder %s34, 0
      %p123 = por %p121, %p122
      %p124 = scmp.ne.s32.totalorder %s112, %s113
      %p125 = scmp.eq.s32.totalorder %s35, 1
      %p126 = por %p124, %p125
      %p128 = scmp.ne.s32.totalorder %s113, %s127
      %p129 = scmp.eq.s32.totalorder %s35, 0
      %p130 = por %p128, %p129
      %s132 = sadd.s32 %s131, 1
      %p135 = scmp.eq.s32.totalorder %s29, 1
      %p136 = scmp.ne.s32.totalorder %s131, %s133
      %p137 = scmp.eq.s32.totalorder %s29, 0
      %p138 = por %p136, %p137
      %p139 = scmp.ne.s32.totalorder %s131, %s133
      %p140 = scmp.eq.s32.totalorder %s34, 1
      %p141 = por %p139, %p140
      %p142 = scmp.ne.s32.totalorder %s133, %s134
      %p143 = scmp.eq.s32.totalorder %s34, 0
      %p144 = por %p142, %p143
      %p145 = scmp.ne.s32.totalorder %s133, %s134
      %p146 = scmp.eq.s32.totalorder %s35, 1
      %p147 = por %p145, %p146
      %p149 = scmp.ne.s32.totalorder %s134, %s148
      %p150 = scmp.eq.s32.totalorder %s35, 0
      %p151 = por %p149, %p150
      %s153 = sadd.s32 %s152, 1
      %p156 = scmp.eq.s32.totalorder %s29, 1
      %p157 = scmp.ne.s32.totalorder %s152, %s154
      %p158 = scmp.eq.s32.totalorder %s29, 0
      %p159 = por %p157, %p158
      %p160 = scmp.ne.s32.totalorder %s152, %s154
      %p161 = scmp.eq.s32.totalorder %s34, 1
      %p162 = por %p160, %p161
      %p163 = scmp.ne.s32.totalorder %s154, %s155
      %p164 = scmp.eq.s32.totalorder %s34, 0
      %p165 = por %p163, %p164
      %p166 = scmp.ne.s32.totalorder %s154, %s155
      %p167 = scmp.eq.s32.totalorder %s35, 1
      %p168 = por %p166, %p167
      %p170 = scmp.ne.s32.totalorder %s155, %s169
      %p171 = scmp.eq.s32.totalorder %s35, 0
      %p172 = por %p170, %p171
      %s174 = sadd.s32 %s173, 1
      %p177 = scmp.eq.s32.totalorder %s29, 1
      %p178 = scmp.ne.s32.totalorder %s173, %s175
      %p179 = scmp.eq.s32.totalorder %s29, 0
      %p180 = por %p178, %p179
      %p181 = scmp.ne.s32.totalorder %s173, %s175
      %p182 = scmp.eq.s32.totalorder %s34, 1
      %p183 = por %p181, %p182
      %p184 = scmp.ne.s32.totalorder %s175, %s176
      %p185 = scmp.eq.s32.totalorder %s34, 0
      %p186 = por %p184, %p185
      %p187 = scmp.ne.s32.totalorder %s175, %s176
      %p188 = scmp.eq.s32.totalorder %s35, 1
      %p189 = por %p187, %p188
      %p191 = scmp.ne.s32.totalorder %s176, %s190
      %p192 = scmp.eq.s32.totalorder %s35, 0
      %p193 = por %p191, %p192
      %s195 = sadd.s32 %s194, 1
      %p198 = scmp.eq.s32.totalorder %s29, 1
      %p199 = scmp.ne.s32.totalorder %s194, %s196
      %p200 = scmp.eq.s32.totalorder %s29, 0
      %p201 = por %p199, %p200
      %p202 = scmp.ne.s32.totalorder %s194, %s196
      %p203 = scmp.eq.s32.totalorder %s34, 1
      %p204 = por %p202, %p203
      %p205 = scmp.ne.s32.totalorder %s196, %s197
      %p206 = scmp.eq.s32.totalorder %s34, 0
      %p207 = por %p205, %p206
      %p208 = scmp.ne.s32.totalorder %s196, %s197
      %p209 = scmp.eq.s32.totalorder %s35, 1
      %p210 = por %p208, %p209
      %p212 = scmp.ne.s32.totalorder %s197, %s211
      %p213 = scmp.eq.s32.totalorder %s35, 0
      %p214 = por %p212, %p213
      %s216 = sadd.s32 %s215, 1
      %p219 = scmp.eq.s32.totalorder %s29, 1
      %p220 = scmp.ne.s32.totalorder %s215, %s217
      %p221 = scmp.eq.s32.totalorder %s29, 0
      %p222 = por %p220, %p221
      %p223 = scmp.ne.s32.totalorder %s215, %s217
      %p224 = scmp.eq.s32.totalorder %s34, 1
      %p225 = por %p223, %p224
      %p226 = scmp.ne.s32.totalorder %s217, %s218
      %p227 = scmp.eq.s32.totalorder %s34, 0
      %p228 = por %p226, %p227
      %p229 = scmp.ne.s32.totalorder %s217, %s218
      %p230 = scmp.eq.s32.totalorder %s35, 1
      %p231 = por %p229, %p230
      %p233 = scmp.ne.s32.totalorder %s218, %s232
      %p234 = scmp.eq.s32.totalorder %s35, 0
      %p235 = por %p233, %p234
      %s237 = sadd.s32 %s236, 1
      %p240 = scmp.eq.s32.totalorder %s29, 1
      %p241 = scmp.ne.s32.totalorder %s236, %s238
      %p242 = scmp.eq.s32.totalorder %s29, 0
      %p243 = por %p241, %p242
      %p244 = scmp.ne.s32.totalorder %s236, %s238
      %p245 = scmp.eq.s32.totalorder %s34, 1
      %p246 = por %p244, %p245
      %p247 = scmp.ne.s32.totalorder %s238, %s239
      %p248 = scmp.eq.s32.totalorder %s34, 0
      %p249 = por %p247, %p248
      %p250 = scmp.ne.s32.totalorder %s238, %s239
      %p251 = scmp.eq.s32.totalorder %s35, 1
      %p252 = por %p250, %p251
      %p254 = scmp.ne.s32.totalorder %s239, %s253
      %p255 = scmp.eq.s32.totalorder %s35, 0
      %p256 = por %p254, %p255
      %s258 = sadd.s32 %s257, 1
      %p261 = scmp.eq.s32.totalorder %s29, 1
      %p262 = scmp.ne.s32.totalorder %s257, %s259
      %p263 = scmp.eq.s32.totalorder %s29, 0
      %p264 = por %p262, %p263
      %p265 = scmp.ne.s32.totalorder %s257, %s259
      %p266 = scmp.eq.s32.totalorder %s34, 1
      %p267 = por %p265, %p266
      %p268 = scmp.ne.s32.totalorder %s259, %s260
      %p269 = scmp.eq.s32.totalorder %s34, 0
      %p270 = por %p268, %p269
      %p271 = scmp.ne.s32.totalorder %s259, %s260
      %p272 = scmp.eq.s32.totalorder %s35, 1
      %p273 = por %p271, %p272
      %p275 = scmp.ne.s32.totalorder %s260, %s274
      %p276 = scmp.eq.s32.totalorder %s35, 0
      %p277 = por %p275, %p276
      %s279 = sadd.s32 %s278, 1
      %p282 = scmp.eq.s32.totalorder %s29, 1
      %p283 = scmp.ne.s32.totalorder %s278, %s280
      %p284 = scmp.eq.s32.totalorder %s29, 0
      %p285 = por %p283, %p284
      %p286 = scmp.ne.s32.totalorder %s278, %s280
      %p287 = scmp.eq.s32.totalorder %s34, 1
      %p288 = por %p286, %p287
      %p289 = scmp.ne.s32.totalorder %s280, %s281
      %p290 = scmp.eq.s32.totalorder %s34, 0
      %p291 = por %p289, %p290
      %p292 = scmp.ne.s32.totalorder %s280, %s281
      %p293 = scmp.eq.s32.totalorder %s35, 1
      %p294 = por %p292, %p293
      %p296 = scmp.ne.s32.totalorder %s281, %s295
      %p297 = scmp.eq.s32.totalorder %s35, 0
      %p298 = por %p296, %p297
      %s300 = sadd.s32 %s299, 1
      %p303 = scmp.eq.s32.totalorder %s29, 1
      %p304 = scmp.ne.s32.totalorder %s299, %s301
      %p305 = scmp.eq.s32.totalorder %s29, 0
      %p306 = por %p304, %p305
      %p307 = scmp.ne.s32.totalorder %s299, %s301
      %p308 = scmp.eq.s32.totalorder %s34, 1
      %p309 = por %p307, %p308
      %p310 = scmp.ne.s32.totalorder %s301, %s302
      %p311 = scmp.eq.s32.totalorder %s34, 0
      %p312 = por %p310, %p311
      %p313 = scmp.ne.s32.totalorder %s301, %s302
      %p314 = scmp.eq.s32.totalorder %s35, 1
      %p315 = por %p313, %p314
      %p317 = scmp.ne.s32.totalorder %s302, %s316
      %p318 = scmp.eq.s32.totalorder %s35, 0
      %p319 = por %p317, %p318
      %s321 = sadd.s32 %s320, 1
      %p324 = scmp.eq.s32.totalorder %s29, 1
      %p325 = scmp.ne.s32.totalorder %s320, %s322
      %p326 = scmp.eq.s32.totalorder %s29, 0
      %p327 = por %p325, %p326
      %p328 = scmp.ne.s32.totalorder %s320, %s322
      %p329 = scmp.eq.s32.totalorder %s34, 1
      %p330 = por %p328, %p329
      %p331 = scmp.ne.s32.totalorder %s322, %s323
      %p332 = scmp.eq.s32.totalorder %s34, 0
      %p333 = por %p331, %p332
      %p334 = scmp.ne.s32.totalorder %s322, %s323
      %p335 = scmp.eq.s32.totalorder %s35, 1
      %p336 = por %p334, %p335
      %p338 = scmp.ne.s32.totalorder %s323, %s337
      %p339 = scmp.eq.s32.totalorder %s35, 0
      %p340 = por %p338, %p339
      %s342 = sadd.s32 %s341, 1
      %p345 = scmp.eq.s32.totalorder %s29, 1
      %p346 = scmp.ne.s32.totalorder %s341, %s343
      %p347 = scmp.eq.s32.totalorder %s29, 0
      %p348 = por %p346, %p347
      %p349 = scmp.ne.s32.totalorder %s341, %s343
      %p350 = scmp.eq.s32.totalorder %s34, 1
      %p351 = por %p349, %p350
      %p352 = scmp.ne.s32.totalorder %s343, %s344
      %p353 = scmp.eq.s32.totalorder %s34, 0
      %p354 = por %p352, %p353
      %p355 = scmp.ne.s32.totalorder %s343, %s344
      %p356 = scmp.eq.s32.totalorder %s35, 1
      %p357 = por %p355, %p356
      %p359 = scmp.ne.s32.totalorder %s344, %s358
      %p360 = scmp.eq.s32.totalorder %s35, 0
      %p361 = por %p359, %p360
      %s363 = sadd.s32 %s362, 1
      %p366 = scmp.eq.s32.totalorder %s29, 1
      %p367 = scmp.ne.s32.totalorder %s362, %s364
      %p368 = scmp.eq.s32.totalorder %s29, 0
      %p369 = por %p367, %p368
      %p370 = scmp.ne.s32.totalorder %s362, %s364
      %p371 = scmp.eq.s32.totalorder %s34, 1
      %p372 = por %p370, %p371
      %p373 = scmp.ne.s32.totalorder %s364, %s365
      %p374 = scmp.eq.s32.totalorder %s34, 0
      %p375 = por %p373, %p374
      %p376 = scmp.ne.s32.totalorder %s364, %s365
      %p377 = scmp.eq.s32.totalorder %s35, 1
      %p378 = por %p376, %p377
      %p380 = scmp.ne.s32.totalorder %s365, %s379
      %p381 = scmp.eq.s32.totalorder %s35, 0
      %p382 = por %p380, %p381
      %s384 = sadd.s32 %s383, 1
      %p387 = scmp.eq.s32.totalorder %s29, 1
      %p388 = scmp.ne.s32.totalorder %s383, %s385
      %p389 = scmp.eq.s32.totalorder %s29, 0
      %p390 = por %p388, %p389
      %p391 = scmp.ne.s32.totalorder %s383, %s385
      %p392 = scmp.eq.s32.totalorder %s34, 1
      %p393 = por %p391, %p392
      %p394 = scmp.ne.s32.totalorder %s385, %s386
      %p395 = scmp.eq.s32.totalorder %s34, 0
      %p396 = por %p394, %p395
      %p397 = scmp.ne.s32.totalorder %s385, %s386
      %p398 = scmp.eq.s32.totalorder %s35, 1
      %p399 = por %p397, %p398
      %p401 = scmp.ne.s32.totalorder %s386, %s400
      %p402 = scmp.eq.s32.totalorder %s35, 0
      %p403 = por %p401, %p402
      %s405 = sadd.s32 %s404, 1
      %p408 = scmp.eq.s32.totalorder %s29, 1
      %p409 = scmp.ne.s32.totalorder %s404, %s406
      %p410 = scmp.eq.s32.totalorder %s29, 0
      %p411 = por %p409, %p410
      %p412 = scmp.ne.s32.totalorder %s404, %s406
      %p413 = scmp.eq.s32.totalorder %s34, 1
      %p414 = por %p412, %p413
      %p415 = scmp.ne.s32.totalorder %s406, %s407
      %p416 = scmp.eq.s32.totalorder %s34, 0
      %p417 = por %p415, %p416
      %p418 = scmp.ne.s32.totalorder %s406, %s407
      %p419 = scmp.eq.s32.totalorder %s35, 1
      %p420 = por %p418, %p419
      %p422 = scmp.ne.s32.totalorder %s407, %s421
      %p423 = scmp.eq.s32.totalorder %s35, 0
      %p424 = por %p422, %p423
      %s426 = sadd.s32 %s425, 1
      %p429 = scmp.eq.s32.totalorder %s29, 1
      %p430 = scmp.ne.s32.totalorder %s425, %s427
      %p431 = scmp.eq.s32.totalorder %s29, 0
      %p432 = por %p430, %p431
      %p433 = scmp.ne.s32.totalorder %s425, %s427
      %p434 = scmp.eq.s32.totalorder %s34, 1
      %p435 = por %p433, %p434
      %p436 = scmp.ne.s32.totalorder %s427, %s428
      %p437 = scmp.eq.s32.totalorder %s34, 0
      %p438 = por %p436, %p437
      %p439 = scmp.ne.s32.totalorder %s427, %s428
      %p440 = scmp.eq.s32.totalorder %s35, 1
      %p441 = por %p439, %p440
      %p443 = scmp.ne.s32.totalorder %s428, %s442
      %p444 = scmp.eq.s32.totalorder %s35, 0
      %p445 = por %p443, %p444
      %s447 = sadd.s32 %s446, 1
      %p450 = scmp.eq.s32.totalorder %s29, 1
      %p451 = scmp.ne.s32.totalorder %s446, %s448
      %p452 = scmp.eq.s32.totalorder %s29, 0
      %p453 = por %p451, %p452
      %p454 = scmp.ne.s32.totalorder %s446, %s448
      %p455 = scmp.eq.s32.totalorder %s34, 1
      %p456 = por %p454, %p455
      %p457 = scmp.ne.s32.totalorder %s448, %s449
      %p458 = scmp.eq.s32.totalorder %s34, 0
      %p459 = por %p457, %p458
      %p460 = scmp.ne.s32.totalorder %s448, %s449
      %p461 = scmp.eq.s32.totalorder %s35, 1
      %p462 = por %p460, %p461
      %p464 = scmp.ne.s32.totalorder %s449, %s463
      %p465 = scmp.eq.s32.totalorder %s35, 0
      %p466 = por %p464, %p465
      %s467 = ssub.s32 %s29, %s36
      %p468 = scmp.eq.s32.totalorder %s467, 0
      %s470 = sadd.s32 %s469, 1
      %s471 = scalar_select %p468, %s469, %s470
      %p474 = pneg %p468
      %p475 = scmp.eq.s32.totalorder %s29, 1
      %p476 = por %p474, %p475
      %p477 = scmp.ne.s32.totalorder %s469, %s472
      %p478 = scmp.eq.s32.totalorder %s29, 0
      %p479 = por %p477, %p478
      %p480 = scmp.ne.s32.totalorder %s469, %s472
      %p481 = scmp.eq.s32.totalorder %s34, 1
      %p482 = por %p480, %p481
      %p483 = scmp.ne.s32.totalorder %s472, %s473
      %p484 = scmp.eq.s32.totalorder %s34, 0
      %p485 = por %p483, %p484
      %p486 = scmp.ne.s32.totalorder %s472, %s473
      %p487 = scmp.eq.s32.totalorder %s35, 1
      %p488 = por %p486, %p487
      %p490 = scmp.ne.s32.totalorder %s473, %s489
      %p491 = scmp.eq.s32.totalorder %s35, 0
      %p492 = por %p490, %p491
      %p493 = scmp.le.s32.totalorder 1, %s29
      %p494 = scmp.lt.s32.totalorder %s29, 3
      %p495 = pnand %p493, %p494
      %p496 = pneg %p495
      // Predicated region
      $region9: #{question_classifier_forward.1} parent=5 // pred_check
        _
      $region10: #{question_classifier_forward.1} parent=5 // pred_check_branch
        %498 = sbr.rel (%p495) target = $region12
      $region11: #{question_classifier_forward.1} parent=5 // pred_region
        %s499 = ssub.s32 %s29, 1
        // Predicated region
        $region13: #{question_classifier_forward.1} parent=11 // pred_check
          %p500 = pneg %p102
        $region14: #{question_classifier_forward.1} parent=11 // pred_check_branch
          %502 = sbr.rel (%p500) target = $region16
        $region15: #{question_classifier_forward.1} parent=11 // pred_region
          _
        $region16: #{question_classifier_forward.1} parent=11 // pred_fallthru
          _
        // Predicated region
        $region17: #{question_classifier_forward.1} parent=11 // pred_check
          %p503 = pneg %p123
        $region18: #{question_classifier_forward.1} parent=11 // pred_check_branch
          %505 = sbr.rel (%p503) target = $region20
        $region19: #{question_classifier_forward.1} parent=11 // pred_region
          _
        $region20: #{question_classifier_forward.1} parent=11 // pred_fallthru
          _
        // Predicated region
        $region21: #{question_classifier_forward.1} parent=11 // pred_check
          %p506 = pneg %p144
        $region22: #{question_classifier_forward.1} parent=11 // pred_check_branch
          %508 = sbr.rel (%p506) target = $region24
        $region23: #{question_classifier_forward.1} parent=11 // pred_region
          _
        $region24: #{question_classifier_forward.1} parent=11 // pred_fallthru
          _
        // Predicated region
        $region25: #{question_classifier_forward.1} parent=11 // pred_check
          %p509 = pneg %p165
        $region26: #{question_classifier_forward.1} parent=11 // pred_check_branch
          %511 = sbr.rel (%p509) target = $region28
        $region27: #{question_classifier_forward.1} parent=11 // pred_region
          _
        $region28: #{question_classifier_forward.1} parent=11 // pred_fallthru
          _
        // Predicated region
        $region29: #{question_classifier_forward.1} parent=11 // pred_check
          %p512 = pneg %p186
        $region30: #{question_classifier_forward.1} parent=11 // pred_check_branch
          %514 = sbr.rel (%p512) target = $region32
        $region31: #{question_classifier_forward.1} parent=11 // pred_region
          _
        $region32: #{question_classifier_forward.1} parent=11 // pred_fallthru
          _
        // Predicated region
        $region33: #{question_classifier_forward.1} parent=11 // pred_check
          %p515 = pneg %p207
        $region34: #{question_classifier_forward.1} parent=11 // pred_check_branch
          %517 = sbr.rel (%p515) target = $region36
        $region35: #{question_classifier_forward.1} parent=11 // pred_region
          _
        $region36: #{question_classifier_forward.1} parent=11 // pred_fallthru
          _
        // Predicated region
        $region37: #{question_classifier_forward.1} parent=11 // pred_check
          %p518 = pneg %p228
        $region38: #{question_classifier_forward.1} parent=11 // pred_check_branch
          %520 = sbr.rel (%p518) target = $region40
        $region39: #{question_classifier_forward.1} parent=11 // pred_region
          _
        $region40: #{question_classifier_forward.1} parent=11 // pred_fallthru
          _
        // Predicated region
        $region41: #{question_classifier_forward.1} parent=11 // pred_check
          %p521 = pneg %p249
        $region42: #{question_classifier_forward.1} parent=11 // pred_check_branch
          %523 = sbr.rel (%p521) target = $region44
        $region43: #{question_classifier_forward.1} parent=11 // pred_region
          _
        $region44: #{question_classifier_forward.1} parent=11 // pred_fallthru
          _
        // Predicated region
        $region45: #{question_classifier_forward.1} parent=11 // pred_check
          %p524 = pneg %p270
        $region46: #{question_classifier_forward.1} parent=11 // pred_check_branch
          %526 = sbr.rel (%p524) target = $region48
        $region47: #{question_classifier_forward.1} parent=11 // pred_region
          _
        $region48: #{question_classifier_forward.1} parent=11 // pred_fallthru
          _
        // Predicated region
        $region49: #{question_classifier_forward.1} parent=11 // pred_check
          %p527 = pneg %p291
        $region50: #{question_classifier_forward.1} parent=11 // pred_check_branch
          %529 = sbr.rel (%p527) target = $region52
        $region51: #{question_classifier_forward.1} parent=11 // pred_region
          _
        $region52: #{question_classifier_forward.1} parent=11 // pred_fallthru
          _
        // Predicated region
        $region53: #{question_classifier_forward.1} parent=11 // pred_check
          %p530 = pneg %p312
        $region54: #{question_classifier_forward.1} parent=11 // pred_check_branch
          %532 = sbr.rel (%p530) target = $region56
        $region55: #{question_classifier_forward.1} parent=11 // pred_region
          _
        $region56: #{question_classifier_forward.1} parent=11 // pred_fallthru
          _
        // Predicated region
        $region57: #{question_classifier_forward.1} parent=11 // pred_check
          %p533 = pneg %p333
        $region58: #{question_classifier_forward.1} parent=11 // pred_check_branch
          %535 = sbr.rel (%p533) target = $region60
        $region59: #{question_classifier_forward.1} parent=11 // pred_region
          _
        $region60: #{question_classifier_forward.1} parent=11 // pred_fallthru
          _
        // Predicated region
        $region61: #{question_classifier_forward.1} parent=11 // pred_check
          %p536 = pneg %p354
        $region62: #{question_classifier_forward.1} parent=11 // pred_check_branch
          %538 = sbr.rel (%p536) target = $region64
        $region63: #{question_classifier_forward.1} parent=11 // pred_region
          _
        $region64: #{question_classifier_forward.1} parent=11 // pred_fallthru
          _
        // Predicated region
        $region65: #{question_classifier_forward.1} parent=11 // pred_check
          %p539 = pneg %p375
        $region66: #{question_classifier_forward.1} parent=11 // pred_check_branch
          %541 = sbr.rel (%p539) target = $region68
        $region67: #{question_classifier_forward.1} parent=11 // pred_region
          _
        $region68: #{question_classifier_forward.1} parent=11 // pred_fallthru
          _
        // Predicated region
        $region69: #{question_classifier_forward.1} parent=11 // pred_check
          %p542 = pneg %p396
        $region70: #{question_classifier_forward.1} parent=11 // pred_check_branch
          %544 = sbr.rel (%p542) target = $region72
        $region71: #{question_classifier_forward.1} parent=11 // pred_region
          _
        $region72: #{question_classifier_forward.1} parent=11 // pred_fallthru
          _
        // Predicated region
        $region73: #{question_classifier_forward.1} parent=11 // pred_check
          %p545 = pneg %p417
        $region74: #{question_classifier_forward.1} parent=11 // pred_check_branch
          %547 = sbr.rel (%p545) target = $region76
        $region75: #{question_classifier_forward.1} parent=11 // pred_region
          _
        $region76: #{question_classifier_forward.1} parent=11 // pred_fallthru
          _
        // Predicated region
        $region77: #{question_classifier_forward.1} parent=11 // pred_check
          %p548 = pneg %p438
        $region78: #{question_classifier_forward.1} parent=11 // pred_check_branch
          %550 = sbr.rel (%p548) target = $region80
        $region79: #{question_classifier_forward.1} parent=11 // pred_region
          _
        $region80: #{question_classifier_forward.1} parent=11 // pred_fallthru
          _
        // Predicated region
        $region81: #{question_classifier_forward.1} parent=11 // pred_check
          %p551 = pneg %p459
        $region82: #{question_classifier_forward.1} parent=11 // pred_check_branch
          %553 = sbr.rel (%p551) target = $region84
        $region83: #{question_classifier_forward.1} parent=11 // pred_region
          _
        $region84: #{question_classifier_forward.1} parent=11 // pred_fallthru
          _
      $region12: #{question_classifier_forward.1} parent=5 // pred_fallthru
        _
      %p554 = scmp.lt.s32.totalorder %s29, 2
      // Predicated region
      $region85: #{question_classifier_forward.1} parent=5 // pred_check
        %p555 = pneg %p554
      $region86: #{question_classifier_forward.1} parent=5 // pred_check_branch
        %557 = sbr.rel (%p555) target = $region88
      $region87: #{question_classifier_forward.1} parent=5 // pred_region
        // Predicated region
        $region89: #{question_classifier_forward.1} parent=87 // pred_check
          %p558 = pneg %p49
        $region90: #{question_classifier_forward.1} parent=87 // pred_check_branch
          %560 = sbr.rel (%p558) target = $region92
        $region91: #{question_classifier_forward.1} parent=87 // pred_region
          %p561 = scmp.lt.s32.totalorder %s29, 1
          %s562 = scalar_select %p561, %s29, 1
          %s563 = smul.addr %s562, 8
          %s564 = scalar_lea.vmem %s0, %s563
        $region92: #{question_classifier_forward.1} parent=87 // pred_fallthru
          _
        // Predicated region
        $region93: #{question_classifier_forward.1} parent=87 // pred_check
          %p565 = pneg %p75
        $region94: #{question_classifier_forward.1} parent=87 // pred_check_branch
          %567 = sbr.rel (%p565) target = $region96
        $region95: #{question_classifier_forward.1} parent=87 // pred_region
          %p568 = scmp.lt.s32.totalorder %s29, 1
          %s569 = scalar_select %p568, %s29, 1
          %s570 = scalar_lea.vmem %s1, %s569
        $region96: #{question_classifier_forward.1} parent=87 // pred_fallthru
          _
      $region88: #{question_classifier_forward.1} parent=5 // pred_fallthru
        _
      %p571 = scmp.le.s32.totalorder 1, %s29
      %p572 = scmp.lt.s32.totalorder %s29, 3
      %p573 = pnand %p571, %p572
      %p574 = pneg %p573
      // Predicated region
      $region97: #{question_classifier_forward.1} parent=5 // pred_check
        _
      $region98: #{question_classifier_forward.1} parent=5 // pred_check_branch
        %576 = sbr.rel (%p573) target = $region100
      $region99: #{question_classifier_forward.1} parent=5 // pred_region
        %s577 = ssub.s32 %s29, 1
        %p578 = scmp.lt.s32.totalorder %s34, 1
        %s579 = scalar_select %p578, %s34, 1
        %s580 = smul.addr %s579, 8
        %s581 = scalar_lea.vmem %s0, %s580
        %p582 = pneg %p55
        %p583 = pneg %p52
        %p584 = scmp.lt.s32.totalorder %s34, 1
        %s585 = scalar_select %p584, %s34, 1
        %s586 = scalar_lea.vmem %s1, %s585
        %p587 = pneg %p81
        %p588 = pneg %p78
        %p589 = pneg %p102
        %p590 = pneg %p99
        %p591 = pneg %p123
        %p592 = pneg %p120
        %p593 = pneg %p144
        %p594 = pneg %p141
        %p595 = pneg %p165
        %p596 = pneg %p162
        %p597 = pneg %p186
        %p598 = pneg %p183
        %p599 = pneg %p207
        %p600 = pneg %p204
        %p601 = pneg %p228
        %p602 = pneg %p225
        %p603 = pneg %p249
        %p604 = pneg %p246
        %p605 = pneg %p270
        %p606 = pneg %p267
        %p607 = pneg %p291
        %p608 = pneg %p288
        %p609 = pneg %p312
        %p610 = pneg %p309
        %p611 = pneg %p333
        %p612 = pneg %p330
        %p613 = pneg %p354
        %p614 = pneg %p351
        %p615 = pneg %p375
        %p616 = pneg %p372
        %p617 = pneg %p396
        %p618 = pneg %p393
        %p619 = pneg %p417
        %p620 = pneg %p414
        %p621 = pneg %p438
        %p622 = pneg %p435
        %p623 = pneg %p459
        %p624 = pneg %p456
        %p625 = pneg %p485
        %p626 = pneg %p482
        %s627 = sand.u32 %s472, 1
        %s628 = scalar_lea.sflag [#allocation3], %s627
        %s629 = sand.u32 %s472, 1
        %s630 = scalar_lea.vmem [#allocation2], %s629
        %p631 = scmp.lt.s32.totalorder %s34, 1
        %s632 = scalar_select %p631, %s34, 1
        %s633 = smul.addr %s632, 8
        %s634 = scalar_lea.vmem %s0, %s633
        %p635 = scmp.lt.s32.totalorder %s34, 1
        %s636 = scalar_select %p635, %s34, 1
        %s637 = scalar_lea.vmem %s1, %s636
        %v638 = vld [vmem:[%s634] sm:$0xff]
        %v639 = vld [vmem:[%s2] sm:$0x1]
        %v640 = vld [vmem:[%s3] sm:$0x1]
        %vm641 = vcmask 261120
        %v642 = vsel %vm641, %v638, 0.0
        %643 = vadd.xlane.f32.xlu0 %v642
        %v644 = vpop.xlane.xlu0 %643
        %v645 = vrcp.pop 32.0
        %v646 = vmul.f32 %v644, %v645
        %v647 = vsub.f32 %v638, %v646
        %v648 = vmul.f32 %v647, %v647
        %v649 = vsel %vm641, %v648, 0.0
        %650 = vadd.xlane.f32.xlu0 %v649
        %v651 = vpop.xlane.xlu0 %650
        %v652 = vmul.f32 %v651, %v645
        %v653 = vadd.f32 %v652, 1e-12
        %v654 = vrsqrt.pop %v653
        %v655 = vmul.f32 %v647, %v654
        %v657 = vlaneseq
        %v658 = vshrl.u32 %v657, 7
        %v659 = vsub.s32 0, %v658
        %v660 = vrot.slane %v639, %v659
        %v662 = vmul.f32 %v655, %v660
        %v664 = vlaneseq
        %v665 = vshrl.u32 %v664, 7
        %v666 = vsub.s32 0, %v665
        %v667 = vrot.slane %v640, %v666
        %v669 = vadd.f32 %v662, %v667
        %v670 = vld [vmem:[%s637] sm:$0x1]
        %v671 = vld [vmem:[%s4] sm:$0xff]
        %v672 = vld [vmem:[%s4 + $0x8] sm:$0xff]
        %v673 = vld [vmem:[%s4 + $0x10] sm:$0xff]
        %v674 = vld [vmem:[%s4 + $0x18] sm:$0xff]
        %v675 = vld [vmem:[%s5] sm:$0x1]
        %v677 = vlaneseq
        %v678 = vshrl.u32 %v677, 7
        %v679 = vsub.s32 0, %v678
        %v680 = vrot.slane %v675, %v679
        %v683 = vsel %vm641, %v669, 0
        %685 = vmatprep.subr.mxu0 0.0
        %686 = vmatpush1.msra.mxu0 %v671
        %687 = vmatprep.subr.mxu0 0.0
        %688 = vmatpush1.msra.mxu0 %v672
        %689 = vmatprep.subr.mxu0 0.0
        %690 = vmatpush1.msra.mxu0 %v673
        %691 = vmatprep.subr.mxu0 0.0
        %692 = vmatpush1.msra.mxu0 %v674
        %693 = vmatprep.subr.mxu0 0.0
        %694 = vmatpush1.msra.mxu0 0.0
        %695 = vmatprep.subr.mxu0 0.0
        %696 = vmatpush1.msra.mxu0 0.0
        %697 = vmatprep.subr.mxu0 0.0
        %698 = vmatpush1.msra.mxu0 0.0
        %699 = vmatprep.subr.mxu0 0.0
        %700 = vmatpush1.msra.mxu0 0.0
        %701 = vmatprep.subr.mxu0 0.0
        %702 = vmatpush1.msra.mxu0 0.0
        %703 = vmatprep.subr.mxu0 0.0
        %704 = vmatpush1.msra.mxu0 0.0
        %705 = vmatprep.subr.mxu0 0.0
        %706 = vmatpush1.msra.mxu0 0.0
        %707 = vmatprep.subr.mxu0 0.0
        %708 = vmatpush1.msra.mxu0 0.0
        %709 = vmatprep.subr.mxu0 0.0
        %710 = vmatpush1.msra.mxu0 0.0
        %711 = vmatprep.subr.mxu0 0.0
        %712 = vmatpush1.msra.mxu0 0.0
        %713 = vmatprep.subr.mxu0 0.0
        %714 = vmatpush1.msra.mxu0 0.0
        %715 = vmatprep.subr.mxu0 0.0
        %716 = vmatpush1.msra.mxu0 0.0
        %717 = vmatprep.subr.mxu0 0.0
        %718 = vmatpush1.msra.mxu0 0.0
        %719 = vmatprep.subr.mxu0 0.0
        %720 = vmatpush1.msra.mxu0 0.0
        %721 = vmatprep.subr.mxu0 0.0
        %722 = vmatpush1.msra.mxu0 0.0
        %723 = vmatprep.subr.mxu0 0.0
        %724 = vmatpush1.msra.mxu0 0.0
        %725 = vmatprep.subr.mxu0 0.0
        %726 = vmatpush1.msra.mxu0 0.0
        %727 = vmatprep.subr.mxu0 0.0
        %728 = vmatpush1.msra.mxu0 0.0
        %729 = vmatprep.subr.mxu0 0.0
        %730 = vmatpush1.msra.mxu0 0.0
        %731 = vmatprep.subr.mxu0 0.0
        %732 = vmatpush1.msra.mxu0 0.0
        %733 = vmatprep.subr.mxu0 0.0
        %734 = vmatpush1.msra.mxu0 0.0
        %735 = vmatprep.subr.mxu0 0.0
        %736 = vmatpush1.msra.mxu0 0.0
        %737 = vmatprep.subr.mxu0 0.0
        %738 = vmatpush1.msra.mxu0 0.0
        %739 = vmatprep.subr.mxu0 0.0
        %740 = vmatpush1.msra.mxu0 0.0
        %741 = vmatprep.subr.mxu0 0.0
        %742 = vmatpush1.msra.mxu0 0.0
        %743 = vmatprep.subr.mxu0 0.0
        %744 = vmatpush1.msra.mxu0 0.0
        %745 = vmatprep.subr.mxu0 0.0
        %746 = vmatpush1.msra.mxu0 0.0
        %747 = vmatprep.subr.mxu0 0.0
        %748 = vmatpush1.msra.mxu0 0.0
        %749 = vmatprep.mubr.f32.mxu0 0.0
        %750 = vmatmul.mubr.f32.gmra.mrb[0].mxu0 %v683
        %v751 = vpop.f32.mrb[0].mxu0
        %v752 = vadd.f32 %v680, %v751
        %v753 = vpop.f32.mrb[0].mxu0
        %754 = vdwg.mxu0
        %756 = vrot.lane.b32.xlu0 %v752, 96
        %v757 = vpop.permute.xlu0 %756
        %vm758 = vcmask 130048
        %v759 = vsel %vm758, %v752, 0
        %v761 = vsel %vm758, %v757, 0
        %763 = vmatprep.subr.mxu0 0.0
        %764 = vmatpush1.xpose.msra.mxu0 %v761
        %765 = vmatprep.subr.mxu0 0.0
        %766 = vmatpush1.xpose.msra.mxu0 0.0
        %767 = vmatprep.subr.mxu0 0.0
        %768 = vmatpush1.xpose.msra.mxu0 0.0
        %769 = vmatprep.subr.mxu0 0.0
        %770 = vmatpush1.xpose.msra.mxu0 0.0
        %771 = vmatprep.subr.mxu0 0.0
        %772 = vmatpush1.xpose.msra.mxu0 0.0
        %773 = vmatprep.subr.mxu0 0.0
        %774 = vmatpush1.xpose.msra.mxu0 0.0
        %775 = vmatprep.subr.mxu0 0.0
        %776 = vmatpush1.xpose.msra.mxu0 0.0
        %777 = vmatprep.subr.mxu0 0.0
        %778 = vmatpush1.xpose.msra.mxu0 0.0
        %779 = vmatprep.subr.mxu0 0.0
        %780 = vmatpush1.xpose.msra.mxu0 0.0
        %781 = vmatprep.subr.mxu0 0.0
        %782 = vmatpush1.xpose.msra.mxu0 0.0
        %783 = vmatprep.subr.mxu0 0.0
        %784 = vmatpush1.xpose.msra.mxu0 0.0
        %785 = vmatprep.subr.mxu0 0.0
        %786 = vmatpush1.xpose.msra.mxu0 0.0
        %787 = vmatprep.subr.mxu0 0.0
        %788 = vmatpush1.xpose.msra.mxu0 0.0
        %789 = vmatprep.subr.mxu0 0.0
        %790 = vmatpush1.xpose.msra.mxu0 0.0
        %791 = vmatprep.subr.mxu0 0.0
        %792 = vmatpush1.xpose.msra.mxu0 0.0
        %793 = vmatprep.subr.mxu0 0.0
        %794 = vmatpush1.xpose.msra.mxu0 0.0
        %795 = vmatprep.subr.mxu0 0.0
        %796 = vmatpush1.xpose.msra.mxu0 0.0
        %797 = vmatprep.subr.mxu0 0.0
        %798 = vmatpush1.xpose.msra.mxu0 0.0
        %799 = vmatprep.subr.mxu0 0.0
        %800 = vmatpush1.xpose.msra.mxu0 0.0
        %801 = vmatprep.subr.mxu0 0.0
        %802 = vmatpush1.xpose.msra.mxu0 0.0
        %803 = vmatprep.subr.mxu0 0.0
        %804 = vmatpush1.xpose.msra.mxu0 0.0
        %805 = vmatprep.subr.mxu0 0.0
        %806 = vmatpush1.xpose.msra.mxu0 0.0
        %807 = vmatprep.subr.mxu0 0.0
        %808 = vmatpush1.xpose.msra.mxu0 0.0
        %809 = vmatprep.subr.mxu0 0.0
        %810 = vmatpush1.xpose.msra.mxu0 0.0
        %811 = vmatprep.subr.mxu0 0.0
        %812 = vmatpush1.xpose.msra.mxu0 0.0
        %813 = vmatprep.subr.mxu0 0.0
        %814 = vmatpush1.xpose.msra.mxu0 0.0
        %815 = vmatprep.subr.mxu0 0.0
        %816 = vmatpush1.xpose.msra.mxu0 0.0
        %817 = vmatprep.subr.mxu0 0.0
        %818 = vmatpush1.xpose.msra.mxu0 0.0
        %819 = vmatprep.subr.mxu0 0.0
        %820 = vmatpush1.xpose.msra.mxu0 0.0
        %821 = vmatprep.subr.mxu0 0.0
        %822 = vmatpush1.xpose.msra.mxu0 0.0
        %823 = vmatprep.subr.mxu0 0.0
        %824 = vmatpush1.xpose.msra.mxu0 0.0
        %825 = vmatprep.subr.mxu0 0.0
        %826 = vmatpush1.xpose.msra.mxu0 0.0
        %827 = vmatprep.mubr.f32.mxu0 0.0
        %828 = vmatmul.mubr.f32.gmra.mrb[0].mxu0 %v759
        %v829 = vpop.f32.mrb[0].mxu0
        %v830 = vadd.f32 0.0, %v829
        %v831 = vpop.f32.mrb[0].mxu0
        %832 = vdwg.mxu0
        %v833 = vmul.f32 %v830, 0.25
        %v835 = vlaneseq
        %v836 = vshrl.u32 %v835, 7
        %v837 = vsub.s32 0, %v836
        %v838 = vrot.slane %v670, %v837
        %v840 = vadd.f32 %v833, %v838
        %vm841 = vcmask 64512
        %v842 = vsel %vm841, %v840, -inf
        %843 = vmax.xlane.f32.xlu0 %v842
        %v844 = vpop.xlane.xlu0 %843
        %v845 = vsub.f32 %v840, %v844
        %v846 = vmul.f32 %v845, 1.442695
        %v847 = vpow.pop %v846
        %v848 = vsel %vm841, %v847, 0.0
        %849 = vadd.xlane.f32.xlu0 %v848
        %v850 = vpop.xlane.xlu0 %849
        %v851 = vrcp.pop %v850
        %v852 = vmul.f32 %v847, %v851
        %853 = vrot.lane.b32.xlu0 %v752, 64
        %v854 = vpop.permute.xlu0 %853
        %v857 = vsel %vm841, %v852, 0
        %859 = vmatprep.subr.mxu0 0.0
        %860 = vmatpush1.msra.mxu0 %v854
        %861 = vmatprep.subr.mxu0 0.0
        %862 = vmatpush1.msra.mxu0 0.0
        %863 = vmatprep.subr.mxu0 0.0
        %864 = vmatpush1.msra.mxu0 0.0
        %865 = vmatprep.subr.mxu0 0.0
        %866 = vmatpush1.msra.mxu0 0.0
        %867 = vmatprep.subr.mxu0 0.0
        %868 = vmatpush1.msra.mxu0 0.0
        %869 = vmatprep.subr.mxu0 0.0
        %870 = vmatpush1.msra.mxu0 0.0
        %871 = vmatprep.subr.mxu0 0.0
        %872 = vmatpush1.msra.mxu0 0.0
        %873 = vmatprep.subr.mxu0 0.0
        %874 = vmatpush1.msra.mxu0 0.0
        %875 = vmatprep.subr.mxu0 0.0
        %876 = vmatpush1.msra.mxu0 0.0
        %877 = vmatprep.subr.mxu0 0.0
        %878 = vmatpush1.msra.mxu0 0.0
        %879 = vmatprep.subr.mxu0 0.0
        %880 = vmatpush1.msra.mxu0 0.0
        %881 = vmatprep.subr.mxu0 0.0
        %882 = vmatpush1.msra.mxu0 0.0
        %883 = vmatprep.subr.mxu0 0.0
        %884 = vmatpush1.msra.mxu0 0.0
        %885 = vmatprep.subr.mxu0 0.0
        %886 = vmatpush1.msra.mxu0 0.0
        %887 = vmatprep.subr.mxu0 0.0
        %888 = vmatpush1.msra.mxu0 0.0
        %889 = vmatprep.subr.mxu0 0.0
        %890 = vmatpush1.msra.mxu0 0.0
        %891 = vmatprep.subr.mxu0 0.0
        %892 = vmatpush1.msra.mxu0 0.0
        %893 = vmatprep.subr.mxu0 0.0
        %894 = vmatpush1.msra.mxu0 0.0
        %895 = vmatprep.subr.mxu0 0.0
        %896 = vmatpush1.msra.mxu0 0.0
        %897 = vmatprep.subr.mxu0 0.0
        %898 = vmatpush1.msra.mxu0 0.0
        %899 = vmatprep.subr.mxu0 0.0
        %900 = vmatpush1.msra.mxu0 0.0
        %901 = vmatprep.subr.mxu0 0.0
        %902 = vmatpush1.msra.mxu0 0.0
        %903 = vmatprep.subr.mxu0 0.0
        %904 = vmatpush1.msra.mxu0 0.0
        %905 = vmatprep.subr.mxu0 0.0
        %906 = vmatpush1.msra.mxu0 0.0
        %907 = vmatprep.subr.mxu0 0.0
        %908 = vmatpush1.msra.mxu0 0.0
        %909 = vmatprep.subr.mxu0 0.0
        %910 = vmatpush1.msra.mxu0 0.0
        %911 = vmatprep.subr.mxu0 0.0
        %912 = vmatpush1.msra.mxu0 0.0
        %913 = vmatprep.subr.mxu0 0.0
        %914 = vmatpush1.msra.mxu0 0.0
        %915 = vmatprep.subr.mxu0 0.0
        %916 = vmatpush1.msra.mxu0 0.0
        %917 = vmatprep.subr.mxu0 0.0
        %918 = vmatpush1.msra.mxu0 0.0
        %919 = vmatprep.subr.mxu0 0.0
        %920 = vmatpush1.msra.mxu0 0.0
        %921 = vmatprep.subr.mxu0 0.0
        %922 = vmatpush1.msra.mxu0 0.0
        %923 = vmatprep.mubr.f32.mxu0 0.0
        %924 = vmatmul.mubr.f32.gmra.mrb[0].mxu0 %v857
        %v925 = vpop.f32.mrb[0].mxu0
        %v926 = vadd.f32 0.0, %v925
        %v927 = vpop.f32.mrb[0].mxu0
        %928 = vdwg.mxu0
        %v929 = vld [vmem:[%s6] sm:$0xff]
        %v930 = vld [vmem:[%s6 + $0x8] sm:$0xff]
        %v931 = vld [vmem:[%s6 + $0x10] sm:$0xff]
        %v932 = vld [vmem:[%s6 + $0x18] sm:$0xff]
        %933 = vrot.lane.b32.xlu0 %v752, 112
        %v934 = vpop.permute.xlu0 %933
        %935 = vrot.lane.b32.xlu0 %v752, 80
        %v936 = vpop.permute.xlu0 %935
        %v937 = vsel %vm758, %v934, 0
        %v939 = vsel %vm758, %v936, 0
        %941 = vmatprep.subr.mxu0 0.0
        %942 = vmatpush1.xpose.msra.mxu0 %v939
        %943 = vmatprep.subr.mxu0 0.0
        %944 = vmatpush1.xpose.msra.mxu0 0.0
        %945 = vmatprep.subr.mxu0 0.0
        %946 = vmatpush1.xpose.msra.mxu0 0.0
        %947 = vmatprep.subr.mxu0 0.0
        %948 = vmatpush1.xpose.msra.mxu0 0.0
        %949 = vmatprep.subr.mxu0 0.0
        %950 = vmatpush1.xpose.msra.mxu0 0.0
        %951 = vmatprep.subr.mxu0 0.0
        %952 = vmatpush1.xpose.msra.mxu0 0.0
        %953 = vmatprep.subr.mxu0 0.0
        %954 = vmatpush1.xpose.msra.mxu0 0.0
        %955 = vmatprep.subr.mxu0 0.0
        %956 = vmatpush1.xpose.msra.mxu0 0.0
        %957 = vmatprep.subr.mxu0 0.0
        %958 = vmatpush1.xpose.msra.mxu0 0.0
        %959 = vmatprep.subr.mxu0 0.0
        %960 = vmatpush1.xpose.msra.mxu0 0.0
        %961 = vmatprep.subr.mxu0 0.0
        %962 = vmatpush1.xpose.msra.mxu0 0.0
        %963 = vmatprep.subr.mxu0 0.0
        %964 = vmatpush1.xpose.msra.mxu0 0.0
        %965 = vmatprep.subr.mxu0 0.0
        %966 = vmatpush1.xpose.msra.mxu0 0.0
        %967 = vmatprep.subr.mxu0 0.0
        %968 = vmatpush1.xpose.msra.mxu0 0.0
        %969 = vmatprep.subr.mxu0 0.0
        %970 = vmatpush1.xpose.msra.mxu0 0.0
        %971 = vmatprep.subr.mxu0 0.0
        %972 = vmatpush1.xpose.msra.mxu0 0.0
        %973 = vmatprep.subr.mxu0 0.0
        %974 = vmatpush1.xpose.msra.mxu0 0.0
        %975 = vmatprep.subr.mxu0 0.0
        %976 = vmatpush1.xpose.msra.mxu0 0.0
        %977 = vmatprep.subr.mxu0 0.0
        %978 = vmatpush1.xpose.msra.mxu0 0.0
        %979 = vmatprep.subr.mxu0 0.0
        %980 = vmatpush1.xpose.msra.mxu0 0.0
        %981 = vmatprep.subr.mxu0 0.0
        %982 = vmatpush1.xpose.msra.mxu0 0.0
        %983 = vmatprep.subr.mxu0 0.0
        %984 = vmatpush1.xpose.msra.mxu0 0.0
        %985 = vmatprep.subr.mxu0 0.0
        %986 = vmatpush1.xpose.msra.mxu0 0.0
        %987 = vmatprep.subr.mxu0 0.0
        %988 = vmatpush1.xpose.msra.mxu0 0.0
        %989 = vmatprep.subr.mxu0 0.0
        %990 = vmatpush1.xpose.msra.mxu0 0.0
        %991 = vmatprep.subr.mxu0 0.0
        %992 = vmatpush1.xpose.msra.mxu0 0.0
        %993 = vmatprep.subr.mxu0 0.0
        %994 = vmatpush1.xpose.msra.mxu0 0.0
        %995 = vmatprep.subr.mxu0 0.0
        %996 = vmatpush1.xpose.msra.mxu0 0.0
        %997 = vmatprep.subr.mxu0 0.0
        %998 = vmatpush1.xpose.msra.mxu0 0.0
        %999 = vmatprep.subr.mxu0 0.0
        %1000 = vmatpush1.xpose.msra.mxu0 0.0
        %1001 = vmatprep.subr.mxu0 0.0
        %1002 = vmatpush1.xpose.msra.mxu0 0.0
        %1003 = vmatprep.subr.mxu0 0.0
        %1004 = vmatpush1.xpose.msra.mxu0 0.0
        %1005 = vmatprep.mubr.f32.mxu0 0.0
        %1006 = vmatmul.mubr.f32.gmra.mrb[0].mxu0 %v937
        %v1007 = vpop.f32.mrb[0].mxu0
        %v1008 = vadd.f32 0.0, %v1007
        %v1009 = vpop.f32.mrb[0].mxu0
        %1010 = vdwg.mxu0
        %v1011 = vmul.f32 %v1008, 0.25
        %v1012 = vadd.f32 %v1011, %v838
        %v1013 = vsel %vm841, %v1012, -inf
        %1014 = vmax.xlane.f32.xlu0 %v1013
        %v1015 = vpop.xlane.xlu0 %1014
        %v1016 = vsub.f32 %v1012, %v1015
        %v1017 = vmul.f32 %v1016, 1.442695
        %v1018 = vpow.pop %v1017
        %v1019 = vsel %vm841, %v1018, 0.0
        %1020 = vadd.xlane.f32.xlu0 %v1019
        %v1021 = vpop.xlane.xlu0 %1020
        %v1022 = vrcp.pop %v1021
        %v1023 = vmul.f32 %v1018, %v1022
        %1024 = vrot.lane.b32.xlu0 %v752, 48
        %v1025 = vpop.permute.xlu0 %1024
        %v1028 = vsel %vm841, %v1023, 0
        %1030 = vmatprep.subr.mxu0 0.0
        %1031 = vmatpush1.msra.mxu0 %v1025
        %1032 = vmatprep.subr.mxu0 0.0
        %1033 = vmatpush1.msra.mxu0 0.0
        %1034 = vmatprep.subr.mxu0 0.0
        %1035 = vmatpush1.msra.mxu0 0.0
        %1036 = vmatprep.subr.mxu0 0.0
        %1037 = vmatpush1.msra.mxu0 0.0
        %1038 = vmatprep.subr.mxu0 0.0
        %1039 = vmatpush1.msra.mxu0 0.0
        %1040 = vmatprep.subr.mxu0 0.0
        %1041 = vmatpush1.msra.mxu0 0.0
        %1042 = vmatprep.subr.mxu0 0.0
        %1043 = vmatpush1.msra.mxu0 0.0
        %1044 = vmatprep.subr.mxu0 0.0
        %1045 = vmatpush1.msra.mxu0 0.0
        %1046 = vmatprep.subr.mxu0 0.0
        %1047 = vmatpush1.msra.mxu0 0.0
        %1048 = vmatprep.subr.mxu0 0.0
        %1049 = vmatpush1.msra.mxu0 0.0
        %1050 = vmatprep.subr.mxu0 0.0
        %1051 = vmatpush1.msra.mxu0 0.0
        %1052 = vmatprep.subr.mxu0 0.0
        %1053 = vmatpush1.msra.mxu0 0.0
        %1054 = vmatprep.subr.mxu0 0.0
        %1055 = vmatpush1.msra.mxu0 0.0
        %1056 = vmatprep.subr.mxu0 0.0
        %1057 = vmatpush1.msra.mxu0 0.0
        %1058 = vmatprep.subr.mxu0 0.0
        %1059 = vmatpush1.msra.mxu0 0.0
        %1060 = vmatprep.subr.mxu0 0.0
        %1061 = vmatpush1.msra.mxu0 0.0
        %1062 = vmatprep.subr.mxu0 0.0
        %1063 = vmatpush1.msra.mxu0 0.0
        %1064 = vmatprep.subr.mxu0 0.0
        %1065 = vmatpush1.msra.mxu0 0.0
        %1066 = vmatprep.subr.mxu0 0.0
        %1067 = vmatpush1.msra.mxu0 0.0
        %1068 = vmatprep.subr.mxu0 0.0
        %1069 = vmatpush1.msra.mxu0 0.0
        %1070 = vmatprep.subr.mxu0 0.0
        %1071 = vmatpush1.msra.mxu0 0.0
        %1072 = vmatprep.subr.mxu0 0.0
        %1073 = vmatpush1.msra.mxu0 0.0
        %1074 = vmatprep.subr.mxu0 0.0
        %1075 = vmatpush1.msra.mxu0 0.0
        %1076 = vmatprep.subr.mxu0 0.0
        %1077 = vmatpush1.msra.mxu0 0.0
        %1078 = vmatprep.subr.mxu0 0.0
        %1079 = vmatpush1.msra.mxu0 0.0
        %1080 = vmatprep.subr.mxu0 0.0
        %1081 = vmatpush1.msra.mxu0 0.0
        %1082 = vmatprep.subr.mxu0 0.0
        %1083 = vmatpush1.msra.mxu0 0.0
        %1084 = vmatprep.subr.mxu0 0.0
        %1085 = vmatpush1.msra.mxu0 0.0
        %1086 = vmatprep.subr.mxu0 0.0
        %1087 = vmatpush1.msra.mxu0 0.0
        %1088 = vmatprep.subr.mxu0 0.0
        %1089 = vmatpush1.msra.mxu0 0.0
        %1090 = vmatprep.subr.mxu0 0.0
        %1091 = vmatpush1.msra.mxu0 0.0
        %1092 = vmatprep.subr.mxu0 0.0
        %1093 = vmatpush1.msra.mxu0 0.0
        %1094 = vmatprep.mubr.f32.mxu0 0.0
        %1095 = vmatmul.mubr.f32.gmra.mrb[0].mxu0 %v1028
        %v1096 = vpop.f32.mrb[0].mxu0
        %v1097 = vadd.f32 0.0, %v1096
        %v1098 = vpop.f32.mrb[0].mxu0
        %1099 = vdwg.mxu0
        %v1101 = vsel %vm758, %v1097, 0
        %1103 = vmatprep.subr.mxu0 0.0
        %1104 = vmatpush1.msra.mxu0 %v931
        %1105 = vmatprep.subr.mxu0 0.0
        %1106 = vmatpush1.msra.mxu0 %v932
        %1107 = vmatprep.subr.mxu0 0.0
        %1108 = vmatpush1.msra.mxu0 0.0
        %1109 = vmatprep.subr.mxu0 0.0
        %1110 = vmatpush1.msra.mxu0 0.0
        %1111 = vmatprep.subr.mxu0 0.0
        %1112 = vmatpush1.msra.mxu0 0.0
        %1113 = vmatprep.subr.mxu0 0.0
        %1114 = vmatpush1.msra.mxu0 0.0
        %1115 = vmatprep.subr.mxu0 0.0
        %1116 = vmatpush1.msra.mxu0 0.0
        %1117 = vmatprep.subr.mxu0 0.0
        %1118 = vmatpush1.msra.mxu0 0.0
        %1119 = vmatprep.subr.mxu0 0.0
        %1120 = vmatpush1.msra.mxu0 0.0
        %1121 = vmatprep.subr.mxu0 0.0
        %1122 = vmatpush1.msra.mxu0 0.0
        %1123 = vmatprep.subr.mxu0 0.0
        %1124 = vmatpush1.msra.mxu0 0.0
        %1125 = vmatprep.subr.mxu0 0.0
        %1126 = vmatpush1.msra.mxu0 0.0
        %1127 = vmatprep.subr.mxu0 0.0
        %1128 = vmatpush1.msra.mxu0 0.0
        %1129 = vmatprep.subr.mxu0 0.0
        %1130 = vmatpush1.msra.mxu0 0.0
        %1131 = vmatprep.subr.mxu0 0.0
        %1132 = vmatpush1.msra.mxu0 0.0
        %1133 = vmatprep.subr.mxu0 0.0
        %1134 = vmatpush1.msra.mxu0 0.0
        %1135 = vmatprep.subr.mxu0 0.0
        %1136 = vmatpush1.msra.mxu0 0.0
        %1137 = vmatprep.subr.mxu0 0.0
        %1138 = vmatpush1.msra.mxu0 0.0
        %1139 = vmatprep.subr.mxu0 0.0
        %1140 = vmatpush1.msra.mxu0 0.0
        %1141 = vmatprep.subr.mxu0 0.0
        %1142 = vmatpush1.msra.mxu0 0.0
        %1143 = vmatprep.subr.mxu0 0.0
        %1144 = vmatpush1.msra.mxu0 0.0
        %1145 = vmatprep.subr.mxu0 0.0
        %1146 = vmatpush1.msra.mxu0 0.0
        %1147 = vmatprep.subr.mxu0 0.0
        %1148 = vmatpush1.msra.mxu0 0.0
        %1149 = vmatprep.subr.mxu0 0.0
        %1150 = vmatpush1.msra.mxu0 0.0
        %1151 = vmatprep.subr.mxu0 0.0
        %1152 = vmatpush1.msra.mxu0 0.0
        %1153 = vmatprep.subr.mxu0 0.0
        %1154 = vmatpush1.msra.mxu0 0.0
        %1155 = vmatprep.subr.mxu0 0.0
        %1156 = vmatpush1.msra.mxu0 0.0
        %1157 = vmatprep.subr.mxu0 0.0
        %1158 = vmatpush1.msra.mxu0 0.0
        %1159 = vmatprep.subr.mxu0 0.0
        %1160 = vmatpush1.msra.mxu0 0.0
        %1161 = vmatprep.subr.mxu0 0.0
        %1162 = vmatpush1.msra.mxu0 0.0
        %1163 = vmatprep.subr.mxu0 0.0
        %1164 = vmatpush1.msra.mxu0 0.0
        %1165 = vmatprep.subr.mxu0 0.0
        %1166 = vmatpush1.msra.mxu0 0.0
        %1167 = vmatprep.mubr.f32.mxu0 0.0
        %1168 = vmatmul.mubr.f32.gmra.mrb[0].mxu0 %v1101
        %v1169 = vpop.f32.mrb[0].mxu0
        %v1170 = vadd.f32 0.0, %v1169
        %v1171 = vpop.f32.mrb[0].mxu0
        %1172 = vdwg.mxu0
        %v1174 = vsel %vm758, %v926, 0
        %1176 = vmatprep.subr.mxu0 0.0
        %1177 = vmatpush1.msra.mxu0 %v929
        %1178 = vmatprep.subr.mxu0 0.0
        %1179 = vmatpush1.msra.mxu0 %v930
        %1180 = vmatprep.subr.mxu0 0.0
        %1181 = vmatpush1.msra.mxu0 0.0
        %1182 = vmatprep.subr.mxu0 0.0
        %1183 = vmatpush1.msra.mxu0 0.0
        %1184 = vmatprep.subr.mxu0 0.0
        %1185 = vmatpush1.msra.mxu0 0.0
        %1186 = vmatprep.subr.mxu0 0.0
        %1187 = vmatpush1.msra.mxu0 0.0
        %1188 = vmatprep.subr.mxu0 0.0
        %1189 = vmatpush1.msra.mxu0 0.0
        %1190 = vmatprep.subr.mxu0 0.0
        %1191 = vmatpush1.msra.mxu0 0.0
        %1192 = vmatprep.subr.mxu0 0.0
        %1193 = vmatpush1.msra.mxu0 0.0
        %1194 = vmatprep.subr.mxu0 0.0
        %1195 = vmatpush1.msra.mxu0 0.0
        %1196 = vmatprep.subr.mxu0 0.0
        %1197 = vmatpush1.msra.mxu0 0.0
        %1198 = vmatprep.subr.mxu0 0.0
        %1199 = vmatpush1.msra.mxu0 0.0
        %1200 = vmatprep.subr.mxu0 0.0
        %1201 = vmatpush1.msra.mxu0 0.0
        %1202 = vmatprep.subr.mxu0 0.0
        %1203 = vmatpush1.msra.mxu0 0.0
        %1204 = vmatprep.subr.mxu0 0.0
        %1205 = vmatpush1.msra.mxu0 0.0
        %1206 = vmatprep.subr.mxu0 0.0
        %1207 = vmatpush1.msra.mxu0 0.0
        %1208 = vmatprep.subr.mxu0 0.0
        %1209 = vmatpush1.msra.mxu0 0.0
        %1210 = vmatprep.subr.mxu0 0.0
        %1211 = vmatpush1.msra.mxu0 0.0
        %1212 = vmatprep.subr.mxu0 0.0
        %1213 = vmatpush1.msra.mxu0 0.0
        %1214 = vmatprep.subr.mxu0 0.0
        %1215 = vmatpush1.msra.mxu0 0.0
        %1216 = vmatprep.subr.mxu0 0.0
        %1217 = vmatpush1.msra.mxu0 0.0
        %1218 = vmatprep.subr.mxu0 0.0
        %1219 = vmatpush1.msra.mxu0 0.0
        %1220 = vmatprep.subr.mxu0 0.0
        %1221 = vmatpush1.msra.mxu0 0.0
        %1222 = vmatprep.subr.mxu0 0.0
        %1223 = vmatpush1.msra.mxu0 0.0
        %1224 = vmatprep.subr.mxu0 0.0
        %1225 = vmatpush1.msra.mxu0 0.0
        %1226 = vmatprep.subr.mxu0 0.0
        %1227 = vmatpush1.msra.mxu0 0.0
        %1228 = vmatprep.subr.mxu0 0.0
        %1229 = vmatpush1.msra.mxu0 0.0
        %1230 = vmatprep.subr.mxu0 0.0
        %1231 = vmatpush1.msra.mxu0 0.0
        %1232 = vmatprep.subr.mxu0 0.0
        %1233 = vmatpush1.msra.mxu0 0.0
        %1234 = vmatprep.subr.mxu0 0.0
        %1235 = vmatpush1.msra.mxu0 0.0
        %1236 = vmatprep.subr.mxu0 0.0
        %1237 = vmatpush1.msra.mxu0 0.0
        %1238 = vmatprep.subr.mxu0 0.0
        %1239 = vmatpush1.msra.mxu0 0.0
        %1240 = vmatprep.mubr.f32.mxu0 0.0
        %1241 = vmatmul.mubr.f32.gmra.mrb[0].mxu0 %v1174
        %v1242 = vpop.f32.mrb[0].mxu0
        %v1243 = vadd.f32 %v1170, %v1242
        %v1244 = vpop.f32.mrb[0].mxu0
        %1245 = vdwg.mxu0
        %v1246 = vld [vmem:[%s7] sm:$0x1]
        %v1248 = vlaneseq
        %v1249 = vshrl.u32 %v1248, 7
        %v1250 = vsub.s32 0, %v1249
        %v1251 = vrot.slane %v1246, %v1250
        %v1253 = vadd.f32 %v1243, %v1251
        %v1254 = vadd.f32 %v669, %v1253
        %v1255 = vld [vmem:[%s8] sm:$0x1]
        %v1256 = vld [vmem:[%s9] sm:$0x1]
        %v1257 = vsel %vm641, %v1254, 0.0
        %1258 = vadd.xlane.f32.xlu0 %v1257
        %v1259 = vpop.xlane.xlu0 %1258
        %v1260 = vmul.f32 %v1259, %v645
        %v1261 = vsub.f32 %v1254, %v1260
        %v1262 = vmul.f32 %v1261, %v1261
        %v1263 = vsel %vm641, %v1262, 0.0
        %1264 = vadd.xlane.f32.xlu0 %v1263
        %v1265 = vpop.xlane.xlu0 %1264
        %v1266 = vmul.f32 %v1265, %v645
        %v1267 = vadd.f32 %v1266, 1e-12
        %v1268 = vrsqrt.pop %v1267
        %v1269 = vmul.f32 %v1261, %v1268
        %v1271 = vlaneseq
        %v1272 = vshrl.u32 %v1271, 7
        %v1273 = vsub.s32 0, %v1272
        %v1274 = vrot.slane %v1255, %v1273
        %v1276 = vmul.f32 %v1269, %v1274
        %v1278 = vlaneseq
        %v1279 = vshrl.u32 %v1278, 7
        %v1280 = vsub.s32 0, %v1279
        %v1281 = vrot.slane %v1256, %v1280
        %v1283 = vadd.f32 %v1276, %v1281
        %v1284 = vld [vmem:[%s10] sm:$0xff]
        %v1285 = vld [vmem:[%s10 + $0x8] sm:$0xff]
        %v1286 = vld [vmem:[%s10 + $0x10] sm:$0xff]
        %v1287 = vld [vmem:[%s10 + $0x18] sm:$0xff]
        %v1288 = vld [vmem:[%s11] sm:$0x1]
        %v1290 = vlaneseq
        %v1291 = vshrl.u32 %v1290, 7
        %v1292 = vsub.s32 0, %v1291
        %v1293 = vrot.slane %v1288, %v1292
        %v1296 = vsel %vm641, %v1283, 0
        %1298 = vmatprep.subr.mxu0 0.0
        %1299 = vmatpush1.msra.mxu0 %v1284
        %1300 = vmatprep.subr.mxu0 0.0
        %1301 = vmatpush1.msra.mxu0 %v1285
        %1302 = vmatprep.subr.mxu0 0.0
        %1303 = vmatpush1.msra.mxu0 %v1286
        %1304 = vmatprep.subr.mxu0 0.0
        %1305 = vmatpush1.msra.mxu0 %v1287
        %1306 = vmatprep.subr.mxu0 0.0
        %1307 = vmatpush1.msra.mxu0 0.0
        %1308 = vmatprep.subr.mxu0 0.0
        %1309 = vmatpush1.msra.mxu0 0.0
        %1310 = vmatprep.subr.mxu0 0.0
        %1311 = vmatpush1.msra.mxu0 0.0
        %1312 = vmatprep.subr.mxu0 0.0
        %1313 = vmatpush1.msra.mxu0 0.0
        %1314 = vmatprep.subr.mxu0 0.0
        %1315 = vmatpush1.msra.mxu0 0.0
        %1316 = vmatprep.subr.mxu0 0.0
        %1317 = vmatpush1.msra.mxu0 0.0
        %1318 = vmatprep.subr.mxu0 0.0
        %1319 = vmatpush1.msra.mxu0 0.0
        %1320 = vmatprep.subr.mxu0 0.0
        %1321 = vmatpush1.msra.mxu0 0.0
        %1322 = vmatprep.subr.mxu0 0.0
        %1323 = vmatpush1.msra.mxu0 0.0
        %1324 = vmatprep.subr.mxu0 0.0
        %1325 = vmatpush1.msra.mxu0 0.0
        %1326 = vmatprep.subr.mxu0 0.0
        %1327 = vmatpush1.msra.mxu0 0.0
        %1328 = vmatprep.subr.mxu0 0.0
        %1329 = vmatpush1.msra.mxu0 0.0
        %1330 = vmatprep.subr.mxu0 0.0
        %1331 = vmatpush1.msra.mxu0 0.0
        %1332 = vmatprep.subr.mxu0 0.0
        %1333 = vmatpush1.msra.mxu0 0.0
        %1334 = vmatprep.subr.mxu0 0.0
        %1335 = vmatpush1.msra.mxu0 0.0
        %1336 = vmatprep.subr.mxu0 0.0
        %1337 = vmatpush1.msra.mxu0 0.0
        %1338 = vmatprep.subr.mxu0 0.0
        %1339 = vmatpush1.msra.mxu0 0.0
        %1340 = vmatprep.subr.mxu0 0.0
        %1341 = vmatpush1.msra.mxu0 0.0
        %1342 = vmatprep.subr.mxu0 0.0
        %1343 = vmatpush1.msra.mxu0 0.0
        %1344 = vmatprep.subr.mxu0 0.0
        %1345 = vmatpush1.msra.mxu0 0.0
        %1346 = vmatprep.subr.mxu0 0.0
        %1347 = vmatpush1.msra.mxu0 0.0
        %1348 = vmatprep.subr.mxu0 0.0
        %1349 = vmatpush1.msra.mxu0 0.0
        %1350 = vmatprep.subr.mxu0 0.0
        %1351 = vmatpush1.msra.mxu0 0.0
        %1352 = vmatprep.subr.mxu0 0.0
        %1353 = vmatpush1.msra.mxu0 0.0
        %1354 = vmatprep.subr.mxu0 0.0
        %1355 = vmatpush1.msra.mxu0 0.0
        %1356 = vmatprep.subr.mxu0 0.0
        %1357 = vmatpush1.msra.mxu0 0.0
        %1358 = vmatprep.subr.mxu0 0.0
        %1359 = vmatpush1.msra.mxu0 0.0
        %1360 = vmatprep.subr.mxu0 0.0
        %1361 = vmatpush1.msra.mxu0 0.0
        %1362 = vmatprep.mubr.f32.mxu0 0.0
        %1363 = vmatmul.mubr.f32.gmra.mrb[0].mxu0 %v1296
        %v1364 = vpop.f32.mrb[0].mxu0
        %v1365 = vadd.f32 %v1293, %v1364
        %v1366 = vpop.f32.mrb[0].mxu0
        %1367 = vdwg.mxu0
        %v1368 = vmul.f32 %v1365, 0.5
        %v1369 = vmul.f32 %v1365, 0.70710677
        %v1370 = verf.f32.pop %v1369
        %v1371 = vadd.f32 %v1370, 1.0
        %v1372 = vmul.f32 %v1368, %v1371
        %v1373 = vld [vmem:[%s12] sm:$0xff]
        %v1374 = vld [vmem:[%s12 + $0x8] sm:$0xff]
        %v1375 = vld [vmem:[%s12 + $0x10] sm:$0xff]
        %v1376 = vld [vmem:[%s12 + $0x18] sm:$0xff]
        %v1377 = vld [vmem:[%s12 + $0x20] sm:$0xff]
        %v1378 = vld [vmem:[%s12 + $0x28] sm:$0xff]
        %v1379 = vld [vmem:[%s12 + $0x30] sm:$0xff]
        %v1380 = vld [vmem:[%s12 + $0x38] sm:$0xff]
        %v1381 = vld [vmem:[%s13] sm:$0x1]
        %v1383 = vlaneseq
        %v1384 = vshrl.u32 %v1383, 7
        %v1385 = vsub.s32 0, %v1384
        %v1386 = vrot.slane %v1381, %v1385
        %vm1388 = vcmask 523264
        %v1390 = vsel %vm1388, %v1372, 0
        %1392 = vmatprep.subr.mxu0 0.0
        %1393 = vmatpush1.msra.mxu0 %v1373
        %1394 = vmatprep.subr.mxu0 0.0
        %1395 = vmatpush1.msra.mxu0 %v1374
        %1396 = vmatprep.subr.mxu0 0.0
        %1397 = vmatpush1.msra.mxu0 %v1375
        %1398 = vmatprep.subr.mxu0 0.0
        %1399 = vmatpush1.msra.mxu0 %v1376
        %1400 = vmatprep.subr.mxu0 0.0
        %1401 = vmatpush1.msra.mxu0 %v1377
        %1402 = vmatprep.subr.mxu0 0.0
        %1403 = vmatpush1.msra.mxu0 %v1378
        %1404 = vmatprep.subr.mxu0 0.0
        %1405 = vmatpush1.msra.mxu0 %v1379
        %1406 = vmatprep.subr.mxu0 0.0
        %1407 = vmatpush1.msra.mxu0 %v1380
        %1408 = vmatprep.subr.mxu0 0.0
        %1409 = vmatpush1.msra.mxu0 0.0
        %1410 = vmatprep.subr.mxu0 0.0
        %1411 = vmatpush1.msra.mxu0 0.0
        %1412 = vmatprep.subr.mxu0 0.0
        %1413 = vmatpush1.msra.mxu0 0.0
        %1414 = vmatprep.subr.mxu0 0.0
        %1415 = vmatpush1.msra.mxu0 0.0
        %1416 = vmatprep.subr.mxu0 0.0
        %1417 = vmatpush1.msra.mxu0 0.0
        %1418 = vmatprep.subr.mxu0 0.0
        %1419 = vmatpush1.msra.mxu0 0.0
        %1420 = vmatprep.subr.mxu0 0.0
        %1421 = vmatpush1.msra.mxu0 0.0
        %1422 = vmatprep.subr.mxu0 0.0
        %1423 = vmatpush1.msra.mxu0 0.0
        %1424 = vmatprep.subr.mxu0 0.0
        %1425 = vmatpush1.msra.mxu0 0.0
        %1426 = vmatprep.subr.mxu0 0.0
        %1427 = vmatpush1.msra.mxu0 0.0
        %1428 = vmatprep.subr.mxu0 0.0
        %1429 = vmatpush1.msra.mxu0 0.0
        %1430 = vmatprep.subr.mxu0 0.0
        %1431 = vmatpush1.msra.mxu0 0.0
        %1432 = vmatprep.subr.mxu0 0.0
        %1433 = vmatpush1.msra.mxu0 0.0
        %1434 = vmatprep.subr.mxu0 0.0
        %1435 = vmatpush1.msra.mxu0 0.0
        %1436 = vmatprep.subr.mxu0 0.0
        %1437 = vmatpush1.msra.mxu0 0.0
        %1438 = vmatprep.subr.mxu0 0.0
        %1439 = vmatpush1.msra.mxu0 0.0
        %1440 = vmatprep.subr.mxu0 0.0
        %1441 = vmatpush1.msra.mxu0 0.0
        %1442 = vmatprep.subr.mxu0 0.0
        %1443 = vmatpush1.msra.mxu0 0.0
        %1444 = vmatprep.subr.mxu0 0.0
        %1445 = vmatpush1.msra.mxu0 0.0
        %1446 = vmatprep.subr.mxu0 0.0
        %1447 = vmatpush1.msra.mxu0 0.0
        %1448 = vmatprep.subr.mxu0 0.0
        %1449 = vmatpush1.msra.mxu0 0.0
        %1450 = vmatprep.subr.mxu0 0.0
        %1451 = vmatpush1.msra.mxu0 0.0
        %1452 = vmatprep.subr.mxu0 0.0
        %1453 = vmatpush1.msra.mxu0 0.0
        %1454 = vmatprep.subr.mxu0 0.0
        %1455 = vmatpush1.msra.mxu0 0.0
        %1456 = vmatprep.mubr.f32.mxu0 0.0
        %1457 = vmatmul.mubr.f32.gmra.mrb[0].mxu0 %v1390
        %v1458 = vpop.f32.mrb[0].mxu0
        %v1459 = vadd.f32 %v1386, %v1458
        %v1460 = vpop.f32.mrb[0].mxu0
        %1461 = vdwg.mxu0
        %v1462 = vadd.f32 %v1283, %v1459
        %v1463 = vld [vmem:[%s14] sm:$0x1]
        %v1464 = vld [vmem:[%s15] sm:$0x1]
        %v1465 = vsel %vm641, %v1462, 0.0
        %1466 = vadd.xlane.f32.xlu0 %v1465
        %v1467 = vpop.xlane.xlu0 %1466
        %v1468 = vmul.f32 %v1467, %v645
        %v1469 = vsub.f32 %v1462, %v1468
        %v1470 = vmul.f32 %v1469, %v1469
        %v1471 = vsel %vm641, %v1470, 0.0
        %1472 = vadd.xlane.f32.xlu0 %v1471
        %v1473 = vpop.xlane.xlu0 %1472
        %v1474 = vmul.f32 %v1473, %v645
        %v1475 = vadd.f32 %v1474, 1e-12
        %v1476 = vrsqrt.pop %v1475
        %v1477 = vmul.f32 %v1469, %v1476
        %v1479 = vlaneseq
        %v1480 = vshrl.u32 %v1479, 7
        %v1481 = vsub.s32 0, %v1480
        %v1482 = vrot.slane %v1463, %v1481
        %v1484 = vmul.f32 %v1477, %v1482
        %v1486 = vlaneseq
        %v1487 = vshrl.u32 %v1486, 7
        %v1488 = vsub.s32 0, %v1487
        %v1489 = vrot.slane %v1464, %v1488
        %v1491 = vadd.f32 %v1484, %v1489
        %s1492 = scalar_lea.vmem %s4, 32
        %v1493 = vld [vmem:[%s1492] sm:$0xff]
        %v1494 = vld [vmem:[%s1492 + $0x8] sm:$0xff]
        %v1495 = vld [vmem:[%s1492 + $0x10] sm:$0xff]
        %v1496 = vld [vmem:[%s1492 + $0x18] sm:$0xff]
        %s1497 = scalar_lea.vmem %s5, 1
        %v1498 = vld [vmem:[%s1497] sm:$0x1]
        %v1500 = vlaneseq
        %v1501 = vshrl.u32 %v1500, 7
        %v1502 = vsub.s32 0, %v1501
        %v1503 = vrot.slane %v1498, %v1502
        %v1506 = vsel %vm641, %v1491, 0
        %1508 = vmatprep.subr.mxu0 0.0
        %1509 = vmatpush1.msra.mxu0 %v1493
        %1510 = vmatprep.subr.mxu0 0.0
        %1511 = vmatpush1.msra.mxu0 %v1494
        %1512 = vmatprep.subr.mxu0 0.0
        %1513 = vmatpush1.msra.mxu0 %v1495
        %1514 = vmatprep.subr.mxu0 0.0
        %1515 = vmatpush1.msra.mxu0 %v1496
        %1516 = vmatprep.subr.mxu0 0.0
        %1517 = vmatpush1.msra.mxu0 0.0
        %1518 = vmatprep.subr.mxu0 0.0
        %1519 = vmatpush1.msra.mxu0 0.0
        %1520 = vmatprep.subr.mxu0 0.0
        %1521 = vmatpush1.msra.mxu0 0.0
        %1522 = vmatprep.subr.mxu0 0.0
        %1523 = vmatpush1.msra.mxu0 0.0
        %1524 = vmatprep.subr.mxu0 0.0
        %1525 = vmatpush1.msra.mxu0 0.0
        %1526 = vmatprep.subr.mxu0 0.0
        %1527 = vmatpush1.msra.mxu0 0.0
        %1528 = vmatprep.subr.mxu0 0.0
        %1529 = vmatpush1.msra.mxu0 0.0
        %1530 = vmatprep.subr.mxu0 0.0
        %1531 = vmatpush1.msra.mxu0 0.0
        %1532 = vmatprep.subr.mxu0 0.0
        %1533 = vmatpush1.msra.mxu0 0.0
        %1534 = vmatprep.subr.mxu0 0.0
        %1535 = vmatpush1.msra.mxu0 0.0
        %1536 = vmatprep.subr.mxu0 0.0
        %1537 = vmatpush1.msra.mxu0 0.0
        %1538 = vmatprep.subr.mxu0 0.0
        %1539 = vmatpush1.msra.mxu0 0.0
        %1540 = vmatprep.subr.mxu0 0.0
        %1541 = vmatpush1.msra.mxu0 0.0
        %1542 = vmatprep.subr.mxu0 0.0
        %1543 = vmatpush1.msra.mxu0 0.0
        %1544 = vmatprep.subr.mxu0 0.0
        %1545 = vmatpush1.msra.mxu0 0.0
        %1546 = vmatprep.subr.mxu0 0.0
        %1547 = vmatpush1.msra.mxu0 0.0
        %1548 = vmatprep.subr.mxu0 0.0
        %1549 = vmatpush1.msra.mxu0 0.0
        %1550 = vmatprep.subr.mxu0 0.0
        %1551 = vmatpush1.msra.mxu0 0.0
        %1552 = vmatprep.subr.mxu0 0.0
        %1553 = vmatpush1.msra.mxu0 0.0
        %1554 = vmatprep.subr.mxu0 0.0
        %1555 = vmatpush1.msra.mxu0 0.0
        %1556 = vmatprep.subr.mxu0 0.0
        %1557 = vmatpush1.msra.mxu0 0.0
        %1558 = vmatprep.subr.mxu0 0.0
        %1559 = vmatpush1.msra.mxu0 0.0
        %1560 = vmatprep.subr.mxu0 0.0
        %1561 = vmatpush1.msra.mxu0 0.0
        %1562 = vmatprep.subr.mxu0 0.0
        %1563 = vmatpush1.msra.mxu0 0.0
        %1564 = vmatprep.subr.mxu0 0.0
        %1565 = vmatpush1.msra.mxu0 0.0
        %1566 = vmatprep.subr.mxu0 0.0
        %1567 = vmatpush1.msra.mxu0 0.0
        %1568 = vmatprep.subr.mxu0 0.0
        %1569 = vmatpush1.msra.mxu0 0.0
        %1570 = vmatprep.subr.mxu0 0.0
        %1571 = vmatpush1.msra.mxu0 0.0
        %1572 = vmatprep.mubr.f32.mxu0 0.0
        %1573 = vmatmul.mubr.f32.gmra.mrb[0].mxu0 %v1506
        %v1574 = vpop.f32.mrb[0].mxu0
        %v1575 = vadd.f32 %v1503, %v1574
        %v1576 = vpop.f32.mrb[0].mxu0
        %1577 = vdwg.mxu0
        %1579 = vrot.lane.b32.xlu0 %v1575, 96
        %v1580 = vpop.permute.xlu0 %1579
        %v1581 = vsel %vm758, %v1575, 0
        %v1583 = vsel %vm758, %v1580, 0
        %1585 = vmatprep.subr.mxu0 0.0
        %1586 = vmatpush1.xpose.msra.mxu0 %v1583
        %1587 = vmatprep.subr.mxu0 0.0
        %1588 = vmatpush1.xpose.msra.mxu0 0.0
        %1589 = vmatprep.subr.mxu0 0.0
        %1590 = vmatpush1.xpose.msra.mxu0 0.0
        %1591 = vmatprep.subr.mxu0 0.0
        %1592 = vmatpush1.xpose.msra.mxu0 0.0
        %1593 = vmatprep.subr.mxu0 0.0
        %1594 = vmatpush1.xpose.msra.mxu0 0.0
        %1595 = vmatprep.subr.mxu0 0.0
        %1596 = vmatpush1.xpose.msra.mxu0 0.0
        %1597 = vmatprep.subr.mxu0 0.0
        %1598 = vmatpush1.xpose.msra.mxu0 0.0
        %1599 = vmatprep.subr.mxu0 0.0
        %1600 = vmatpush1.xpose.msra.mxu0 0.0
        %1601 = vmatprep.subr.mxu0 0.0
        %1602 = vmatpush1.xpose.msra.mxu0 0.0
        %1603 = vmatprep.subr.mxu0 0.0
        %1604 = vmatpush1.xpose.msra.mxu0 0.0
        %1605 = vmatprep.subr.mxu0 0.0
        %1606 = vmatpush1.xpose.msra.mxu0 0.0
        %1607 = vmatprep.subr.mxu0 0.0
        %1608 = vmatpush1.xpose.msra.mxu0 0.0
        %1609 = vmatprep.subr.mxu0 0.0
        %1610 = vmatpush1.xpose.msra.mxu0 0.0
        %1611 = vmatprep.subr.mxu0 0.0
        %1612 = vmatpush1.xpose.msra.mxu0 0.0
        %1613 = vmatprep.subr.mxu0 0.0
        %1614 = vmatpush1.xpose.msra.mxu0 0.0
        %1615 = vmatprep.subr.mxu0 0.0
        %1616 = vmatpush1.xpose.msra.mxu0 0.0
        %1617 = vmatprep.subr.mxu0 0.0
        %1618 = vmatpush1.xpose.msra.mxu0 0.0
        %1619 = vmatprep.subr.mxu0 0.0
        %1620 = vmatpush1.xpose.msra.mxu0 0.0
        %1621 = vmatprep.subr.mxu0 0.0
        %1622 = vmatpush1.xpose.msra.mxu0 0.0
        %1623 = vmatprep.subr.mxu0 0.0
        %1624 = vmatpush1.xpose.msra.mxu0 0.0
        %1625 = vmatprep.subr.mxu0 0.0
        %1626 = vmatpush1.xpose.msra.mxu0 0.0
        %1627 = vmatprep.subr.mxu0 0.0
        %1628 = vmatpush1.xpose.msra.mxu0 0.0
        %1629 = vmatprep.subr.mxu0 0.0
        %1630 = vmatpush1.xpose.msra.mxu0 0.0
        %1631 = vmatprep.subr.mxu0 0.0
        %1632 = vmatpush1.xpose.msra.mxu0 0.0
        %1633 = vmatprep.subr.mxu0 0.0
        %1634 = vmatpush1.xpose.msra.mxu0 0.0
        %1635 = vmatprep.subr.mxu0 0.0
        %1636 = vmatpush1.xpose.msra.mxu0 0.0
        %1637 = vmatprep.subr.mxu0 0.0
        %1638 = vmatpush1.xpose.msra.mxu0 0.0
        %1639 = vmatprep.subr.mxu0 0.0
        %1640 = vmatpush1.xpose.msra.mxu0 0.0
        %1641 = vmatprep.subr.mxu0 0.0
        %1642 = vmatpush1.xpose.msra.mxu0 0.0
        %1643 = vmatprep.subr.mxu0 0.0
        %1644 = vmatpush1.xpose.msra.mxu0 0.0
        %1645 = vmatprep.subr.mxu0 0.0
        %1646 = vmatpush1.xpose.msra.mxu0 0.0
        %1647 = vmatprep.subr.mxu0 0.0
        %1648 = vmatpush1.xpose.msra.mxu0 0.0
        %1649 = vmatprep.mubr.f32.mxu0 0.0
        %1650 = vmatmul.mubr.f32.gmra.mrb[0].mxu0 %v1581
        %v1651 = vpop.f32.mrb[0].mxu0
        %v1652 = vadd.f32 0.0, %v1651
        %v1653 = vpop.f32.mrb[0].mxu0
        %1654 = vdwg.mxu0
        %v1655 = vmul.f32 %v1652, 0.25
        %v1656 = vadd.f32 %v1655, %v838
        %v1657 = vsel %vm841, %v1656, -inf
        %1658 = vmax.xlane.f32.xlu0 %v1657
        %v1659 = vpop.xlane.xlu0 %1658
        %v1660 = vsub.f32 %v1656, %v1659
        %v1661 = vmul.f32 %v1660, 1.442695
        %v1662 = vpow.pop %v1661
        %v1663 = vsel %vm841, %v1662, 0.0
        %1664 = vadd.xlane.f32.xlu0 %v1663
        %v1665 = vpop.xlane.xlu0 %1664
        %v1666 = vrcp.pop %v1665
        %v1667 = vmul.f32 %v1662, %v1666
        %1668 = vrot.lane.b32.xlu0 %v1575, 64
        %v1669 = vpop.permute.xlu0 %1668
        %v1672 = vsel %vm841, %v1667, 0
        %1674 = vmatprep.subr.mxu0 0.0
        %1675 = vmatpush1.msra.mxu0 %v1669
        %1676 = vmatprep.subr.mxu0 0.0
        %1677 = vmatpush1.msra.mxu0 0.0
        %1678 = vmatprep.subr.mxu0 0.0
        %1679 = vmatpush1.msra.mxu0 0.0
        %1680 = vmatprep.subr.mxu0 0.0
        %1681 = vmatpush1.msra.mxu0 0.0
        %1682 = vmatprep.subr.mxu0 0.0
        %1683 = vmatpush1.msra.mxu0 0.0
        %1684 = vmatprep.subr.mxu0 0.0
        %1685 = vmatpush1.msra.mxu0 0.0
        %1686 = vmatprep.subr.mxu0 0.0
        %1687 = vmatpush1.msra.mxu0 0.0
        %1688 = vmatprep.subr.mxu0 0.0
        %1689 = vmatpush1.msra.mxu0 0.0
        %1690 = vmatprep.subr.mxu0 0.0
        %1691 = vmatpush1.msra.mxu0 0.0
        %1692 = vmatprep.subr.mxu0 0.0
        %1693 = vmatpush1.msra.mxu0 0.0
        %1694 = vmatprep.subr.mxu0 0.0
        %1695 = vmatpush1.msra.mxu0 0.0
        %1696 = vmatprep.subr.mxu0 0.0
        %1697 = vmatpush1.msra.mxu0 0.0
        %1698 = vmatprep.subr.mxu0 0.0
        %1699 = vmatpush1.msra.mxu0 0.0
        %1700 = vmatprep.subr.mxu0 0.0
        %1701 = vmatpush1.msra.mxu0 0.0
        %1702 = vmatprep.subr.mxu0 0.0
        %1703 = vmatpush1.msra.mxu0 0.0
        %1704 = vmatprep.subr.mxu0 0.0
        %1705 = vmatpush1.msra.mxu0 0.0
        %1706 = vmatprep.subr.mxu0 0.0
        %1707 = vmatpush1.msra.mxu0 0.0
        %1708 = vmatprep.subr.mxu0 0.0
        %1709 = vmatpush1.msra.mxu0 0.0
        %1710 = vmatprep.subr.mxu0 0.0
        %1711 = vmatpush1.msra.mxu0 0.0
        %1712 = vmatprep.subr.mxu0 0.0
        %1713 = vmatpush1.msra.mxu0 0.0
        %1714 = vmatprep.subr.mxu0 0.0
        %1715 = vmatpush1.msra.mxu0 0.0
        %1716 = vmatprep.subr.mxu0 0.0
        %1717 = vmatpush1.msra.mxu0 0.0
        %1718 = vmatprep.subr.mxu0 0.0
        %1719 = vmatpush1.msra.mxu0 0.0
        %1720 = vmatprep.subr.mxu0 0.0
        %1721 = vmatpush1.msra.mxu0 0.0
        %1722 = vmatprep.subr.mxu0 0.0
        %1723 = vmatpush1.msra.mxu0 0.0
        %1724 = vmatprep.subr.mxu0 0.0
        %1725 = vmatpush1.msra.mxu0 0.0
        %1726 = vmatprep.subr.mxu0 0.0
        %1727 = vmatpush1.msra.mxu0 0.0
        %1728 = vmatprep.subr.mxu0 0.0
        %1729 = vmatpush1.msra.mxu0 0.0
        %1730 = vmatprep.subr.mxu0 0.0
        %1731 = vmatpush1.msra.mxu0 0.0
        %1732 = vmatprep.subr.mxu0 0.0
        %1733 = vmatpush1.msra.mxu0 0.0
        %1734 = vmatprep.subr.mxu0 0.0
        %1735 = vmatpush1.msra.mxu0 0.0
        %1736 = vmatprep.subr.mxu0 0.0
        %1737 = vmatpush1.msra.mxu0 0.0
        %1738 = vmatprep.mubr.f32.mxu0 0.0
        %1739 = vmatmul.mubr.f32.gmra.mrb[0].mxu0 %v1672
        %v1740 = vpop.f32.mrb[0].mxu0
        %v1741 = vadd.f32 0.0, %v1740
        %v1742 = vpop.f32.mrb[0].mxu0
        %1743 = vdwg.mxu0
        %s1744 = scalar_lea.vmem %s6, 32
        %v1745 = vld [vmem:[%s1744] sm:$0xff]
        %v1746 = vld [vmem:[%s1744 + $0x8] sm:$0xff]
        %v1747 = vld [vmem:[%s1744 + $0x10] sm:$0xff]
        %v1748 = vld [vmem:[%s1744 + $0x18] sm:$0xff]
        %1749 = vrot.lane.b32.xlu0 %v1575, 112
        %v1750 = vpop.permute.xlu0 %1749
        %1751 = vrot.lane.b32.xlu0 %v1575, 80
        %v1752 = vpop.permute.xlu0 %1751
        %v1753 = vsel %vm758, %v1750, 0
        %v1755 = vsel %vm758, %v1752, 0
        %1757 = vmatprep.subr.mxu0 0.0
        %1758 = vmatpush1.xpose.msra.mxu0 %v1755
        %1759 = vmatprep.subr.mxu0 0.0
        %1760 = vmatpush1.xpose.msra.mxu0 0.0
        %1761 = vmatprep.subr.mxu0 0.0
        %1762 = vmatpush1.xpose.msra.mxu0 0.0
        %1763 = vmatprep.subr.mxu0 0.0
        %1764 = vmatpush1.xpose.msra.mxu0 0.0
        %1765 = vmatprep.subr.mxu0 0.0
        %1766 = vmatpush1.xpose.msra.mxu0 0.0
        %1767 = vmatprep.subr.mxu0 0.0
        %1768 = vmatpush1.xpose.msra.mxu0 0.0
        %1769 = vmatprep.subr.mxu0 0.0
        %1770 = vmatpush1.xpose.msra.mxu0 0.0
        %1771 = vmatprep.subr.mxu0 0.0
        %1772 = vmatpush1.xpose.msra.mxu0 0.0
        %1773 = vmatprep.subr.mxu0 0.0
        %1774 = vmatpush1.xpose.msra.mxu0 0.0
        %1775 = vmatprep.subr.mxu0 0.0
        %1776 = vmatpush1.xpose.msra.mxu0 0.0
        %1777 = vmatprep.subr.mxu0 0.0
        %1778 = vmatpush1.xpose.msra.mxu0 0.0
        %1779 = vmatprep.subr.mxu0 0.0
        %1780 = vmatpush1.xpose.msra.mxu0 0.0
        %1781 = vmatprep.subr.mxu0 0.0
        %1782 = vmatpush1.xpose.msra.mxu0 0.0
        %1783 = vmatprep.subr.mxu0 0.0
        %1784 = vmatpush1.xpose.msra.mxu0 0.0
        %1785 = vmatprep.subr.mxu0 0.0
        %1786 = vmatpush1.xpose.msra.mxu0 0.0
        %1787 = vmatprep.subr.mxu0 0.0
        %1788 = vmatpush1.xpose.msra.mxu0 0.0
        %1789 = vmatprep.subr.mxu0 0.0
        %1790 = vmatpush1.xpose.msra.mxu0 0.0
        %1791 = vmatprep.subr.mxu0 0.0
        %1792 = vmatpush1.xpose.msra.mxu0 0.0
        %1793 = vmatprep.subr.mxu0 0.0
        %1794 = vmatpush1.xpose.msra.mxu0 0.0
        %1795 = vmatprep.subr.mxu0 0.0
        %1796 = vmatpush1.xpose.msra.mxu0 0.0
        %1797 = vmatprep.subr.mxu0 0.0
        %1798 = vmatpush1.xpose.msra.mxu0 0.0
        %1799 = vmatprep.subr.mxu0 0.0
        %1800 = vmatpush1.xpose.msra.mxu0 0.0
        %1801 = vmatprep.subr.mxu0 0.0
        %1802 = vmatpush1.xpose.msra.mxu0 0.0
        %1803 = vmatprep.subr.mxu0 0.0
        %1804 = vmatpush1.xpose.msra.mxu0 0.0
        %1805 = vmatprep.subr.mxu0 0.0
        %1806 = vmatpush1.xpose.msra.mxu0 0.0
        %1807 = vmatprep.subr.mxu0 0.0
        %1808 = vmatpush1.xpose.msra.mxu0 0.0
        %1809 = vmatprep.subr.mxu0 0.0
        %1810 = vmatpush1.xpose.msra.mxu0 0.0
        %1811 = vmatprep.subr.mxu0 0.0
        %1812 = vmatpush1.xpose.msra.mxu0 0.0
        %1813 = vmatprep.subr.mxu0 0.0
        %1814 = vmatpush1.xpose.msra.mxu0 0.0
        %1815 = vmatprep.subr.mxu0 0.0
        %1816 = vmatpush1.xpose.msra.mxu0 0.0
        %1817 = vmatprep.subr.mxu0 0.0
        %1818 = vmatpush1.xpose.msra.mxu0 0.0
        %1819 = vmatprep.subr.mxu0 0.0
        %1820 = vmatpush1.xpose.msra.mxu0 0.0
        %1821 = vmatprep.mubr.f32.mxu0 0.0
        %1822 = vmatmul.mubr.f32.gmra.mrb[0].mxu0 %v1753
        %v1823 = vpop.f32.mrb[0].mxu0
        %v1824 = vadd.f32 0.0, %v1823
        %v1825 = vpop.f32.mrb[0].mxu0
        %1826 = vdwg.mxu0
        %v1827 = vmul.f32 %v1824, 0.25
        %v1828 = vadd.f32 %v1827, %v838
        %v1829 = vsel %vm841, %v1828, -inf
        %1830 = vmax.xlane.f32.xlu0 %v1829
        %v1831 = vpop.xlane.xlu0 %1830
        %v1832 = vsub.f32 %v1828, %v1831
        %v1833 = vmul.f32 %v1832, 1.442695
        %v1834 = vpow.pop %v1833
        %v1835 = vsel %vm841, %v1834, 0.0
        %1836 = vadd.xlane.f32.xlu0 %v1835
        %v1837 = vpop.xlane.xlu0 %1836
        %v1838 = vrcp.pop %v1837
        %v1839 = vmul.f32 %v1834, %v1838
        %1840 = vrot.lane.b32.xlu0 %v1575, 48
        %v1841 = vpop.permute.xlu0 %1840
        %v1844 = vsel %vm841, %v1839, 0
        %1846 = vmatprep.subr.mxu0 0.0
        %1847 = vmatpush1.msra.mxu0 %v1841
        %1848 = vmatprep.subr.mxu0 0.0
        %1849 = vmatpush1.msra.mxu0 0.0
        %1850 = vmatprep.subr.mxu0 0.0
        %1851 = vmatpush1.msra.mxu0 0.0
        %1852 = vmatprep.subr.mxu0 0.0
        %1853 = vmatpush1.msra.mxu0 0.0
        %1854 = vmatprep.subr.mxu0 0.0
        %1855 = vmatpush1.msra.mxu0 0.0
        %1856 = vmatprep.subr.mxu0 0.0
        %1857 = vmatpush1.msra.mxu0 0.0
        %1858 = vmatprep.subr.mxu0 0.0
        %1859 = vmatpush1.msra.mxu0 0.0
        %1860 = vmatprep.subr.mxu0 0.0
        %1861 = vmatpush1.msra.mxu0 0.0
        %1862 = vmatprep.subr.mxu0 0.0
        %1863 = vmatpush1.msra.mxu0 0.0
        %1864 = vmatprep.subr.mxu0 0.0
        %1865 = vmatpush1.msra.mxu0 0.0
        %1866 = vmatprep.subr.mxu0 0.0
        %1867 = vmatpush1.msra.mxu0 0.0
        %1868 = vmatprep.subr.mxu0 0.0
        %1869 = vmatpush1.msra.mxu0 0.0
        %1870 = vmatprep.subr.mxu0 0.0
        %1871 = vmatpush1.msra.mxu0 0.0
        %1872 = vmatprep.subr.mxu0 0.0
        %1873 = vmatpush1.msra.mxu0 0.0
        %1874 = vmatprep.subr.mxu0 0.0
        %1875 = vmatpush1.msra.mxu0 0.0
        %1876 = vmatprep.subr.mxu0 0.0
        %1877 = vmatpush1.msra.mxu0 0.0
        %1878 = vmatprep.subr.mxu0 0.0
        %1879 = vmatpush1.msra.mxu0 0.0
        %1880 = vmatprep.subr.mxu0 0.0
        %1881 = vmatpush1.msra.mxu0 0.0
        %1882 = vmatprep.subr.mxu0 0.0
        %1883 = vmatpush1.msra.mxu0 0.0
        %1884 = vmatprep.subr.mxu0 0.0
        %1885 = vmatpush1.msra.mxu0 0.0
        %1886 = vmatprep.subr.mxu0 0.0
        %1887 = vmatpush1.msra.mxu0 0.0
        %1888 = vmatprep.subr.mxu0 0.0
        %1889 = vmatpush1.msra.mxu0 0.0
        %1890 = vmatprep.subr.mxu0 0.0
        %1891 = vmatpush1.msra.mxu0 0.0
        %1892 = vmatprep.subr.mxu0 0.0
        %1893 = vmatpush1.msra.mxu0 0.0
        %1894 = vmatprep.subr.mxu0 0.0
        %1895 = vmatpush1.msra.mxu0 0.0
        %1896 = vmatprep.subr.mxu0 0.0
        %1897 = vmatpush1.msra.mxu0 0.0
        %1898 = vmatprep.subr.mxu0 0.0
        %1899 = vmatpush1.msra.mxu0 0.0
        %1900 = vmatprep.subr.mxu0 0.0
        %1901 = vmatpush1.msra.mxu0 0.0
        %1902 = vmatprep.subr.mxu0 0.0
        %1903 = vmatpush1.msra.mxu0 0.0
        %1904 = vmatprep.subr.mxu0 0.0
        %1905 = vmatpush1.msra.mxu0 0.0
        %1906 = vmatprep.subr.mxu0 0.0
        %1907 = vmatpush1.msra.mxu0 0.0
        %1908 = vmatprep.subr.mxu0 0.0
        %1909 = vmatpush1.msra.mxu0 0.0
        %1910 = vmatprep.mubr.f32.mxu0 0.0
        %1911 = vmatmul.mubr.f32.gmra.mrb[0].mxu0 %v1844
        %v1912 = vpop.f32.mrb[0].mxu0
        %v1913 = vadd.f32 0.0, %v1912
        %v1914 = vpop.f32.mrb[0].mxu0
        %1915 = vdwg.mxu0
        %v1917 = vsel %vm758, %v1913, 0
        %1919 = vmatprep.subr.mxu0 0.0
        %1920 = vmatpush1.msra.mxu0 %v1747
        %1921 = vmatprep.subr.mxu0 0.0
        %1922 = vmatpush1.msra.mxu0 %v1748
        %1923 = vmatprep.subr.mxu0 0.0
        %1924 = vmatpush1.msra.mxu0 0.0
        %1925 = vmatprep.subr.mxu0 0.0
        %1926 = vmatpush1.msra.mxu0 0.0
        %1927 = vmatprep.subr.mxu0 0.0
        %1928 = vmatpush1.msra.mxu0 0.0
        %1929 = vmatprep.subr.mxu0 0.0
        %1930 = vmatpush1.msra.mxu0 0.0
        %1931 = vmatprep.subr.mxu0 0.0
        %1932 = vmatpush1.msra.mxu0 0.0
        %1933 = vmatprep.subr.mxu0 0.0
        %1934 = vmatpush1.msra.mxu0 0.0
        %1935 = vmatprep.subr.mxu0 0.0
        %1936 = vmatpush1.msra.mxu0 0.0
        %1937 = vmatprep.subr.mxu0 0.0
        %1938 = vmatpush1.msra.mxu0 0.0
        %1939 = vmatprep.subr.mxu0 0.0
        %1940 = vmatpush1.msra.mxu0 0.0
        %1941 = vmatprep.subr.mxu0 0.0
        %1942 = vmatpush1.msra.mxu0 0.0
        %1943 = vmatprep.subr.mxu0 0.0
        %1944 = vmatpush1.msra.mxu0 0.0
        %1945 = vmatprep.subr.mxu0 0.0
        %1946 = vmatpush1.msra.mxu0 0.0
        %1947 = vmatprep.subr.mxu0 0.0
        %1948 = vmatpush1.msra.mxu0 0.0
        %1949 = vmatprep.subr.mxu0 0.0
        %1950 = vmatpush1.msra.mxu0 0.0
        %1951 = vmatprep.subr.mxu0 0.0
        %1952 = vmatpush1.msra.mxu0 0.0
        %1953 = vmatprep.subr.mxu0 0.0
        %1954 = vmatpush1.msra.mxu0 0.0
        %1955 = vmatprep.subr.mxu0 0.0
        %1956 = vmatpush1.msra.mxu0 0.0
        %1957 = vmatprep.subr.mxu0 0.0
        %1958 = vmatpush1.msra.mxu0 0.0
        %1959 = vmatprep.subr.mxu0 0.0
        %1960 = vmatpush1.msra.mxu0 0.0
        %1961 = vmatprep.subr.mxu0 0.0
        %1962 = vmatpush1.msra.mxu0 0.0
        %1963 = vmatprep.subr.mxu0 0.0
        %1964 = vmatpush1.msra.mxu0 0.0
        %1965 = vmatprep.subr.mxu0 0.0
        %1966 = vmatpush1.msra.mxu0 0.0
        %1967 = vmatprep.subr.mxu0 0.0
        %1968 = vmatpush1.msra.mxu0 0.0
        %1969 = vmatprep.subr.mxu0 0.0
        %1970 = vmatpush1.msra.mxu0 0.0
        %1971 = vmatprep.subr.mxu0 0.0
        %1972 = vmatpush1.msra.mxu0 0.0
        %1973 = vmatprep.subr.mxu0 0.0
        %1974 = vmatpush1.msra.mxu0 0.0
        %1975 = vmatprep.subr.mxu0 0.0
        %1976 = vmatpush1.msra.mxu0 0.0
        %1977 = vmatprep.subr.mxu0 0.0
        %1978 = vmatpush1.msra.mxu0 0.0
        %1979 = vmatprep.subr.mxu0 0.0
        %1980 = vmatpush1.msra.mxu0 0.0
        %1981 = vmatprep.subr.mxu0 0.0
        %1982 = vmatpush1.msra.mxu0 0.0
        %1983 = vmatprep.mubr.f32.mxu0 0.0
        %1984 = vmatmul.mubr.f32.gmra.mrb[0].mxu0 %v1917
        %v1985 = vpop.f32.mrb[0].mxu0
        %v1986 = vadd.f32 0.0, %v1985
        %v1987 = vpop.f32.mrb[0].mxu0
        %1988 = vdwg.mxu0
        %v1990 = vsel %vm758, %v1741, 0
        %1992 = vmatprep.subr.mxu0 0.0
        %1993 = vmatpush1.msra.mxu0 %v1745
        %1994 = vmatprep.subr.mxu0 0.0
        %1995 = vmatpush1.msra.mxu0 %v1746
        %1996 = vmatprep.subr.mxu0 0.0
        %1997 = vmatpush1.msra.mxu0 0.0
        %1998 = vmatprep.subr.mxu0 0.0
        %1999 = vmatpush1.msra.mxu0 0.0
        %2000 = vmatprep.subr.mxu0 0.0
        %2001 = vmatpush1.msra.mxu0 0.0
        %2002 = vmatprep.subr.mxu0 0.0
        %2003 = vmatpush1.msra.mxu0 0.0
        %2004 = vmatprep.subr.mxu0 0.0
        %2005 = vmatpush1.msra.mxu0 0.0
        %2006 = vmatprep.subr.mxu0 0.0
        %2007 = vmatpush1.msra.mxu0 0.0
        %2008 = vmatprep.subr.mxu0 0.0
        %2009 = vmatpush1.msra.mxu0 0.0
        %2010 = vmatprep.subr.mxu0 0.0
        %2011 = vmatpush1.msra.mxu0 0.0
        %2012 = vmatprep.subr.mxu0 0.0
        %2013 = vmatpush1.msra.mxu0 0.0
        %2014 = vmatprep.subr.mxu0 0.0
        %2015 = vmatpush1.msra.mxu0 0.0
        %2016 = vmatprep.subr.mxu0 0.0
        %2017 = vmatpush1.msra.mxu0 0.0
        %2018 = vmatprep.subr.mxu0 0.0
        %2019 = vmatpush1.msra.mxu0 0.0
        %2020 = vmatprep.subr.mxu0 0.0
        %2021 = vmatpush1.msra.mxu0 0.0
        %2022 = vmatprep.subr.mxu0 0.0
        %2023 = vmatpush1.msra.mxu0 0.0
        %2024 = vmatprep.subr.mxu0 0.0
        %2025 = vmatpush1.msra.mxu0 0.0
        %2026 = vmatprep.subr.mxu0 0.0
        %2027 = vmatpush1.msra.mxu0 0.0
        %2028 = vmatprep.subr.mxu0 0.0
        %2029 = vmatpush1.msra.mxu0 0.0
        %2030 = vmatprep.subr.mxu0 0.0
        %2031 = vmatpush1.msra.mxu0 0.0
        %2032 = vmatprep.subr.mxu0 0.0
        %2033 = vmatpush1.msra.mxu0 0.0
        %2034 = vmatprep.subr.mxu0 0.0
        %2035 = vmatpush1.msra.mxu0 0.0
        %2036 = vmatprep.subr.mxu0 0.0
        %2037 = vmatpush1.msra.mxu0 0.0
        %2038 = vmatprep.subr.mxu0 0.0
        %2039 = vmatpush1.msra.mxu0 0.0
        %2040 = vmatprep.subr.mxu0 0.0
        %2041 = vmatpush1.msra.mxu0 0.0
        %2042 = vmatprep.subr.mxu0 0.0
        %2043 = vmatpush1.msra.mxu0 0.0
        %2044 = vmatprep.subr.mxu0 0.0
        %2045 = vmatpush1.msra.mxu0 0.0
        %2046 = vmatprep.subr.mxu0 0.0
        %2047 = vmatpush1.msra.mxu0 0.0
        %2048 = vmatprep.subr.mxu0 0.0
        %2049 = vmatpush1.msra.mxu0 0.0
        %2050 = vmatprep.subr.mxu0 0.0
        %2051 = vmatpush1.msra.mxu0 0.0
        %2052 = vmatprep.subr.mxu0 0.0
        %2053 = vmatpush1.msra.mxu0 0.0
        %2054 = vmatprep.subr.mxu0 0.0
        %2055 = vmatpush1.msra.mxu0 0.0
        %2056 = vmatprep.mubr.f32.mxu0 0.0
        %2057 = vmatmul.mubr.f32.gmra.mrb[0].mxu0 %v1990
        %v2058 = vpop.f32.mrb[0].mxu0
        %v2059 = vadd.f32 %v1986, %v2058
        %v2060 = vpop.f32.mrb[0].mxu0
        %2061 = vdwg.mxu0
        %s2062 = scalar_lea.vmem %s7, 1
        %v2063 = vld [vmem:[%s2062] sm:$0x1]
        %v2065 = vlaneseq
        %v2066 = vshrl.u32 %v2065, 7
        %v2067 = vsub.s32 0, %v2066
        %v2068 = vrot.slane %v2063, %v2067
        %v2070 = vadd.f32 %v2059, %v2068
        %v2071 = vadd.f32 %v1491, %v2070
        %s2072 = scalar_lea.vmem %s8, 1
        %v2073 = vld [vmem:[%s2072] sm:$0x1]
        %s2074 = scalar_lea.vmem %s9, 1
        %v2075 = vld [vmem:[%s2074] sm:$0x1]
        %v2076 = vsel %vm641, %v2071, 0.0
        %2077 = vadd.xlane.f32.xlu0 %v2076
        %v2078 = vpop.xlane.xlu0 %2077
        %v2079 = vmul.f32 %v2078, %v645
        %v2080 = vsub.f32 %v2071, %v2079
        %v2081 = vmul.f32 %v2080, %v2080
        %v2082 = vsel %vm641, %v2081, 0.0
        %2083 = vadd.xlane.f32.xlu0 %v2082
        %v2084 = vpop.xlane.xlu0 %2083
        %v2085 = vmul.f32 %v2084, %v645
        %v2086 = vadd.f32 %v2085, 1e-12
        %v2087 = vrsqrt.pop %v2086
        %v2088 = vmul.f32 %v2080, %v2087
        %v2090 = vlaneseq
        %v2091 = vshrl.u32 %v2090, 7
        %v2092 = vsub.s32 0, %v2091
        %v2093 = vrot.slane %v2073, %v2092
        %v2095 = vmul.f32 %v2088, %v2093
        %v2097 = vlaneseq
        %v2098 = vshrl.u32 %v2097, 7
        %v2099 = vsub.s32 0, %v2098
        %v2100 = vrot.slane %v2075, %v2099
        %v2102 = vadd.f32 %v2095, %v2100
        %s2103 = scalar_lea.vmem %s10, 32
        %v2104 = vld [vmem:[%s2103] sm:$0xff]
        %v2105 = vld [vmem:[%s2103 + $0x8] sm:$0xff]
        %v2106 = vld [vmem:[%s2103 + $0x10] sm:$0xff]
        %v2107 = vld [vmem:[%s2103 + $0x18] sm:$0xff]
        %s2108 = scalar_lea.vmem %s11, 1
        %v2109 = vld [vmem:[%s2108] sm:$0x1]
        %v2111 = vlaneseq
        %v2112 = vshrl.u32 %v2111, 7
        %v2113 = vsub.s32 0, %v2112
        %v2114 = vrot.slane %v2109, %v2113
        %v2117 = vsel %vm641, %v2102, 0
        %2119 = vmatprep.subr.mxu0 0.0
        %2120 = vmatpush1.msra.mxu0 %v2104
        %2121 = vmatprep.subr.mxu0 0.0
        %2122 = vmatpush1.msra.mxu0 %v2105
        %2123 = vmatprep.subr.mxu0 0.0
        %2124 = vmatpush1.msra.mxu0 %v2106
        %2125 = vmatprep.subr.mxu0 0.0
        %2126 = vmatpush1.msra.mxu0 %v2107
        %2127 = vmatprep.subr.mxu0 0.0
        %2128 = vmatpush1.msra.mxu0 0.0
        %2129 = vmatprep.subr.mxu0 0.0
        %2130 = vmatpush1.msra.mxu0 0.0
        %2131 = vmatprep.subr.mxu0 0.0
        %2132 = vmatpush1.msra.mxu0 0.0
        %2133 = vmatprep.subr.mxu0 0.0
        %2134 = vmatpush1.msra.mxu0 0.0
        %2135 = vmatprep.subr.mxu0 0.0
        %2136 = vmatpush1.msra.mxu0 0.0
        %2137 = vmatprep.subr.mxu0 0.0
        %2138 = vmatpush1.msra.mxu0 0.0
        %2139 = vmatprep.subr.mxu0 0.0
        %2140 = vmatpush1.msra.mxu0 0.0
        %2141 = vmatprep.subr.mxu0 0.0
        %2142 = vmatpush1.msra.mxu0 0.0
        %2143 = vmatprep.subr.mxu0 0.0
        %2144 = vmatpush1.msra.mxu0 0.0
        %2145 = vmatprep.subr.mxu0 0.0
        %2146 = vmatpush1.msra.mxu0 0.0
        %2147 = vmatprep.subr.mxu0 0.0
        %2148 = vmatpush1.msra.mxu0 0.0
        %2149 = vmatprep.subr.mxu0 0.0
        %2150 = vmatpush1.msra.mxu0 0.0
        %2151 = vmatprep.subr.mxu0 0.0
        %2152 = vmatpush1.msra.mxu0 0.0
        %2153 = vmatprep.subr.mxu0 0.0
        %2154 = vmatpush1.msra.mxu0 0.0
        %2155 = vmatprep.subr.mxu0 0.0
        %2156 = vmatpush1.msra.mxu0 0.0
        %2157 = vmatprep.subr.mxu0 0.0
        %2158 = vmatpush1.msra.mxu0 0.0
        %2159 = vmatprep.subr.mxu0 0.0
        %2160 = vmatpush1.msra.mxu0 0.0
        %2161 = vmatprep.subr.mxu0 0.0
        %2162 = vmatpush1.msra.mxu0 0.0
        %2163 = vmatprep.subr.mxu0 0.0
        %2164 = vmatpush1.msra.mxu0 0.0
        %2165 = vmatprep.subr.mxu0 0.0
        %2166 = vmatpush1.msra.mxu0 0.0
        %2167 = vmatprep.subr.mxu0 0.0
        %2168 = vmatpush1.msra.mxu0 0.0
        %2169 = vmatprep.subr.mxu0 0.0
        %2170 = vmatpush1.msra.mxu0 0.0
        %2171 = vmatprep.subr.mxu0 0.0
        %2172 = vmatpush1.msra.mxu0 0.0
        %2173 = vmatprep.subr.mxu0 0.0
        %2174 = vmatpush1.msra.mxu0 0.0
        %2175 = vmatprep.subr.mxu0 0.0
        %2176 = vmatpush1.msra.mxu0 0.0
        %2177 = vmatprep.subr.mxu0 0.0
        %2178 = vmatpush1.msra.mxu0 0.0
        %2179 = vmatprep.subr.mxu0 0.0
        %2180 = vmatpush1.msra.mxu0 0.0
        %2181 = vmatprep.subr.mxu0 0.0
        %2182 = vmatpush1.msra.mxu0 0.0
        %2183 = vmatprep.mubr.f32.mxu0 0.0
        %2184 = vmatmul.mubr.f32.gmra.mrb[0].mxu0 %v2117
        %v2185 = vpop.f32.mrb[0].mxu0
        %v2186 = vadd.f32 %v2114, %v2185
        %v2187 = vpop.f32.mrb[0].mxu0
        %2188 = vdwg.mxu0
        %v2189 = vmul.f32 %v2186, 0.5
        %v2190 = vmul.f32 %v2186, 0.70710677
        %v2191 = verf.f32.pop %v2190
        %v2192 = vadd.f32 %v2191, 1.0
        %v2193 = vmul.f32 %v2189, %v2192
        %s2194 = scalar_lea.vmem %s12, 64
        %v2195 = vld [vmem:[%s2194] sm:$0xff]
        %v2196 = vld [vmem:[%s2194 + $0x8] sm:$0xff]
        %v2197 = vld [vmem:[%s2194 + $0x10] sm:$0xff]
        %v2198 = vld [vmem:[%s2194 + $0x18] sm:$0xff]
        %v2199 = vld [vmem:[%s2194 + $0x20] sm:$0xff]
        %v2200 = vld [vmem:[%s2194 + $0x28] sm:$0xff]
        %v2201 = vld [vmem:[%s2194 + $0x30] sm:$0xff]
        %v2202 = vld [vmem:[%s2194 + $0x38] sm:$0xff]
        %s2203 = scalar_lea.vmem %s13, 1
        %v2204 = vld [vmem:[%s2203] sm:$0x1]
        %v2206 = vlaneseq
        %v2207 = vshrl.u32 %v2206, 7
        %v2208 = vsub.s32 0, %v2207
        %v2209 = vrot.slane %v2204, %v2208
        %v2212 = vsel %vm1388, %v2193, 0
        %2214 = vmatprep.subr.mxu0 0.0
        %2215 = vmatpush1.msra.mxu0 %v2195
        %2216 = vmatprep.subr.mxu0 0.0
        %2217 = vmatpush1.msra.mxu0 %v2196
        %2218 = vmatprep.subr.mxu0 0.0
        %2219 = vmatpush1.msra.mxu0 %v2197
        %2220 = vmatprep.subr.mxu0 0.0
        %2221 = vmatpush1.msra.mxu0 %v2198
        %2222 = vmatprep.subr.mxu0 0.0
        %2223 = vmatpush1.msra.mxu0 %v2199
        %2224 = vmatprep.subr.mxu0 0.0
        %2225 = vmatpush1.msra.mxu0 %v2200
        %2226 = vmatprep.subr.mxu0 0.0
        %2227 = vmatpush1.msra.mxu0 %v2201
        %2228 = vmatprep.subr.mxu0 0.0
        %2229 = vmatpush1.msra.mxu0 %v2202
        %2230 = vmatprep.subr.mxu0 0.0
        %2231 = vmatpush1.msra.mxu0 0.0
        %2232 = vmatprep.subr.mxu0 0.0
        %2233 = vmatpush1.msra.mxu0 0.0
        %2234 = vmatprep.subr.mxu0 0.0
        %2235 = vmatpush1.msra.mxu0 0.0
        %2236 = vmatprep.subr.mxu0 0.0
        %2237 = vmatpush1.msra.mxu0 0.0
        %2238 = vmatprep.subr.mxu0 0.0
        %2239 = vmatpush1.msra.mxu0 0.0
        %2240 = vmatprep.subr.mxu0 0.0
        %2241 = vmatpush1.msra.mxu0 0.0
        %2242 = vmatprep.subr.mxu0 0.0
        %2243 = vmatpush1.msra.mxu0 0.0
        %2244 = vmatprep.subr.mxu0 0.0
        %2245 = vmatpush1.msra.mxu0 0.0
        %2246 = vmatprep.subr.mxu0 0.0
        %2247 = vmatpush1.msra.mxu0 0.0
        %2248 = vmatprep.subr.mxu0 0.0
        %2249 = vmatpush1.msra.mxu0 0.0
        %2250 = vmatprep.subr.mxu0 0.0
        %2251 = vmatpush1.msra.mxu0 0.0
        %2252 = vmatprep.subr.mxu0 0.0
        %2253 = vmatpush1.msra.mxu0 0.0
        %2254 = vmatprep.subr.mxu0 0.0
        %2255 = vmatpush1.msra.mxu0 0.0
        %2256 = vmatprep.subr.mxu0 0.0
        %2257 = vmatpush1.msra.mxu0 0.0
        %2258 = vmatprep.subr.mxu0 0.0
        %2259 = vmatpush1.msra.mxu0 0.0
        %2260 = vmatprep.subr.mxu0 0.0
        %2261 = vmatpush1.msra.mxu0 0.0
        %2262 = vmatprep.subr.mxu0 0.0
        %2263 = vmatpush1.msra.mxu0 0.0
        %2264 = vmatprep.subr.mxu0 0.0
        %2265 = vmatpush1.msra.mxu0 0.0
        %2266 = vmatprep.subr.mxu0 0.0
        %2267 = vmatpush1.msra.mxu0 0.0
        %2268 = vmatprep.subr.mxu0 0.0
        %2269 = vmatpush1.msra.mxu0 0.0
        %2270 = vmatprep.subr.mxu0 0.0
        %2271 = vmatpush1.msra.mxu0 0.0
        %2272 = vmatprep.subr.mxu0 0.0
        %2273 = vmatpush1.msra.mxu0 0.0
        %2274 = vmatprep.subr.mxu0 0.0
        %2275 = vmatpush1.msra.mxu0 0.0
        %2276 = vmatprep.subr.mxu0 0.0
        %2277 = vmatpush1.msra.mxu0 0.0
        %2278 = vmatprep.mubr.f32.mxu0 0.0
        %2279 = vmatmul.mubr.f32.gmra.mrb[0].mxu0 %v2212
        %v2280 = vpop.f32.mrb[0].mxu0
        %v2281 = vadd.f32 %v2209, %v2280
        %v2282 = vpop.f32.mrb[0].mxu0
        %2283 = vdwg.mxu0
        %v2284 = vadd.f32 %v2102, %v2281
        %s2285 = scalar_lea.vmem %s14, 1
        %v2286 = vld [vmem:[%s2285] sm:$0x1]
        %s2287 = scalar_lea.vmem %s15, 1
        %v2288 = vld [vmem:[%s2287] sm:$0x1]
        %v2289 = vsel %vm641, %v2284, 0.0
        %2290 = vadd.xlane.f32.xlu0 %v2289
        %v2291 = vpop.xlane.xlu0 %2290
        %v2292 = vmul.f32 %v2291, %v645
        %v2293 = vsub.f32 %v2284, %v2292
        %v2294 = vmul.f32 %v2293, %v2293
        %v2295 = vsel %vm641, %v2294, 0.0
        %2296 = vadd.xlane.f32.xlu0 %v2295
        %v2297 = vpop.xlane.xlu0 %2296
        %v2298 = vmul.f32 %v2297, %v645
        %v2299 = vadd.f32 %v2298, 1e-12
        %v2300 = vrsqrt.pop %v2299
        %v2301 = vmul.f32 %v2293, %v2300
        %v2303 = vlaneseq
        %v2304 = vshrl.u32 %v2303, 7
        %v2305 = vsub.s32 0, %v2304
        %v2306 = vrot.slane %v2286, %v2305
        %v2308 = vmul.f32 %v2301, %v2306
        %v2310 = vlaneseq
        %v2311 = vshrl.u32 %v2310, 7
        %v2312 = vsub.s32 0, %v2311
        %v2313 = vrot.slane %v2288, %v2312
        %v2315 = vadd.f32 %v2308, %v2313
        %v2316 = vld [vmem:[%s16] sm:$0xff]
        %v2317 = vld [vmem:[%s16 + $0x8] sm:$0xff]
        %v2318 = vld [vmem:[%s16 + $0x10] sm:$0xff]
        %v2319 = vld [vmem:[%s16 + $0x18] sm:$0xff]
        %v2320 = vld [vmem:[%s17] sm:$0x1]
        %v2322 = vsel %vm641, %v2315, 0
        %2324 = vmatprep.subr.mxu0 0.0
        %2325 = vmatpush1.msra.mxu0 %v2316
        %2326 = vmatprep.subr.mxu0 0.0
        %2327 = vmatpush1.msra.mxu0 %v2317
        %2328 = vmatprep.subr.mxu0 0.0
        %2329 = vmatpush1.msra.mxu0 %v2318
        %2330 = vmatprep.subr.mxu0 0.0
        %2331 = vmatpush1.msra.mxu0 %v2319
        %2332 = vmatprep.subr.mxu0 0.0
        %2333 = vmatpush1.msra.mxu0 0.0
        %2334 = vmatprep.subr.mxu0 0.0
        %2335 = vmatpush1.msra.mxu0 0.0
        %2336 = vmatprep.subr.mxu0 0.0
        %2337 = vmatpush1.msra.mxu0 0.0
        %2338 = vmatprep.subr.mxu0 0.0
        %2339 = vmatpush1.msra.mxu0 0.0
        %2340 = vmatprep.subr.mxu0 0.0
        %2341 = vmatpush1.msra.mxu0 0.0
        %2342 = vmatprep.subr.mxu0 0.0
        %2343 = vmatpush1.msra.mxu0 0.0
        %2344 = vmatprep.subr.mxu0 0.0
        %2345 = vmatpush1.msra.mxu0 0.0
        %2346 = vmatprep.subr.mxu0 0.0
        %2347 = vmatpush1.msra.mxu0 0.0
        %2348 = vmatprep.subr.mxu0 0.0
        %2349 = vmatpush1.msra.mxu0 0.0
        %2350 = vmatprep.subr.mxu0 0.0
        %2351 = vmatpush1.msra.mxu0 0.0
        %2352 = vmatprep.subr.mxu0 0.0
        %2353 = vmatpush1.msra.mxu0 0.0
        %2354 = vmatprep.subr.mxu0 0.0
        %2355 = vmatpush1.msra.mxu0 0.0
        %2356 = vmatprep.subr.mxu0 0.0
        %2357 = vmatpush1.msra.mxu0 0.0
        %2358 = vmatprep.subr.mxu0 0.0
        %2359 = vmatpush1.msra.mxu0 0.0
        %2360 = vmatprep.subr.mxu0 0.0
        %2361 = vmatpush1.msra.mxu0 0.0
        %2362 = vmatprep.subr.mxu0 0.0
        %2363 = vmatpush1.msra.mxu0 0.0
        %2364 = vmatprep.subr.mxu0 0.0
        %2365 = vmatpush1.msra.mxu0 0.0
        %2366 = vmatprep.subr.mxu0 0.0
        %2367 = vmatpush1.msra.mxu0 0.0
        %2368 = vmatprep.subr.mxu0 0.0
        %2369 = vmatpush1.msra.mxu0 0.0
        %2370 = vmatprep.subr.mxu0 0.0
        %2371 = vmatpush1.msra.mxu0 0.0
        %2372 = vmatprep.subr.mxu0 0.0
        %2373 = vmatpush1.msra.mxu0 0.0
        %2374 = vmatprep.subr.mxu0 0.0
        %2375 = vmatpush1.msra.mxu0 0.0
        %2376 = vmatprep.subr.mxu0 0.0
        %2377 = vmatpush1.msra.mxu0 0.0
        %2378 = vmatprep.subr.mxu0 0.0
        %2379 = vmatpush1.msra.mxu0 0.0
        %2380 = vmatprep.subr.mxu0 0.0
        %2381 = vmatpush1.msra.mxu0 0.0
        %2382 = vmatprep.subr.mxu0 0.0
        %2383 = vmatpush1.msra.mxu0 0.0
        %2384 = vmatprep.subr.mxu0 0.0
        %2385 = vmatpush1.msra.mxu0 0.0
        %2386 = vmatprep.subr.mxu0 0.0
        %2387 = vmatpush1.msra.mxu0 0.0
        %2388 = vmatprep.mubr.f32.mxu0 0.0
        %2389 = vmatmul.mubr.f32.gmra.mrb[0].mxu0 %v2322
        %v2390 = vpop.f32.mrb[0].mxu0
        %v2391 = vadd.f32 %v2320, %v2390
        %v2392 = vpop.f32.mrb[0].mxu0
        %2393 = vdwg.mxu0
        %v2394 = vtanh.pop %v2391
        %v2395 = vld [vmem:[%s18] sm:$0xff]
        %v2396 = vld [vmem:[%s18 + $0x8] sm:$0xff]
        %v2397 = vld [vmem:[%s18 + $0x10] sm:$0xff]
        %v2398 = vld [vmem:[%s18 + $0x18] sm:$0xff]
        %v2399 = vld [vmem:[%s19] sm:$0x1]
        %v2401 = vsel %vm641, %v2394, 0
        %2403 = vmatprep.subr.mxu0 0.0
        %2404 = vmatpush1.msra.mxu0 %v2395
        %2405 = vmatprep.subr.mxu0 0.0
        %2406 = vmatpush1.msra.mxu0 %v2396
        %2407 = vmatprep.subr.mxu0 0.0
        %2408 = vmatpush1.msra.mxu0 %v2397
        %2409 = vmatprep.subr.mxu0 0.0
        %2410 = vmatpush1.msra.mxu0 %v2398
        %2411 = vmatprep.subr.mxu0 0.0
        %2412 = vmatpush1.msra.mxu0 0.0
        %2413 = vmatprep.subr.mxu0 0.0
        %2414 = vmatpush1.msra.mxu0 0.0
        %2415 = vmatprep.subr.mxu0 0.0
        %2416 = vmatpush1.msra.mxu0 0.0
        %2417 = vmatprep.subr.mxu0 0.0
        %2418 = vmatpush1.msra.mxu0 0.0
        %2419 = vmatprep.subr.mxu0 0.0
        %2420 = vmatpush1.msra.mxu0 0.0
        %2421 = vmatprep.subr.mxu0 0.0
        %2422 = vmatpush1.msra.mxu0 0.0
        %2423 = vmatprep.subr.mxu0 0.0
        %2424 = vmatpush1.msra.mxu0 0.0
        %2425 = vmatprep.subr.mxu0 0.0
        %2426 = vmatpush1.msra.mxu0 0.0
        %2427 = vmatprep.subr.mxu0 0.0
        %2428 = vmatpush1.msra.mxu0 0.0
        %2429 = vmatprep.subr.mxu0 0.0
        %2430 = vmatpush1.msra.mxu0 0.0
        %2431 = vmatprep.subr.mxu0 0.0
        %2432 = vmatpush1.msra.mxu0 0.0
        %2433 = vmatprep.subr.mxu0 0.0
        %2434 = vmatpush1.msra.mxu0 0.0
        %2435 = vmatprep.subr.mxu0 0.0
        %2436 = vmatpush1.msra.mxu0 0.0
        %2437 = vmatprep.subr.mxu0 0.0
        %2438 = vmatpush1.msra.mxu0 0.0
        %2439 = vmatprep.subr.mxu0 0.0
        %2440 = vmatpush1.msra.mxu0 0.0
        %2441 = vmatprep.subr.mxu0 0.0
        %2442 = vmatpush1.msra.mxu0 0.0
        %2443 = vmatprep.subr.mxu0 0.0
        %2444 = vmatpush1.msra.mxu0 0.0
        %2445 = vmatprep.subr.mxu0 0.0
        %2446 = vmatpush1.msra.mxu0 0.0
        %2447 = vmatprep.subr.mxu0 0.0
        %2448 = vmatpush1.msra.mxu0 0.0
        %2449 = vmatprep.subr.mxu0 0.0
        %2450 = vmatpush1.msra.mxu0 0.0
        %2451 = vmatprep.subr.mxu0 0.0
        %2452 = vmatpush1.msra.mxu0 0.0
        %2453 = vmatprep.subr.mxu0 0.0
        %2454 = vmatpush1.msra.mxu0 0.0
        %2455 = vmatprep.subr.mxu0 0.0
        %2456 = vmatpush1.msra.mxu0 0.0
        %2457 = vmatprep.subr.mxu0 0.0
        %2458 = vmatpush1.msra.mxu0 0.0
        %2459 = vmatprep.subr.mxu0 0.0
        %2460 = vmatpush1.msra.mxu0 0.0
        %2461 = vmatprep.subr.mxu0 0.0
        %2462 = vmatpush1.msra.mxu0 0.0
        %2463 = vmatprep.subr.mxu0 0.0
        %2464 = vmatpush1.msra.mxu0 0.0
        %2465 = vmatprep.subr.mxu0 0.0
        %2466 = vmatpush1.msra.mxu0 0.0
        %2467 = vmatprep.mubr.f32.mxu0 0.0
        %2468 = vmatmul.mubr.f32.gmra.mrb[0].mxu0 %v2401
        %v2469 = vpop.f32.mrb[0].mxu0
        %v2470 = vadd.f32 %v2399, %v2469
        %v2471 = vpop.f32.mrb[0].mxu0
        %2472 = vdwg.mxu0
        %2473 = vst [vmem:[%s630] sm:$0x1] %v2470
        %s2474 = sand.u32 %s472, 1
        %s2475 = scalar_lea.sflag [#allocation3], %s2474
        %s2476 = sand.u32 %s472, 1
        %s2477 = scalar_lea.vmem [#allocation2], %s2476
        // Predicated region
        $region101: #{question_classifier_forward.1} parent=99 // pred_check
          %p2478 = pneg %p482
        $region102: #{question_classifier_forward.1} parent=99 // pred_check_branch
          %2480 = sbr.rel (%p2478) target = $region104
        $region103: #{question_classifier_forward.1} parent=99 // pred_region
          %s2482 = ssub.s32 16, 16
          %2483 = vsyncadd %s2475, %s2482
          %s2484 = smul.addr %s34, 16
          %s2485 = scalar_lea.hbm %s20, %s2484
          %s2487 = sshll.u32 %s2477, 4
          %s2488 = int_to_ptr.vmem [resolvable:$true] %s2487
          %2490 = dma.vmem_to_hbm [thread:$0]  %s2488, 16, %s2485, %s2475
        $region104: #{question_classifier_forward.1} parent=99 // pred_fallthru
          _
      $region100: #{question_classifier_forward.1} parent=5 // pred_fallthru
        _
      %p2491 = scmp.le.s32.totalorder 2, %s29
      // Predicated region
      $region105: #{question_classifier_forward.1} parent=5 // pred_check
        %p2492 = pneg %p2491
      $region106: #{question_classifier_forward.1} parent=5 // pred_check_branch
        %2494 = sbr.rel (%p2492) target = $region108
      $region107: #{question_classifier_forward.1} parent=5 // pred_region
        %s2495 = ssub.s32 %s29, 2
        // Predicated region
        $region109: #{question_classifier_forward.1} parent=107 // pred_check
          %p2496 = pneg %p488
        $region110: #{question_classifier_forward.1} parent=107 // pred_check_branch
          %2498 = sbr.rel (%p2496) target = $region112
        $region111: #{question_classifier_forward.1} parent=107 // pred_region
          %s2499 = sand.u32 %s473, 1
          %s2500 = scalar_lea.sflag [#allocation3], %s2499
          %s2501 = sand.u32 %s473, 1
          %s2502 = scalar_lea.vmem [#allocation2], %s2501
          %2503 = dma.done %s2500, 16
        $region112: #{question_classifier_forward.1} parent=107 // pred_fallthru
          _
      $region108: #{question_classifier_forward.1} parent=5 // pred_fallthru
        _
    $region6: #{question_classifier_forward.1} parent=1 // loop_footer
      %s33 = sadd.s32 1, %s29
    $region7: #{question_classifier_forward.1} parent=1 // loop_footer_branch
      %28 = sbr.rel target = $region3
    $region8: #{question_classifier_forward.1} parent=1 // loop_exit
      _
    %2504 = vsyncpa [#allocation3], 1
    %s2505 = scalar_lea.sflag [#allocation3], 1
    %2506 = vsyncpa %s2505, 1

</llo_original>
